<compile_context>
chip_gen: v7x
topology: tpu7x:2x2x1
jax: 0.10.0
libtpu: 0.0.40
codegen_flags: <defaults>
</compile_context>

<pallas_src>
import jax
import jax.numpy as jnp
from jax.experimental import pallas as pl
from jax.experimental.pallas import tpu as pltpu


# ----------------------------- Pallas kernel ---------------------------------
def rcnn_kernel(embed_ref,                    # (B, S, E)
                w_in_ref, b_in_ref,           # (E, 8H), (1, 8H): both dirs packed
                whh_f_ref, whh_b_ref,         # (H, 4H) each, gate order [i,f,o,g]
                fcw_f_ref, fcw_b_ref, fcw_e_ref, fc_b_ref,   # fc split into slabs
                out_ref):                     # (B, C)
    embed = embed_ref[...]                    # (B, S, E) f32
    B, S, E = embed.shape
    H = whh_f_ref.shape[0]
    H4 = 4 * H

    # ---- hoisted input projection for BOTH directions: one big MXU matmul ----
    x2d = embed.reshape(B * S, E)
    gin = (jnp.dot(x2d, w_in_ref[...], preferred_element_type=jnp.float32)
           + b_in_ref[...])                   # (B*S, 8H), biases folded in
    gin = gin.reshape(B, S, 2 * H4)

    whh_f = whh_f_ref[...]
    whh_b = whh_b_ref[...]

    h_f = jnp.zeros((B, H), jnp.float32)
    c_f = jnp.zeros((B, H), jnp.float32)
    h_b = jnp.zeros((B, H), jnp.float32)
    c_b = jnp.zeros((B, H), jnp.float32)
    pooled_f = jnp.full((B, H), -jnp.inf, jnp.float32)
    pooled_b = jnp.full((B, H), -jnp.inf, jnp.float32)

    def lstm_cell(gates, c_prev):
        # gate columns repacked to [i, f, o, g]:
        #   one sigmoid over a contiguous (B, 3H) slab, one tanh over (B, H)
        s = jax.nn.sigmoid(gates[:, :3 * H])
        g_g = jnp.tanh(gates[:, 3 * H:])
        i_g = s[:, 0 * H:1 * H]
        f_g = s[:, 1 * H:2 * H]
        o_g = s[:, 2 * H:3 * H]
        c_new = f_g * c_prev + i_g * g_g
        h_new = o_g * jnp.tanh(c_new)
        return h_new, c_new

    # ---- interleaved fwd/bwd recurrence with fused tanh+max pooling ----------
    for t in range(S):                        # S is small & static -> unrolled
        g_f = gin[:, t, :H4] + jnp.dot(h_f, whh_f,
                                       preferred_element_type=jnp.float32)
        g_b = gin[:, S - 1 - t, H4:] + jnp.dot(h_b, whh_b,
                                               preferred_element_type=jnp.float32)
        h_f, c_f = lstm_cell(g_f, c_f)
        h_b, c_b = lstm_cell(g_b, c_b)
        pooled_f = jnp.maximum(pooled_f, jnp.tanh(h_f))
        pooled_b = jnp.maximum(pooled_b, jnp.tanh(h_b))

    # embedding branch of the concat: one vectorized tanh + max over seq axis
    pooled_e = jnp.max(jnp.tanh(embed), axis=1)            # (B, E)

    # ---- concat-free FC: fc_w pre-split in [h_fwd, h_bwd, embed] row order ---
    logits = (jnp.dot(pooled_f, fcw_f_ref[...], preferred_element_type=jnp.float32)
              + jnp.dot(pooled_b, fcw_b_ref[...], preferred_element_type=jnp.float32)
              + jnp.dot(pooled_e, fcw_e_ref[...], preferred_element_type=jnp.float32)
              + fc_b_ref[...])                              # (B, C)
    out_ref[...] = logits


# ------------------------------- wrapper --------------------------------------
def rcnn_forward(x_ids, params):
    # Embedding lookup is glue (gather); everything after it runs in the kernel.
    embed_x = params["embedding"][x_ids].astype(jnp.float32)   # (B, S, E)
    B, S, E = embed_x.shape
    H = params["whh_f"].shape[0]
    C = params["fc_w"].shape[1]

    # Repack gate columns [i, f, g, o] (PyTorch order) -> [i, f, o, g] so the
    # kernel applies one sigmoid to a contiguous 3H slab and one tanh to H.
    def repack(w):
        i, f, g, o = jnp.split(w, 4, axis=-1)
        return jnp.concatenate([i, f, o, g], axis=-1)

    w_in = jnp.concatenate([repack(params["wih_f"]),
                            repack(params["wih_b"])], axis=1)   # (E, 8H)
    b_in = jnp.concatenate([repack(params["b_f"]),
                            repack(params["b_b"])], axis=1)     # (1, 8H)
    whh_f = repack(params["whh_f"])                             # (H, 4H)
    whh_b = repack(params["whh_b"])                             # (H, 4H)
    # fc weight split into the three slabs matching the [h_fwd, h_bwd, embed]
    # concat order of the reference (row order must not change!).
    fcw_f = params["fc_w"][:H]                                  # (H, C)
    fcw_b = params["fc_w"][H:2 * H]                             # (H, C)
    fcw_e = params["fc_w"][2 * H:]                              # (E, C)

    vmem = pl.BlockSpec(memory_space=pltpu.MemorySpace.VMEM)
    return pl.pallas_call(
        rcnn_kernel,
        out_shape=jax.ShapeDtypeStruct((B, C), jnp.float32),
        in_specs=[vmem] * 9,
        out_specs=vmem,
        compiler_params=pltpu.CompilerParams(
            vmem_limit_bytes=64 * 1024 * 1024),
    )(embed_x, w_in, b_in, whh_f, whh_b, fcw_f, fcw_b, fcw_e, params["fc_b"])


# --------------------------- pure-JAX reference --------------------------------
def rcnn_reference(x_ids, params):
    embed_x = params["embedding"][x_ids].astype(jnp.float32)
    B, S, E = embed_x.shape
    H = params["whh_f"].shape[0]

    def run_lstm(wih, whh, b, reverse):
        h = jnp.zeros((B, H), jnp.float32)
        c = jnp.zeros((B, H), jnp.float32)
        hs = [None] * S
        order = range(S - 1, -1, -1) if reverse else range(S)
        for t in order:
            g = embed_x[:, t, :] @ wih + h @ whh + b
            i_g = jax.nn.sigmoid(g[:, 0 * H:1 * H])
            f_g = jax.nn.sigmoid(g[:, 1 * H:2 * H])
            g_g = jnp.tanh(g[:, 2 * H:3 * H])
            o_g = jax.nn.sigmoid(g[:, 3 * H:4 * H])
            c = f_g * c + i_g * g_g
            h = o_g * jnp.tanh(c)
            hs[t] = h
        return jnp.stack(hs, axis=1)            # (B, S, H)

    out_f = run_lstm(params["wih_f"], params["whh_f"], params["b_f"], False)
    out_b = run_lstm(params["wih_b"], params["whh_b"], params["b_b"], True)
    cat_x = jnp.concatenate([out_f, out_b, embed_x], axis=2)   # (B, S, 2H+E)
    pooled = jnp.max(jnp.tanh(cat_x), axis=1)                  # (B, 2H+E)
    return pooled @ params["fc_w"] + params["fc_b"]


# --------------------------------- main ----------------------------------------
if __name__ == "__main__":
    # config (small, consistent with the module)
    vocab_size, embed_size, hidden_size = 50, 16, 32
    max_doc_len, class_num = 8, 4
    batch = 2

    key = jax.random.PRNGKey(0)
    ks = jax.random.split(key, 10)
    scale = 1.0 / jnp.sqrt(hidden_size)

    def u(k, shape):
        return jax.random.uniform(k, shape, jnp.float32, -scale, scale)

    params = {
        "embedding": jax.random.normal(ks[0], (vocab_size, embed_size), jnp.float32),
        # weights stored transposed vs. PyTorch: (in, 4H), PyTorch gate order [i,f,g,o]
        "wih_f": u(ks[1], (embed_size, 4 * hidden_size)),
        "whh_f": u(ks[2], (hidden_size, 4 * hidden_size)),
        "b_f":   u(ks[3], (1, 4 * hidden_size)),   # b_ih + b_hh combined
        "wih_b": u(ks[4], (embed_size, 4 * hidden_size)),
        "whh_b": u(ks[5], (hidden_size, 4 * hidden_size)),
        "b_b":   u(ks[6], (1, 4 * hidden_size)),
        "fc_w":  u(ks[7], (2 * hidden_size + embed_size, class_num)),
        "fc_b":  u(ks[8], (1, class_num)),
    }
    # TODO(synk): nn.Dropout is defined in __init__ but never called in forward(); omitted.

    x = jax.random.randint(ks[9], (batch, max_doc_len), 0, vocab_size, jnp.int32)

    logits = jax.block_until_ready(rcnn_forward(x, params))
    ref = rcnn_reference(x, params)

    assert logits.shape == (batch, class_num), logits.shape
    assert jnp.allclose(logits, ref, atol=1e-2, rtol=1e-2), (
        f"max abs diff = {jnp.max(jnp.abs(logits - ref))}")
    print("KERNEL_OK")
</pallas_src>

<mosaic_0001>
module attributes {stable_mosaic.version = 11 : i64} {
  func.func @rcnn_kernel(%arg0: memref<2x8x16xf32, #tpu.memory_space<vmem>>, %arg1: memref<16x256xf32, #tpu.memory_space<vmem>>, %arg2: memref<1x256xf32, #tpu.memory_space<vmem>>, %arg3: memref<32x128xf32, #tpu.memory_space<vmem>>, %arg4: memref<32x128xf32, #tpu.memory_space<vmem>>, %arg5: memref<32x4xf32, #tpu.memory_space<vmem>>, %arg6: memref<32x4xf32, #tpu.memory_space<vmem>>, %arg7: memref<16x4xf32, #tpu.memory_space<vmem>>, %arg8: memref<1x4xf32, #tpu.memory_space<vmem>>, %arg9: memref<2x4xf32, #tpu.memory_space<vmem>>) attributes {dimension_semantics = [], scalar_prefetch = 0 : i64, scratch_operands = 0 : i64, tpu.core_type = #tpu.core_type<tc>} {
    %c0 = arith.constant 0 : index
    %c0_0 = arith.constant 0 : index
    %c0_1 = arith.constant 0 : index
    %0 = vector.load %arg0[%c0, %c0_0, %c0_1] : memref<2x8x16xf32, #tpu.memory_space<vmem>>, vector<2x8x16xf32>
    %1 = vector.shape_cast %0 : vector<2x8x16xf32> to vector<16x16xf32>
    %c0_2 = arith.constant 0 : index
    %c0_3 = arith.constant 0 : index
    %2 = vector.load %arg1[%c0_2, %c0_3] : memref<16x256xf32, #tpu.memory_space<vmem>>, vector<16x256xf32>
    %cst = arith.constant dense<0.000000e+00> : vector<16x256xf32>
    %3 = tpu.matmul %1, %2, %cst {dimension_numbers = #tpu.dot_dimension_numbers<[1], [0], [0], [1], [0, 0, 1, 1], [], []>} : vector<16x16xf32>, vector<16x256xf32>, vector<16x256xf32> -> vector<16x256xf32>
    %c0_4 = arith.constant 0 : index
    %c0_5 = arith.constant 0 : index
    %4 = vector.load %arg2[%c0_4, %c0_5] : memref<1x256xf32, #tpu.memory_space<vmem>>, vector<1x256xf32>
    %5 = vector.broadcast %4 : vector<1x256xf32> to vector<16x256xf32>
    %6 = arith.addf %3, %5 : vector<16x256xf32>
    %7 = vector.shape_cast %6 : vector<16x256xf32> to vector<2x8x256xf32>
    %c0_6 = arith.constant 0 : index
    %c0_7 = arith.constant 0 : index
    %8 = vector.load %arg3[%c0_6, %c0_7] : memref<32x128xf32, #tpu.memory_space<vmem>>, vector<32x128xf32>
    %c0_8 = arith.constant 0 : index
    %c0_9 = arith.constant 0 : index
    %9 = vector.load %arg4[%c0_8, %c0_9] : memref<32x128xf32, #tpu.memory_space<vmem>>, vector<32x128xf32>
    %cst_10 = arith.constant 0.000000e+00 : f32
    %10 = vector.broadcast %cst_10 : f32 to vector<2x32xf32>
    %cst_11 = arith.constant 0.000000e+00 : f32
    %11 = vector.broadcast %cst_11 : f32 to vector<2x32xf32>
    %cst_12 = arith.constant 0.000000e+00 : f32
    %12 = vector.broadcast %cst_12 : f32 to vector<2x32xf32>
    %cst_13 = arith.constant 0.000000e+00 : f32
    %13 = vector.broadcast %cst_13 : f32 to vector<2x32xf32>
    %cst_14 = arith.constant 0xFF800000 : f32
    %14 = vector.broadcast %cst_14 : f32 to vector<2x32xf32>
    %cst_15 = arith.constant 0xFF800000 : f32
    %15 = vector.broadcast %cst_15 : f32 to vector<2x32xf32>
    %16 = vector.extract_strided_slice %7 {offsets = [0, 0, 0], sizes = [2, 1, 128], strides = [1, 1, 1]} : vector<2x8x256xf32> to vector<2x1x128xf32>
    %17 = vector.shape_cast %16 : vector<2x1x128xf32> to vector<2x128xf32>
    %cst_16 = arith.constant dense<0.000000e+00> : vector<2x128xf32>
    %18 = tpu.matmul %10, %8, %cst_16 {dimension_numbers = #tpu.dot_dimension_numbers<[1], [0], [0], [1], [0, 0, 1, 1], [], []>} : vector<2x32xf32>, vector<32x128xf32>, vector<2x128xf32> -> vector<2x128xf32>
    %19 = arith.addf %17, %18 : vector<2x128xf32>
    %20 = vector.extract_strided_slice %7 {offsets = [0, 7, 128], sizes = [2, 1, 128], strides = [1, 1, 1]} : vector<2x8x256xf32> to vector<2x1x128xf32>
    %21 = vector.shape_cast %20 : vector<2x1x128xf32> to vector<2x128xf32>
    %cst_17 = arith.constant dense<0.000000e+00> : vector<2x128xf32>
    %22 = tpu.matmul %12, %9, %cst_17 {dimension_numbers = #tpu.dot_dimension_numbers<[1], [0], [0], [1], [0, 0, 1, 1], [], []>} : vector<2x32xf32>, vector<32x128xf32>, vector<2x128xf32> -> vector<2x128xf32>
    %23 = arith.addf %21, %22 : vector<2x128xf32>
    %24 = vector.extract_strided_slice %19 {offsets = [0, 0], sizes = [2, 96], strides = [1, 1]} : vector<2x128xf32> to vector<2x96xf32>
    %25 = arith.negf %24 : vector<2x96xf32>
    %26 = math.exp %25 : vector<2x96xf32>
    %cst_18 = arith.constant 1.000000e+00 : f32
    %27 = vector.broadcast %cst_18 : f32 to vector<2x96xf32>
    %28 = arith.addf %27, %26 : vector<2x96xf32>
    %29 = arith.divf %27, %28 : vector<2x96xf32>
    %30 = vector.extract_strided_slice %19 {offsets = [0, 96], sizes = [2, 32], strides = [1, 1]} : vector<2x128xf32> to vector<2x32xf32>
    %31 = math.tanh %30 : vector<2x32xf32>
    %32 = vector.extract_strided_slice %29 {offsets = [0, 0], sizes = [2, 32], strides = [1, 1]} : vector<2x96xf32> to vector<2x32xf32>
    %33 = vector.extract_strided_slice %29 {offsets = [0, 32], sizes = [2, 32], strides = [1, 1]} : vector<2x96xf32> to vector<2x32xf32>
    %34 = vector.extract_strided_slice %29 {offsets = [0, 64], sizes = [2, 32], strides = [1, 1]} : vector<2x96xf32> to vector<2x32xf32>
    %35 = arith.mulf %33, %11 : vector<2x32xf32>
    %36 = arith.mulf %32, %31 : vector<2x32xf32>
    %37 = arith.addf %35, %36 : vector<2x32xf32>
    %38 = math.tanh %37 : vector<2x32xf32>
    %39 = arith.mulf %34, %38 : vector<2x32xf32>
    %40 = vector.extract_strided_slice %23 {offsets = [0, 0], sizes = [2, 96], strides = [1, 1]} : vector<2x128xf32> to vector<2x96xf32>
    %41 = arith.negf %40 : vector<2x96xf32>
    %42 = math.exp %41 : vector<2x96xf32>
    %cst_19 = arith.constant 1.000000e+00 : f32
    %43 = vector.broadcast %cst_19 : f32 to vector<2x96xf32>
    %44 = arith.addf %43, %42 : vector<2x96xf32>
    %45 = arith.divf %43, %44 : vector<2x96xf32>
    %46 = vector.extract_strided_slice %23 {offsets = [0, 96], sizes = [2, 32], strides = [1, 1]} : vector<2x128xf32> to vector<2x32xf32>
    %47 = math.tanh %46 : vector<2x32xf32>
    %48 = vector.extract_strided_slice %45 {offsets = [0, 0], sizes = [2, 32], strides = [1, 1]} : vector<2x96xf32> to vector<2x32xf32>
    %49 = vector.extract_strided_slice %45 {offsets = [0, 32], sizes = [2, 32], strides = [1, 1]} : vector<2x96xf32> to vector<2x32xf32>
    %50 = vector.extract_strided_slice %45 {offsets = [0, 64], sizes = [2, 32], strides = [1, 1]} : vector<2x96xf32> to vector<2x32xf32>
    %51 = arith.mulf %49, %13 : vector<2x32xf32>
    %52 = arith.mulf %48, %47 : vector<2x32xf32>
    %53 = arith.addf %51, %52 : vector<2x32xf32>
    %54 = math.tanh %53 : vector<2x32xf32>
    %55 = arith.mulf %50, %54 : vector<2x32xf32>
    %56 = math.tanh %39 : vector<2x32xf32>
    %57 = arith.maximumf %14, %56 : vector<2x32xf32>
    %58 = math.tanh %55 : vector<2x32xf32>
    %59 = arith.maximumf %15, %58 : vector<2x32xf32>
    %60 = vector.extract_strided_slice %7 {offsets = [0, 1, 0], sizes = [2, 1, 128], strides = [1, 1, 1]} : vector<2x8x256xf32> to vector<2x1x128xf32>
    %61 = vector.shape_cast %60 : vector<2x1x128xf32> to vector<2x128xf32>
    %cst_20 = arith.constant dense<0.000000e+00> : vector<2x128xf32>
    %62 = tpu.matmul %39, %8, %cst_20 {dimension_numbers = #tpu.dot_dimension_numbers<[1], [0], [0], [1], [0, 0, 1, 1], [], []>} : vector<2x32xf32>, vector<32x128xf32>, vector<2x128xf32> -> vector<2x128xf32>
    %63 = arith.addf %61, %62 : vector<2x128xf32>
    %64 = vector.extract_strided_slice %7 {offsets = [0, 6, 128], sizes = [2, 1, 128], strides = [1, 1, 1]} : vector<2x8x256xf32> to vector<2x1x128xf32>
    %65 = vector.shape_cast %64 : vector<2x1x128xf32> to vector<2x128xf32>
    %cst_21 = arith.constant dense<0.000000e+00> : vector<2x128xf32>
    %66 = tpu.matmul %55, %9, %cst_21 {dimension_numbers = #tpu.dot_dimension_numbers<[1], [0], [0], [1], [0, 0, 1, 1], [], []>} : vector<2x32xf32>, vector<32x128xf32>, vector<2x128xf32> -> vector<2x128xf32>
    %67 = arith.addf %65, %66 : vector<2x128xf32>
    %68 = vector.extract_strided_slice %63 {offsets = [0, 0], sizes = [2, 96], strides = [1, 1]} : vector<2x128xf32> to vector<2x96xf32>
    %69 = arith.negf %68 : vector<2x96xf32>
    %70 = math.exp %69 : vector<2x96xf32>
    %cst_22 = arith.constant 1.000000e+00 : f32
    %71 = vector.broadcast %cst_22 : f32 to vector<2x96xf32>
    %72 = arith.addf %71, %70 : vector<2x96xf32>
    %73 = arith.divf %71, %72 : vector<2x96xf32>
    %74 = vector.extract_strided_slice %63 {offsets = [0, 96], sizes = [2, 32], strides = [1, 1]} : vector<2x128xf32> to vector<2x32xf32>
    %75 = math.tanh %74 : vector<2x32xf32>
    %76 = vector.extract_strided_slice %73 {offsets = [0, 0], sizes = [2, 32], strides = [1, 1]} : vector<2x96xf32> to vector<2x32xf32>
    %77 = vector.extract_strided_slice %73 {offsets = [0, 32], sizes = [2, 32], strides = [1, 1]} : vector<2x96xf32> to vector<2x32xf32>
    %78 = vector.extract_strided_slice %73 {offsets = [0, 64], sizes = [2, 32], strides = [1, 1]} : vector<2x96xf32> to vector<2x32xf32>
    %79 = arith.mulf %77, %37 : vector<2x32xf32>
    %80 = arith.mulf %76, %75 : vector<2x32xf32>
    %81 = arith.addf %79, %80 : vector<2x32xf32>
    %82 = math.tanh %81 : vector<2x32xf32>
    %83 = arith.mulf %78, %82 : vector<2x32xf32>
    %84 = vector.extract_strided_slice %67 {offsets = [0, 0], sizes = [2, 96], strides = [1, 1]} : vector<2x128xf32> to vector<2x96xf32>
    %85 = arith.negf %84 : vector<2x96xf32>
    %86 = math.exp %85 : vector<2x96xf32>
    %cst_23 = arith.constant 1.000000e+00 : f32
    %87 = vector.broadcast %cst_23 : f32 to vector<2x96xf32>
    %88 = arith.addf %87, %86 : vector<2x96xf32>
    %89 = arith.divf %87, %88 : vector<2x96xf32>
    %90 = vector.extract_strided_slice %67 {offsets = [0, 96], sizes = [2, 32], strides = [1, 1]} : vector<2x128xf32> to vector<2x32xf32>
    %91 = math.tanh %90 : vector<2x32xf32>
    %92 = vector.extract_strided_slice %89 {offsets = [0, 0], sizes = [2, 32], strides = [1, 1]} : vector<2x96xf32> to vector<2x32xf32>
    %93 = vector.extract_strided_slice %89 {offsets = [0, 32], sizes = [2, 32], strides = [1, 1]} : vector<2x96xf32> to vector<2x32xf32>
    %94 = vector.extract_strided_slice %89 {offsets = [0, 64], sizes = [2, 32], strides = [1, 1]} : vector<2x96xf32> to vector<2x32xf32>
    %95 = arith.mulf %93, %53 : vector<2x32xf32>
    %96 = arith.mulf %92, %91 : vector<2x32xf32>
    %97 = arith.addf %95, %96 : vector<2x32xf32>
    %98 = math.tanh %97 : vector<2x32xf32>
    %99 = arith.mulf %94, %98 : vector<2x32xf32>
    %100 = math.tanh %83 : vector<2x32xf32>
    %101 = arith.maximumf %57, %100 : vector<2x32xf32>
    %102 = math.tanh %99 : vector<2x32xf32>
    %103 = arith.maximumf %59, %102 : vector<2x32xf32>
    %104 = vector.extract_strided_slice %7 {offsets = [0, 2, 0], sizes = [2, 1, 128], strides = [1, 1, 1]} : vector<2x8x256xf32> to vector<2x1x128xf32>
    %105 = vector.shape_cast %104 : vector<2x1x128xf32> to vector<2x128xf32>
    %cst_24 = arith.constant dense<0.000000e+00> : vector<2x128xf32>
    %106 = tpu.matmul %83, %8, %cst_24 {dimension_numbers = #tpu.dot_dimension_numbers<[1], [0], [0], [1], [0, 0, 1, 1], [], []>} : vector<2x32xf32>, vector<32x128xf32>, vector<2x128xf32> -> vector<2x128xf32>
    %107 = arith.addf %105, %106 : vector<2x128xf32>
    %108 = vector.extract_strided_slice %7 {offsets = [0, 5, 128], sizes = [2, 1, 128], strides = [1, 1, 1]} : vector<2x8x256xf32> to vector<2x1x128xf32>
    %109 = vector.shape_cast %108 : vector<2x1x128xf32> to vector<2x128xf32>
    %cst_25 = arith.constant dense<0.000000e+00> : vector<2x128xf32>
    %110 = tpu.matmul %99, %9, %cst_25 {dimension_numbers = #tpu.dot_dimension_numbers<[1], [0], [0], [1], [0, 0, 1, 1], [], []>} : vector<2x32xf32>, vector<32x128xf32>, vector<2x128xf32> -> vector<2x128xf32>
    %111 = arith.addf %109, %110 : vector<2x128xf32>
    %112 = vector.extract_strided_slice %107 {offsets = [0, 0], sizes = [2, 96], strides = [1, 1]} : vector<2x128xf32> to vector<2x96xf32>
    %113 = arith.negf %112 : vector<2x96xf32>
    %114 = math.exp %113 : vector<2x96xf32>
    %cst_26 = arith.constant 1.000000e+00 : f32
    %115 = vector.broadcast %cst_26 : f32 to vector<2x96xf32>
    %116 = arith.addf %115, %114 : vector<2x96xf32>
    %117 = arith.divf %115, %116 : vector<2x96xf32>
    %118 = vector.extract_strided_slice %107 {offsets = [0, 96], sizes = [2, 32], strides = [1, 1]} : vector<2x128xf32> to vector<2x32xf32>
    %119 = math.tanh %118 : vector<2x32xf32>
    %120 = vector.extract_strided_slice %117 {offsets = [0, 0], sizes = [2, 32], strides = [1, 1]} : vector<2x96xf32> to vector<2x32xf32>
    %121 = vector.extract_strided_slice %117 {offsets = [0, 32], sizes = [2, 32], strides = [1, 1]} : vector<2x96xf32> to vector<2x32xf32>
    %122 = vector.extract_strided_slice %117 {offsets = [0, 64], sizes = [2, 32], strides = [1, 1]} : vector<2x96xf32> to vector<2x32xf32>
    %123 = arith.mulf %121, %81 : vector<2x32xf32>
    %124 = arith.mulf %120, %119 : vector<2x32xf32>
    %125 = arith.addf %123, %124 : vector<2x32xf32>
    %126 = math.tanh %125 : vector<2x32xf32>
    %127 = arith.mulf %122, %126 : vector<2x32xf32>
    %128 = vector.extract_strided_slice %111 {offsets = [0, 0], sizes = [2, 96], strides = [1, 1]} : vector<2x128xf32> to vector<2x96xf32>
    %129 = arith.negf %128 : vector<2x96xf32>
    %130 = math.exp %129 : vector<2x96xf32>
    %cst_27 = arith.constant 1.000000e+00 : f32
    %131 = vector.broadcast %cst_27 : f32 to vector<2x96xf32>
    %132 = arith.addf %131, %130 : vector<2x96xf32>
    %133 = arith.divf %131, %132 : vector<2x96xf32>
    %134 = vector.extract_strided_slice %111 {offsets = [0, 96], sizes = [2, 32], strides = [1, 1]} : vector<2x128xf32> to vector<2x32xf32>
    %135 = math.tanh %134 : vector<2x32xf32>
    %136 = vector.extract_strided_slice %133 {offsets = [0, 0], sizes = [2, 32], strides = [1, 1]} : vector<2x96xf32> to vector<2x32xf32>
    %137 = vector.extract_strided_slice %133 {offsets = [0, 32], sizes = [2, 32], strides = [1, 1]} : vector<2x96xf32> to vector<2x32xf32>
    %138 = vector.extract_strided_slice %133 {offsets = [0, 64], sizes = [2, 32], strides = [1, 1]} : vector<2x96xf32> to vector<2x32xf32>
    %139 = arith.mulf %137, %97 : vector<2x32xf32>
    %140 = arith.mulf %136, %135 : vector<2x32xf32>
    %141 = arith.addf %139, %140 : vector<2x32xf32>
    %142 = math.tanh %141 : vector<2x32xf32>
    %143 = arith.mulf %138, %142 : vector<2x32xf32>
    %144 = math.tanh %127 : vector<2x32xf32>
    %145 = arith.maximumf %101, %144 : vector<2x32xf32>
    %146 = math.tanh %143 : vector<2x32xf32>
    %147 = arith.maximumf %103, %146 : vector<2x32xf32>
    %148 = vector.extract_strided_slice %7 {offsets = [0, 3, 0], sizes = [2, 1, 128], strides = [1, 1, 1]} : vector<2x8x256xf32> to vector<2x1x128xf32>
    %149 = vector.shape_cast %148 : vector<2x1x128xf32> to vector<2x128xf32>
    %cst_28 = arith.constant dense<0.000000e+00> : vector<2x128xf32>
    %150 = tpu.matmul %127, %8, %cst_28 {dimension_numbers = #tpu.dot_dimension_numbers<[1], [0], [0], [1], [0, 0, 1, 1], [], []>} : vector<2x32xf32>, vector<32x128xf32>, vector<2x128xf32> -> vector<2x128xf32>
    %151 = arith.addf %149, %150 : vector<2x128xf32>
    %152 = vector.extract_strided_slice %7 {offsets = [0, 4, 128], sizes = [2, 1, 128], strides = [1, 1, 1]} : vector<2x8x256xf32> to vector<2x1x128xf32>
    %153 = vector.shape_cast %152 : vector<2x1x128xf32> to vector<2x128xf32>
    %cst_29 = arith.constant dense<0.000000e+00> : vector<2x128xf32>
    %154 = tpu.matmul %143, %9, %cst_29 {dimension_numbers = #tpu.dot_dimension_numbers<[1], [0], [0], [1], [0, 0, 1, 1], [], []>} : vector<2x32xf32>, vector<32x128xf32>, vector<2x128xf32> -> vector<2x128xf32>
    %155 = arith.addf %153, %154 : vector<2x128xf32>
    %156 = vector.extract_strided_slice %151 {offsets = [0, 0], sizes = [2, 96], strides = [1, 1]} : vector<2x128xf32> to vector<2x96xf32>
    %157 = arith.negf %156 : vector<2x96xf32>
    %158 = math.exp %157 : vector<2x96xf32>
    %cst_30 = arith.constant 1.000000e+00 : f32
    %159 = vector.broadcast %cst_30 : f32 to vector<2x96xf32>
    %160 = arith.addf %159, %158 : vector<2x96xf32>
    %161 = arith.divf %159, %160 : vector<2x96xf32>
    %162 = vector.extract_strided_slice %151 {offsets = [0, 96], sizes = [2, 32], strides = [1, 1]} : vector<2x128xf32> to vector<2x32xf32>
    %163 = math.tanh %162 : vector<2x32xf32>
    %164 = vector.extract_strided_slice %161 {offsets = [0, 0], sizes = [2, 32], strides = [1, 1]} : vector<2x96xf32> to vector<2x32xf32>
    %165 = vector.extract_strided_slice %161 {offsets = [0, 32], sizes = [2, 32], strides = [1, 1]} : vector<2x96xf32> to vector<2x32xf32>
    %166 = vector.extract_strided_slice %161 {offsets = [0, 64], sizes = [2, 32], strides = [1, 1]} : vector<2x96xf32> to vector<2x32xf32>
    %167 = arith.mulf %165, %125 : vector<2x32xf32>
    %168 = arith.mulf %164, %163 : vector<2x32xf32>
    %169 = arith.addf %167, %168 : vector<2x32xf32>
    %170 = math.tanh %169 : vector<2x32xf32>
    %171 = arith.mulf %166, %170 : vector<2x32xf32>
    %172 = vector.extract_strided_slice %155 {offsets = [0, 0], sizes = [2, 96], strides = [1, 1]} : vector<2x128xf32> to vector<2x96xf32>
    %173 = arith.negf %172 : vector<2x96xf32>
    %174 = math.exp %173 : vector<2x96xf32>
    %cst_31 = arith.constant 1.000000e+00 : f32
    %175 = vector.broadcast %cst_31 : f32 to vector<2x96xf32>
    %176 = arith.addf %175, %174 : vector<2x96xf32>
    %177 = arith.divf %175, %176 : vector<2x96xf32>
    %178 = vector.extract_strided_slice %155 {offsets = [0, 96], sizes = [2, 32], strides = [1, 1]} : vector<2x128xf32> to vector<2x32xf32>
    %179 = math.tanh %178 : vector<2x32xf32>
    %180 = vector.extract_strided_slice %177 {offsets = [0, 0], sizes = [2, 32], strides = [1, 1]} : vector<2x96xf32> to vector<2x32xf32>
    %181 = vector.extract_strided_slice %177 {offsets = [0, 32], sizes = [2, 32], strides = [1, 1]} : vector<2x96xf32> to vector<2x32xf32>
    %182 = vector.extract_strided_slice %177 {offsets = [0, 64], sizes = [2, 32], strides = [1, 1]} : vector<2x96xf32> to vector<2x32xf32>
    %183 = arith.mulf %181, %141 : vector<2x32xf32>
    %184 = arith.mulf %180, %179 : vector<2x32xf32>
    %185 = arith.addf %183, %184 : vector<2x32xf32>
    %186 = math.tanh %185 : vector<2x32xf32>
    %187 = arith.mulf %182, %186 : vector<2x32xf32>
    %188 = math.tanh %171 : vector<2x32xf32>
    %189 = arith.maximumf %145, %188 : vector<2x32xf32>
    %190 = math.tanh %187 : vector<2x32xf32>
    %191 = arith.maximumf %147, %190 : vector<2x32xf32>
    %192 = vector.extract_strided_slice %7 {offsets = [0, 4, 0], sizes = [2, 1, 128], strides = [1, 1, 1]} : vector<2x8x256xf32> to vector<2x1x128xf32>
    %193 = vector.shape_cast %192 : vector<2x1x128xf32> to vector<2x128xf32>
    %cst_32 = arith.constant dense<0.000000e+00> : vector<2x128xf32>
    %194 = tpu.matmul %171, %8, %cst_32 {dimension_numbers = #tpu.dot_dimension_numbers<[1], [0], [0], [1], [0, 0, 1, 1], [], []>} : vector<2x32xf32>, vector<32x128xf32>, vector<2x128xf32> -> vector<2x128xf32>
    %195 = arith.addf %193, %194 : vector<2x128xf32>
    %196 = vector.extract_strided_slice %7 {offsets = [0, 3, 128], sizes = [2, 1, 128], strides = [1, 1, 1]} : vector<2x8x256xf32> to vector<2x1x128xf32>
    %197 = vector.shape_cast %196 : vector<2x1x128xf32> to vector<2x128xf32>
    %cst_33 = arith.constant dense<0.000000e+00> : vector<2x128xf32>
    %198 = tpu.matmul %187, %9, %cst_33 {dimension_numbers = #tpu.dot_dimension_numbers<[1], [0], [0], [1], [0, 0, 1, 1], [], []>} : vector<2x32xf32>, vector<32x128xf32>, vector<2x128xf32> -> vector<2x128xf32>
    %199 = arith.addf %197, %198 : vector<2x128xf32>
    %200 = vector.extract_strided_slice %195 {offsets = [0, 0], sizes = [2, 96], strides = [1, 1]} : vector<2x128xf32> to vector<2x96xf32>
    %201 = arith.negf %200 : vector<2x96xf32>
    %202 = math.exp %201 : vector<2x96xf32>
    %cst_34 = arith.constant 1.000000e+00 : f32
    %203 = vector.broadcast %cst_34 : f32 to vector<2x96xf32>
    %204 = arith.addf %203, %202 : vector<2x96xf32>
    %205 = arith.divf %203, %204 : vector<2x96xf32>
    %206 = vector.extract_strided_slice %195 {offsets = [0, 96], sizes = [2, 32], strides = [1, 1]} : vector<2x128xf32> to vector<2x32xf32>
    %207 = math.tanh %206 : vector<2x32xf32>
    %208 = vector.extract_strided_slice %205 {offsets = [0, 0], sizes = [2, 32], strides = [1, 1]} : vector<2x96xf32> to vector<2x32xf32>
    %209 = vector.extract_strided_slice %205 {offsets = [0, 32], sizes = [2, 32], strides = [1, 1]} : vector<2x96xf32> to vector<2x32xf32>
    %210 = vector.extract_strided_slice %205 {offsets = [0, 64], sizes = [2, 32], strides = [1, 1]} : vector<2x96xf32> to vector<2x32xf32>
    %211 = arith.mulf %209, %169 : vector<2x32xf32>
    %212 = arith.mulf %208, %207 : vector<2x32xf32>
    %213 = arith.addf %211, %212 : vector<2x32xf32>
    %214 = math.tanh %213 : vector<2x32xf32>
    %215 = arith.mulf %210, %214 : vector<2x32xf32>
    %216 = vector.extract_strided_slice %199 {offsets = [0, 0], sizes = [2, 96], strides = [1, 1]} : vector<2x128xf32> to vector<2x96xf32>
    %217 = arith.negf %216 : vector<2x96xf32>
    %218 = math.exp %217 : vector<2x96xf32>
    %cst_35 = arith.constant 1.000000e+00 : f32
    %219 = vector.broadcast %cst_35 : f32 to vector<2x96xf32>
    %220 = arith.addf %219, %218 : vector<2x96xf32>
    %221 = arith.divf %219, %220 : vector<2x96xf32>
    %222 = vector.extract_strided_slice %199 {offsets = [0, 96], sizes = [2, 32], strides = [1, 1]} : vector<2x128xf32> to vector<2x32xf32>
    %223 = math.tanh %222 : vector<2x32xf32>
    %224 = vector.extract_strided_slice %221 {offsets = [0, 0], sizes = [2, 32], strides = [1, 1]} : vector<2x96xf32> to vector<2x32xf32>
    %225 = vector.extract_strided_slice %221 {offsets = [0, 32], sizes = [2, 32], strides = [1, 1]} : vector<2x96xf32> to vector<2x32xf32>
    %226 = vector.extract_strided_slice %221 {offsets = [0, 64], sizes = [2, 32], strides = [1, 1]} : vector<2x96xf32> to vector<2x32xf32>
    %227 = arith.mulf %225, %185 : vector<2x32xf32>
    %228 = arith.mulf %224, %223 : vector<2x32xf32>
    %229 = arith.addf %227, %228 : vector<2x32xf32>
    %230 = math.tanh %229 : vector<2x32xf32>
    %231 = arith.mulf %226, %230 : vector<2x32xf32>
    %232 = math.tanh %215 : vector<2x32xf32>
    %233 = arith.maximumf %189, %232 : vector<2x32xf32>
    %234 = math.tanh %231 : vector<2x32xf32>
    %235 = arith.maximumf %191, %234 : vector<2x32xf32>
    %236 = vector.extract_strided_slice %7 {offsets = [0, 5, 0], sizes = [2, 1, 128], strides = [1, 1, 1]} : vector<2x8x256xf32> to vector<2x1x128xf32>
    %237 = vector.shape_cast %236 : vector<2x1x128xf32> to vector<2x128xf32>
    %cst_36 = arith.constant dense<0.000000e+00> : vector<2x128xf32>
    %238 = tpu.matmul %215, %8, %cst_36 {dimension_numbers = #tpu.dot_dimension_numbers<[1], [0], [0], [1], [0, 0, 1, 1], [], []>} : vector<2x32xf32>, vector<32x128xf32>, vector<2x128xf32> -> vector<2x128xf32>
    %239 = arith.addf %237, %238 : vector<2x128xf32>
    %240 = vector.extract_strided_slice %7 {offsets = [0, 2, 128], sizes = [2, 1, 128], strides = [1, 1, 1]} : vector<2x8x256xf32> to vector<2x1x128xf32>
    %241 = vector.shape_cast %240 : vector<2x1x128xf32> to vector<2x128xf32>
    %cst_37 = arith.constant dense<0.000000e+00> : vector<2x128xf32>
    %242 = tpu.matmul %231, %9, %cst_37 {dimension_numbers = #tpu.dot_dimension_numbers<[1], [0], [0], [1], [0, 0, 1, 1], [], []>} : vector<2x32xf32>, vector<32x128xf32>, vector<2x128xf32> -> vector<2x128xf32>
    %243 = arith.addf %241, %242 : vector<2x128xf32>
    %244 = vector.extract_strided_slice %239 {offsets = [0, 0], sizes = [2, 96], strides = [1, 1]} : vector<2x128xf32> to vector<2x96xf32>
    %245 = arith.negf %244 : vector<2x96xf32>
    %246 = math.exp %245 : vector<2x96xf32>
    %cst_38 = arith.constant 1.000000e+00 : f32
    %247 = vector.broadcast %cst_38 : f32 to vector<2x96xf32>
    %248 = arith.addf %247, %246 : vector<2x96xf32>
    %249 = arith.divf %247, %248 : vector<2x96xf32>
    %250 = vector.extract_strided_slice %239 {offsets = [0, 96], sizes = [2, 32], strides = [1, 1]} : vector<2x128xf32> to vector<2x32xf32>
    %251 = math.tanh %250 : vector<2x32xf32>
    %252 = vector.extract_strided_slice %249 {offsets = [0, 0], sizes = [2, 32], strides = [1, 1]} : vector<2x96xf32> to vector<2x32xf32>
    %253 = vector.extract_strided_slice %249 {offsets = [0, 32], sizes = [2, 32], strides = [1, 1]} : vector<2x96xf32> to vector<2x32xf32>
    %254 = vector.extract_strided_slice %249 {offsets = [0, 64], sizes = [2, 32], strides = [1, 1]} : vector<2x96xf32> to vector<2x32xf32>
    %255 = arith.mulf %253, %213 : vector<2x32xf32>
    %256 = arith.mulf %252, %251 : vector<2x32xf32>
    %257 = arith.addf %255, %256 : vector<2x32xf32>
    %258 = math.tanh %257 : vector<2x32xf32>
    %259 = arith.mulf %254, %258 : vector<2x32xf32>
    %260 = vector.extract_strided_slice %243 {offsets = [0, 0], sizes = [2, 96], strides = [1, 1]} : vector<2x128xf32> to vector<2x96xf32>
    %261 = arith.negf %260 : vector<2x96xf32>
    %262 = math.exp %261 : vector<2x96xf32>
    %cst_39 = arith.constant 1.000000e+00 : f32
    %263 = vector.broadcast %cst_39 : f32 to vector<2x96xf32>
    %264 = arith.addf %263, %262 : vector<2x96xf32>
    %265 = arith.divf %263, %264 : vector<2x96xf32>
    %266 = vector.extract_strided_slice %243 {offsets = [0, 96], sizes = [2, 32], strides = [1, 1]} : vector<2x128xf32> to vector<2x32xf32>
    %267 = math.tanh %266 : vector<2x32xf32>
    %268 = vector.extract_strided_slice %265 {offsets = [0, 0], sizes = [2, 32], strides = [1, 1]} : vector<2x96xf32> to vector<2x32xf32>
    %269 = vector.extract_strided_slice %265 {offsets = [0, 32], sizes = [2, 32], strides = [1, 1]} : vector<2x96xf32> to vector<2x32xf32>
    %270 = vector.extract_strided_slice %265 {offsets = [0, 64], sizes = [2, 32], strides = [1, 1]} : vector<2x96xf32> to vector<2x32xf32>
    %271 = arith.mulf %269, %229 : vector<2x32xf32>
    %272 = arith.mulf %268, %267 : vector<2x32xf32>
    %273 = arith.addf %271, %272 : vector<2x32xf32>
    %274 = math.tanh %273 : vector<2x32xf32>
    %275 = arith.mulf %270, %274 : vector<2x32xf32>
    %276 = math.tanh %259 : vector<2x32xf32>
    %277 = arith.maximumf %233, %276 : vector<2x32xf32>
    %278 = math.tanh %275 : vector<2x32xf32>
    %279 = arith.maximumf %235, %278 : vector<2x32xf32>
    %280 = vector.extract_strided_slice %7 {offsets = [0, 6, 0], sizes = [2, 1, 128], strides = [1, 1, 1]} : vector<2x8x256xf32> to vector<2x1x128xf32>
    %281 = vector.shape_cast %280 : vector<2x1x128xf32> to vector<2x128xf32>
    %cst_40 = arith.constant dense<0.000000e+00> : vector<2x128xf32>
    %282 = tpu.matmul %259, %8, %cst_40 {dimension_numbers = #tpu.dot_dimension_numbers<[1], [0], [0], [1], [0, 0, 1, 1], [], []>} : vector<2x32xf32>, vector<32x128xf32>, vector<2x128xf32> -> vector<2x128xf32>
    %283 = arith.addf %281, %282 : vector<2x128xf32>
    %284 = vector.extract_strided_slice %7 {offsets = [0, 1, 128], sizes = [2, 1, 128], strides = [1, 1, 1]} : vector<2x8x256xf32> to vector<2x1x128xf32>
    %285 = vector.shape_cast %284 : vector<2x1x128xf32> to vector<2x128xf32>
    %cst_41 = arith.constant dense<0.000000e+00> : vector<2x128xf32>
    %286 = tpu.matmul %275, %9, %cst_41 {dimension_numbers = #tpu.dot_dimension_numbers<[1], [0], [0], [1], [0, 0, 1, 1], [], []>} : vector<2x32xf32>, vector<32x128xf32>, vector<2x128xf32> -> vector<2x128xf32>
    %287 = arith.addf %285, %286 : vector<2x128xf32>
    %288 = vector.extract_strided_slice %283 {offsets = [0, 0], sizes = [2, 96], strides = [1, 1]} : vector<2x128xf32> to vector<2x96xf32>
    %289 = arith.negf %288 : vector<2x96xf32>
    %290 = math.exp %289 : vector<2x96xf32>
    %cst_42 = arith.constant 1.000000e+00 : f32
    %291 = vector.broadcast %cst_42 : f32 to vector<2x96xf32>
    %292 = arith.addf %291, %290 : vector<2x96xf32>
    %293 = arith.divf %291, %292 : vector<2x96xf32>
    %294 = vector.extract_strided_slice %283 {offsets = [0, 96], sizes = [2, 32], strides = [1, 1]} : vector<2x128xf32> to vector<2x32xf32>
    %295 = math.tanh %294 : vector<2x32xf32>
    %296 = vector.extract_strided_slice %293 {offsets = [0, 0], sizes = [2, 32], strides = [1, 1]} : vector<2x96xf32> to vector<2x32xf32>
    %297 = vector.extract_strided_slice %293 {offsets = [0, 32], sizes = [2, 32], strides = [1, 1]} : vector<2x96xf32> to vector<2x32xf32>
    %298 = vector.extract_strided_slice %293 {offsets = [0, 64], sizes = [2, 32], strides = [1, 1]} : vector<2x96xf32> to vector<2x32xf32>
    %299 = arith.mulf %297, %257 : vector<2x32xf32>
    %300 = arith.mulf %296, %295 : vector<2x32xf32>
    %301 = arith.addf %299, %300 : vector<2x32xf32>
    %302 = math.tanh %301 : vector<2x32xf32>
    %303 = arith.mulf %298, %302 : vector<2x32xf32>
    %304 = vector.extract_strided_slice %287 {offsets = [0, 0], sizes = [2, 96], strides = [1, 1]} : vector<2x128xf32> to vector<2x96xf32>
    %305 = arith.negf %304 : vector<2x96xf32>
    %306 = math.exp %305 : vector<2x96xf32>
    %cst_43 = arith.constant 1.000000e+00 : f32
    %307 = vector.broadcast %cst_43 : f32 to vector<2x96xf32>
    %308 = arith.addf %307, %306 : vector<2x96xf32>
    %309 = arith.divf %307, %308 : vector<2x96xf32>
    %310 = vector.extract_strided_slice %287 {offsets = [0, 96], sizes = [2, 32], strides = [1, 1]} : vector<2x128xf32> to vector<2x32xf32>
    %311 = math.tanh %310 : vector<2x32xf32>
    %312 = vector.extract_strided_slice %309 {offsets = [0, 0], sizes = [2, 32], strides = [1, 1]} : vector<2x96xf32> to vector<2x32xf32>
    %313 = vector.extract_strided_slice %309 {offsets = [0, 32], sizes = [2, 32], strides = [1, 1]} : vector<2x96xf32> to vector<2x32xf32>
    %314 = vector.extract_strided_slice %309 {offsets = [0, 64], sizes = [2, 32], strides = [1, 1]} : vector<2x96xf32> to vector<2x32xf32>
    %315 = arith.mulf %313, %273 : vector<2x32xf32>
    %316 = arith.mulf %312, %311 : vector<2x32xf32>
    %317 = arith.addf %315, %316 : vector<2x32xf32>
    %318 = math.tanh %317 : vector<2x32xf32>
    %319 = arith.mulf %314, %318 : vector<2x32xf32>
    %320 = math.tanh %303 : vector<2x32xf32>
    %321 = arith.maximumf %277, %320 : vector<2x32xf32>
    %322 = math.tanh %319 : vector<2x32xf32>
    %323 = arith.maximumf %279, %322 : vector<2x32xf32>
    %324 = vector.extract_strided_slice %7 {offsets = [0, 7, 0], sizes = [2, 1, 128], strides = [1, 1, 1]} : vector<2x8x256xf32> to vector<2x1x128xf32>
    %325 = vector.shape_cast %324 : vector<2x1x128xf32> to vector<2x128xf32>
    %cst_44 = arith.constant dense<0.000000e+00> : vector<2x128xf32>
    %326 = tpu.matmul %303, %8, %cst_44 {dimension_numbers = #tpu.dot_dimension_numbers<[1], [0], [0], [1], [0, 0, 1, 1], [], []>} : vector<2x32xf32>, vector<32x128xf32>, vector<2x128xf32> -> vector<2x128xf32>
    %327 = arith.addf %325, %326 : vector<2x128xf32>
    %328 = vector.extract_strided_slice %7 {offsets = [0, 0, 128], sizes = [2, 1, 128], strides = [1, 1, 1]} : vector<2x8x256xf32> to vector<2x1x128xf32>
    %329 = vector.shape_cast %328 : vector<2x1x128xf32> to vector<2x128xf32>
    %cst_45 = arith.constant dense<0.000000e+00> : vector<2x128xf32>
    %330 = tpu.matmul %319, %9, %cst_45 {dimension_numbers = #tpu.dot_dimension_numbers<[1], [0], [0], [1], [0, 0, 1, 1], [], []>} : vector<2x32xf32>, vector<32x128xf32>, vector<2x128xf32> -> vector<2x128xf32>
    %331 = arith.addf %329, %330 : vector<2x128xf32>
    %332 = vector.extract_strided_slice %327 {offsets = [0, 0], sizes = [2, 96], strides = [1, 1]} : vector<2x128xf32> to vector<2x96xf32>
    %333 = arith.negf %332 : vector<2x96xf32>
    %334 = math.exp %333 : vector<2x96xf32>
    %cst_46 = arith.constant 1.000000e+00 : f32
    %335 = vector.broadcast %cst_46 : f32 to vector<2x96xf32>
    %336 = arith.addf %335, %334 : vector<2x96xf32>
    %337 = arith.divf %335, %336 : vector<2x96xf32>
    %338 = vector.extract_strided_slice %327 {offsets = [0, 96], sizes = [2, 32], strides = [1, 1]} : vector<2x128xf32> to vector<2x32xf32>
    %339 = math.tanh %338 : vector<2x32xf32>
    %340 = vector.extract_strided_slice %337 {offsets = [0, 0], sizes = [2, 32], strides = [1, 1]} : vector<2x96xf32> to vector<2x32xf32>
    %341 = vector.extract_strided_slice %337 {offsets = [0, 32], sizes = [2, 32], strides = [1, 1]} : vector<2x96xf32> to vector<2x32xf32>
    %342 = vector.extract_strided_slice %337 {offsets = [0, 64], sizes = [2, 32], strides = [1, 1]} : vector<2x96xf32> to vector<2x32xf32>
    %343 = arith.mulf %341, %301 : vector<2x32xf32>
    %344 = arith.mulf %340, %339 : vector<2x32xf32>
    %345 = arith.addf %343, %344 : vector<2x32xf32>
    %346 = math.tanh %345 : vector<2x32xf32>
    %347 = arith.mulf %342, %346 : vector<2x32xf32>
    %348 = vector.extract_strided_slice %331 {offsets = [0, 0], sizes = [2, 96], strides = [1, 1]} : vector<2x128xf32> to vector<2x96xf32>
    %349 = arith.negf %348 : vector<2x96xf32>
    %350 = math.exp %349 : vector<2x96xf32>
    %cst_47 = arith.constant 1.000000e+00 : f32
    %351 = vector.broadcast %cst_47 : f32 to vector<2x96xf32>
    %352 = arith.addf %351, %350 : vector<2x96xf32>
    %353 = arith.divf %351, %352 : vector<2x96xf32>
    %354 = vector.extract_strided_slice %331 {offsets = [0, 96], sizes = [2, 32], strides = [1, 1]} : vector<2x128xf32> to vector<2x32xf32>
    %355 = math.tanh %354 : vector<2x32xf32>
    %356 = vector.extract_strided_slice %353 {offsets = [0, 0], sizes = [2, 32], strides = [1, 1]} : vector<2x96xf32> to vector<2x32xf32>
    %357 = vector.extract_strided_slice %353 {offsets = [0, 32], sizes = [2, 32], strides = [1, 1]} : vector<2x96xf32> to vector<2x32xf32>
    %358 = vector.extract_strided_slice %353 {offsets = [0, 64], sizes = [2, 32], strides = [1, 1]} : vector<2x96xf32> to vector<2x32xf32>
    %359 = arith.mulf %357, %317 : vector<2x32xf32>
    %360 = arith.mulf %356, %355 : vector<2x32xf32>
    %361 = arith.addf %359, %360 : vector<2x32xf32>
    %362 = math.tanh %361 : vector<2x32xf32>
    %363 = arith.mulf %358, %362 : vector<2x32xf32>
    %364 = math.tanh %347 : vector<2x32xf32>
    %365 = arith.maximumf %321, %364 : vector<2x32xf32>
    %366 = math.tanh %363 : vector<2x32xf32>
    %367 = arith.maximumf %323, %366 : vector<2x32xf32>
    %368 = math.tanh %0 : vector<2x8x16xf32>
    %cst_48 = arith.constant dense<0xFF800000> : vector<2x16xf32>
    %369 = vector.multi_reduction <maximumf>, %368, %cst_48 [1] : vector<2x8x16xf32> to vector<2x16xf32>
    %c0_49 = arith.constant 0 : index
    %c0_50 = arith.constant 0 : index
    %370 = vector.load %arg5[%c0_49, %c0_50] : memref<32x4xf32, #tpu.memory_space<vmem>>, vector<32x4xf32>
    %cst_51 = arith.constant dense<0.000000e+00> : vector<2x4xf32>
    %371 = tpu.matmul %365, %370, %cst_51 {dimension_numbers = #tpu.dot_dimension_numbers<[1], [0], [0], [1], [0, 0, 1, 1], [], []>} : vector<2x32xf32>, vector<32x4xf32>, vector<2x4xf32> -> vector<2x4xf32>
    %c0_52 = arith.constant 0 : index
    %c0_53 = arith.constant 0 : index
    %372 = vector.load %arg6[%c0_52, %c0_53] : memref<32x4xf32, #tpu.memory_space<vmem>>, vector<32x4xf32>
    %cst_54 = arith.constant dense<0.000000e+00> : vector<2x4xf32>
    %373 = tpu.matmul %367, %372, %cst_54 {dimension_numbers = #tpu.dot_dimension_numbers<[1], [0], [0], [1], [0, 0, 1, 1], [], []>} : vector<2x32xf32>, vector<32x4xf32>, vector<2x4xf32> -> vector<2x4xf32>
    %374 = arith.addf %371, %373 : vector<2x4xf32>
    %c0_55 = arith.constant 0 : index
    %c0_56 = arith.constant 0 : index
    %375 = vector.load %arg7[%c0_55, %c0_56] : memref<16x4xf32, #tpu.memory_space<vmem>>, vector<16x4xf32>
    %cst_57 = arith.constant dense<0.000000e+00> : vector<2x4xf32>
    %376 = tpu.matmul %369, %375, %cst_57 {dimension_numbers = #tpu.dot_dimension_numbers<[1], [0], [0], [1], [0, 0, 1, 1], [], []>} : vector<2x16xf32>, vector<16x4xf32>, vector<2x4xf32> -> vector<2x4xf32>
    %377 = arith.addf %374, %376 : vector<2x4xf32>
    %c0_58 = arith.constant 0 : index
    %c0_59 = arith.constant 0 : index
    %378 = vector.load %arg8[%c0_58, %c0_59] : memref<1x4xf32, #tpu.memory_space<vmem>>, vector<1x4xf32>
    %379 = vector.broadcast %378 : vector<1x4xf32> to vector<2x4xf32>
    %380 = arith.addf %377, %379 : vector<2x4xf32>
    %c0_60 = arith.constant 0 : index
    %c0_61 = arith.constant 0 : index
    %381 = vector.load %arg9[%c0_60, %c0_61] : memref<2x4xf32, #tpu.memory_space<vmem>>, vector<2x4xf32>
    tpu.vector_store %arg9[%c0_60, %c0_61], %380 {strides = array<i32>} : memref<2x4xf32, #tpu.memory_space<vmem>>, vector<2x4xf32>,
    return
  }
}

</mosaic_0001>

<llo_original>
// kernel: tpu_custom_call.1
$region0: #{tpu_custom_call.1}
  #allocation0 [shape = 'u32[]', space=smem, size = 0x4, offset = 0x4, fixed_abs, tag = 'smem constant byte address 0x4 - core index']
  #allocation1 [shape = 'u32[144,128]{1,0:T(1,128)}', space=vmem, size = 0x12000, scoped, tag = 'internal scratch']
  %s0 = inlined_call_operand.hbm [shape: f32[2,8,16], index: 0, kind: input, shape index: {}]
  %s1 = inlined_call_operand.hbm [shape: f32[16,256], index: 1, kind: input, shape index: {}]
  %s2 = inlined_call_operand.hbm [shape: f32[1,256], index: 2, kind: input, shape index: {}]
  %s3 = inlined_call_operand.hbm [shape: f32[32,128], index: 3, kind: input, shape index: {}]
  %s4 = inlined_call_operand.hbm [shape: f32[32,128], index: 4, kind: input, shape index: {}]
  %s5 = inlined_call_operand.hbm [shape: f32[32,4], index: 5, kind: input, shape index: {}]
  %s6 = inlined_call_operand.hbm [shape: f32[32,4], index: 6, kind: input, shape index: {}]
  %s7 = inlined_call_operand.hbm [shape: f32[16,4], index: 7, kind: input, shape index: {}]
  %s8 = inlined_call_operand.hbm [shape: f32[1,4], index: 8, kind: input, shape index: {}]
  %s9 = inlined_call_operand.hbm [shape: f32[2,4], index: 9, kind: output, shape index: {}]
  %s10 = sld [smem:[#allocation0]]
  $region82: #{tpu_custom_call.1} parent=0
    _
  %s12 = ssub.s32 1, %s10
  %s13 = scalar_select 0, %s12, %s10
  $region1: #{tpu_custom_call.1} parent=0
    #allocation2 [shape = 'u8[8192]{0}', space=vmem, size = 0x2000, scoped, tag = 'input window, operand 0, single buffered']
    #allocation3 [shape = 's32[1]{0}', space=sflag, size = 0x4, scoped, tag = 'scoped memory for tpu_custom_call.1']
    #allocation4 [shape = 's32[1]{0}', space=sflag, size = 0x4, scoped, tag = 'scoped memory for tpu_custom_call.1']
    #allocation5 [shape = 'u8[16384]{0}', space=vmem, size = 0x4000, scoped, tag = 'input window, operand 1, single buffered']
    #allocation6 [shape = 's32[1]{0}', space=sflag, size = 0x4, scoped, tag = 'scoped memory for tpu_custom_call.1']
    #allocation7 [shape = 'u8[1024]{0}', space=vmem, size = 0x400, scoped, tag = 'input window, operand 2, single buffered']
    #allocation8 [shape = 'u8[16384]{0}', space=vmem, size = 0x4000, scoped, tag = 'input window, operand 3, single buffered']
    #allocation9 [shape = 's32[1]{0}', space=sflag, size = 0x4, scoped, tag = 'scoped memory for tpu_custom_call.1']
    #allocation10 [shape = 'u8[16384]{0}', space=vmem, size = 0x4000, scoped, tag = 'input window, operand 4, single buffered']
    #allocation11 [shape = 'u8[16384]{0}', space=vmem, size = 0x4000, scoped, tag = 'input window, operand 5, single buffered']
    #allocation12 [shape = 's32[1]{0}', space=sflag, size = 0x4, scoped, tag = 'scoped memory for tpu_custom_call.1']
    #allocation13 [shape = 'u8[16384]{0}', space=vmem, size = 0x4000, scoped, tag = 'input window, operand 6, single buffered']
    #allocation14 [shape = 'u8[8192]{0}', space=vmem, size = 0x2000, scoped, tag = 'input window, operand 7, single buffered']
    #allocation15 [shape = 's32[1]{0}', space=sflag, size = 0x4, scoped, tag = 'scoped memory for tpu_custom_call.1']
    #allocation16 [shape = 'u8[512]{0}', space=vmem, size = 0x400, scoped, tag = 'input window, operand 8, single buffered']
    #allocation17 [shape = 'u8[1024]{0}', space=vmem, size = 0x400, scoped, tag = 'output window, operand 0, single buffered']
    %14 = vsyncpa [#allocation3], 0
    %15 = vsyncpa [#allocation6], 0
    %16 = vsyncpa [#allocation9], 0
    %17 = vsyncpa [#allocation12], 0
    %18 = vsyncpa [#allocation15], 0
    %19 = vsyncpa [#allocation4], 0
    // Predicated region
    $region2: #{tpu_custom_call.1} parent=1 // pred_check
      _
    $region3: #{tpu_custom_call.1} parent=1 // pred_check_branch
      %21 = sbr.rel (0) target = $region5
    $region4: #{tpu_custom_call.1} parent=1 // pred_region
      %s23 = ssub.s32 256, 256
      %24 = vsyncadd [#allocation3], %s23
      %s25 = sshll.u32 [#allocation2], 4
      %s26 = int_to_ptr.vmem [resolvable:$true] %s25
      %31 = dma.hbm_to_vmem [thread:$0]  %s0, 256, %s26, [#allocation3], 128, 128, 8
    $region5: #{tpu_custom_call.1} parent=1 // pred_fallthru
      _
    // Predicated region
    $region6: #{tpu_custom_call.1} parent=1 // pred_check
      _
    $region7: #{tpu_custom_call.1} parent=1 // pred_check_branch
      %33 = sbr.rel (0) target = $region9
    $region8: #{tpu_custom_call.1} parent=1 // pred_region
      %s35 = ssub.s32 512, 512
      %36 = vsyncadd [#allocation6], %s35
      %s37 = sshll.u32 [#allocation5], 4
      %s38 = int_to_ptr.vmem [resolvable:$true] %s37
      %43 = dma.hbm_to_vmem [thread:$0]  %s1, 512, %s38, [#allocation6], 256, 256, 16
    $region9: #{tpu_custom_call.1} parent=1 // pred_fallthru
      _
    // Predicated region
    $region10: #{tpu_custom_call.1} parent=1 // pred_check
      _
    $region11: #{tpu_custom_call.1} parent=1 // pred_check_branch
      %45 = sbr.rel (0) target = $region13
    $region12: #{tpu_custom_call.1} parent=1 // pred_region
      %s47 = ssub.s32 32, 32
      %48 = vsyncadd [#allocation6], %s47
      %s50 = sshll.u32 [#allocation7], 4
      %s51 = int_to_ptr.vmem [resolvable:$true] %s50
      %53 = dma.hbm_to_vmem [thread:$0]  %s2, 32, %s51, [#allocation6]
    $region13: #{tpu_custom_call.1} parent=1 // pred_fallthru
      _
    // Predicated region
    $region14: #{tpu_custom_call.1} parent=1 // pred_check
      _
    $region15: #{tpu_custom_call.1} parent=1 // pred_check_branch
      %55 = sbr.rel (0) target = $region17
    $region16: #{tpu_custom_call.1} parent=1 // pred_region
      %s57 = ssub.s32 512, 512
      %58 = vsyncadd [#allocation9], %s57
      %s59 = sshll.u32 [#allocation8], 4
      %s60 = int_to_ptr.vmem [resolvable:$true] %s59
      %65 = dma.hbm_to_vmem [thread:$0]  %s3, 512, %s60, [#allocation9], 128, 128, 8
    $region17: #{tpu_custom_call.1} parent=1 // pred_fallthru
      _
    // Predicated region
    $region18: #{tpu_custom_call.1} parent=1 // pred_check
      _
    $region19: #{tpu_custom_call.1} parent=1 // pred_check_branch
      %67 = sbr.rel (0) target = $region21
    $region20: #{tpu_custom_call.1} parent=1 // pred_region
      %s69 = ssub.s32 512, 512
      %70 = vsyncadd [#allocation9], %s69
      %s71 = sshll.u32 [#allocation10], 4
      %s72 = int_to_ptr.vmem [resolvable:$true] %s71
      %77 = dma.hbm_to_vmem [thread:$0]  %s4, 512, %s72, [#allocation9], 128, 128, 8
    $region21: #{tpu_custom_call.1} parent=1 // pred_fallthru
      _
    // Predicated region
    $region22: #{tpu_custom_call.1} parent=1 // pred_check
      _
    $region23: #{tpu_custom_call.1} parent=1 // pred_check_branch
      %79 = sbr.rel (0) target = $region25
    $region24: #{tpu_custom_call.1} parent=1 // pred_region
      %s81 = ssub.s32 512, 512
      %82 = vsyncadd [#allocation12], %s81
      %s83 = sshll.u32 [#allocation11], 4
      %s84 = int_to_ptr.vmem [resolvable:$true] %s83
      %89 = dma.hbm_to_vmem [thread:$0]  %s5, 512, %s84, [#allocation12], 128, 128, 8
    $region25: #{tpu_custom_call.1} parent=1 // pred_fallthru
      _
    // Predicated region
    $region26: #{tpu_custom_call.1} parent=1 // pred_check
      _
    $region27: #{tpu_custom_call.1} parent=1 // pred_check_branch
      %91 = sbr.rel (0) target = $region29
    $region28: #{tpu_custom_call.1} parent=1 // pred_region
      %s93 = ssub.s32 512, 512
      %94 = vsyncadd [#allocation12], %s93
      %s95 = sshll.u32 [#allocation13], 4
      %s96 = int_to_ptr.vmem [resolvable:$true] %s95
      %101 = dma.hbm_to_vmem [thread:$0]  %s6, 512, %s96, [#allocation12], 128, 128, 8
    $region29: #{tpu_custom_call.1} parent=1 // pred_fallthru
      _
    // Predicated region
    $region30: #{tpu_custom_call.1} parent=1 // pred_check
      _
    $region31: #{tpu_custom_call.1} parent=1 // pred_check_branch
      %103 = sbr.rel (0) target = $region33
    $region32: #{tpu_custom_call.1} parent=1 // pred_region
      %s105 = ssub.s32 256, 256
      %106 = vsyncadd [#allocation15], %s105
      %s107 = sshll.u32 [#allocation14], 4
      %s108 = int_to_ptr.vmem [resolvable:$true] %s107
      %113 = dma.hbm_to_vmem [thread:$0]  %s7, 256, %s108, [#allocation15], 128, 128, 8
    $region33: #{tpu_custom_call.1} parent=1 // pred_fallthru
      _
    // Predicated region
    $region34: #{tpu_custom_call.1} parent=1 // pred_check
      _
    $region35: #{tpu_custom_call.1} parent=1 // pred_check_branch
      %115 = sbr.rel (0) target = $region37
    $region36: #{tpu_custom_call.1} parent=1 // pred_region
      %s117 = ssub.s32 16, 16
      %118 = vsyncadd [#allocation15], %s117
      %s120 = sshll.u32 [#allocation16], 4
      %s121 = int_to_ptr.vmem [resolvable:$true] %s120
      %123 = dma.hbm_to_vmem [thread:$0]  %s8, 16, %s121, [#allocation15]
    $region37: #{tpu_custom_call.1} parent=1 // pred_fallthru
      _
    // Predicated region
    $region38: #{tpu_custom_call.1} parent=1 // pred_check
      _
    $region39: #{tpu_custom_call.1} parent=1 // pred_check_branch
      %125 = sbr.rel (0) target = $region41
    $region40: #{tpu_custom_call.1} parent=1 // pred_region
      %126 = dma.done [#allocation3], 256
    $region41: #{tpu_custom_call.1} parent=1 // pred_fallthru
      _
    // Predicated region
    $region42: #{tpu_custom_call.1} parent=1 // pred_check
      _
    $region43: #{tpu_custom_call.1} parent=1 // pred_check_branch
      %128 = sbr.rel (0) target = $region45
    $region44: #{tpu_custom_call.1} parent=1 // pred_region
      %129 = dma.done [#allocation6], 512
    $region45: #{tpu_custom_call.1} parent=1 // pred_fallthru
      _
    // Predicated region
    $region46: #{tpu_custom_call.1} parent=1 // pred_check
      _
    $region47: #{tpu_custom_call.1} parent=1 // pred_check_branch
      %131 = sbr.rel (0) target = $region49
    $region48: #{tpu_custom_call.1} parent=1 // pred_region
      %132 = dma.done [#allocation6], 32
    $region49: #{tpu_custom_call.1} parent=1 // pred_fallthru
      _
    // Predicated region
    $region50: #{tpu_custom_call.1} parent=1 // pred_check
      _
    $region51: #{tpu_custom_call.1} parent=1 // pred_check_branch
      %134 = sbr.rel (0) target = $region53
    $region52: #{tpu_custom_call.1} parent=1 // pred_region
      %135 = dma.done [#allocation9], 512
    $region53: #{tpu_custom_call.1} parent=1 // pred_fallthru
      _
    // Predicated region
    $region54: #{tpu_custom_call.1} parent=1 // pred_check
      _
    $region55: #{tpu_custom_call.1} parent=1 // pred_check_branch
      %137 = sbr.rel (0) target = $region57
    $region56: #{tpu_custom_call.1} parent=1 // pred_region
      %138 = dma.done [#allocation9], 512
    $region57: #{tpu_custom_call.1} parent=1 // pred_fallthru
      _
    // Predicated region
    $region58: #{tpu_custom_call.1} parent=1 // pred_check
      _
    $region59: #{tpu_custom_call.1} parent=1 // pred_check_branch
      %140 = sbr.rel (0) target = $region61
    $region60: #{tpu_custom_call.1} parent=1 // pred_region
      %141 = dma.done [#allocation12], 512
    $region61: #{tpu_custom_call.1} parent=1 // pred_fallthru
      _
    // Predicated region
    $region62: #{tpu_custom_call.1} parent=1 // pred_check
      _
    $region63: #{tpu_custom_call.1} parent=1 // pred_check_branch
      %143 = sbr.rel (0) target = $region65
    $region64: #{tpu_custom_call.1} parent=1 // pred_region
      %144 = dma.done [#allocation12], 512
    $region65: #{tpu_custom_call.1} parent=1 // pred_fallthru
      _
    // Predicated region
    $region66: #{tpu_custom_call.1} parent=1 // pred_check
      _
    $region67: #{tpu_custom_call.1} parent=1 // pred_check_branch
      %146 = sbr.rel (0) target = $region69
    $region68: #{tpu_custom_call.1} parent=1 // pred_region
      %147 = dma.done [#allocation15], 256
    $region69: #{tpu_custom_call.1} parent=1 // pred_fallthru
      _
    // Predicated region
    $region70: #{tpu_custom_call.1} parent=1 // pred_check
      _
    $region71: #{tpu_custom_call.1} parent=1 // pred_check_branch
      %149 = sbr.rel (0) target = $region73
    $region72: #{tpu_custom_call.1} parent=1 // pred_region
      %150 = dma.done [#allocation15], 16
    $region73: #{tpu_custom_call.1} parent=1 // pred_fallthru
      _
    %v151 = vld [vmem:[#allocation2] sm:$0xff]
    %v152 = vld [vmem:[#allocation2 + $0x8] sm:$0xff]
    %v153 = vld [vmem:[#allocation5] sm:$0xff]
    %v154 = vld [vmem:[#allocation5 + $0x8] sm:$0xff]
    %v155 = vld [vmem:[#allocation5 + $0x10] sm:$0xff]
    %v156 = vld [vmem:[#allocation5 + $0x18] sm:$0xff]
    %v157 = vld [vmem:[#allocation7] sm:$0x3]
    %v159 = vlaneseq
    %v160 = vshrl.u32 %v159, 7
    %v161 = vsub.s32 0, %v160
    %v162 = vrot.slane %v157, %v161
    %v163 = vlaneseq
    %v164 = vshrl.u32 %v163, 7
    %v165 = vsub.s32 1, %v164
    %v166 = vrot.slane %v157, %v165
    %vm169 = vcmask 130048
    %v171 = vsel %vm169, %v151, 0
    %v174 = vsel %vm169, %v152, 0
    %176 = vmatprep.subr.mxu0 %v154
    %177 = vmatpush1.msra.mxu0 %v153
    %178 = vmatprep.subr.mxu0 %v156
    %179 = vmatpush1.msra.mxu0 %v155
    %180 = vmatprep.subr.mxu0 0.0
    %181 = vmatpush1.msra.mxu0 0.0
    %182 = vmatprep.subr.mxu0 0.0
    %183 = vmatpush1.msra.mxu0 0.0
    %184 = vmatprep.subr.mxu0 0.0
    %185 = vmatpush1.msra.mxu0 0.0
    %186 = vmatprep.subr.mxu0 0.0
    %187 = vmatpush1.msra.mxu0 0.0
    %188 = vmatprep.subr.mxu0 0.0
    %189 = vmatpush1.msra.mxu0 0.0
    %190 = vmatprep.subr.mxu0 0.0
    %191 = vmatpush1.msra.mxu0 0.0
    %192 = vmatprep.subr.mxu0 0.0
    %193 = vmatpush1.msra.mxu0 0.0
    %194 = vmatprep.subr.mxu0 0.0
    %195 = vmatpush1.msra.mxu0 0.0
    %196 = vmatprep.subr.mxu0 0.0
    %197 = vmatpush1.msra.mxu0 0.0
    %198 = vmatprep.subr.mxu0 0.0
    %199 = vmatpush1.msra.mxu0 0.0
    %200 = vmatprep.subr.mxu0 0.0
    %201 = vmatpush1.msra.mxu0 0.0
    %202 = vmatprep.subr.mxu0 0.0
    %203 = vmatpush1.msra.mxu0 0.0
    %204 = vmatprep.subr.mxu0 0.0
    %205 = vmatpush1.msra.mxu0 0.0
    %206 = vmatprep.subr.mxu0 0.0
    %207 = vmatpush1.msra.mxu0 0.0
    %208 = vmatprep.subr.mxu0 0.0
    %209 = vmatpush1.msra.mxu0 0.0
    %210 = vmatprep.subr.mxu0 0.0
    %211 = vmatpush1.msra.mxu0 0.0
    %212 = vmatprep.subr.mxu0 0.0
    %213 = vmatpush1.msra.mxu0 0.0
    %214 = vmatprep.subr.mxu0 0.0
    %215 = vmatpush1.msra.mxu0 0.0
    %216 = vmatprep.subr.mxu0 0.0
    %217 = vmatpush1.msra.mxu0 0.0
    %218 = vmatprep.subr.mxu0 0.0
    %219 = vmatpush1.msra.mxu0 0.0
    %220 = vmatprep.subr.mxu0 0.0
    %221 = vmatpush1.msra.mxu0 0.0
    %222 = vmatprep.subr.mxu0 0.0
    %223 = vmatpush1.msra.mxu0 0.0
    %224 = vmatprep.subr.mxu0 0.0
    %225 = vmatpush1.msra.mxu0 0.0
    %226 = vmatprep.subr.mxu0 0.0
    %227 = vmatpush1.msra.mxu0 0.0
    %228 = vmatprep.subr.mxu0 0.0
    %229 = vmatpush1.msra.mxu0 0.0
    %230 = vmatprep.subr.mxu0 0.0
    %231 = vmatpush1.msra.mxu0 0.0
    %232 = vmatprep.subr.mxu0 0.0
    %233 = vmatpush1.msra.mxu0 0.0
    %234 = vmatprep.subr.mxu0 0.0
    %235 = vmatpush1.msra.mxu0 0.0
    %236 = vmatprep.subr.mxu0 0.0
    %237 = vmatpush1.msra.mxu0 0.0
    %238 = vmatprep.subr.mxu0 0.0
    %239 = vmatpush1.msra.mxu0 0.0
    %240 = vmatprep.mubr.f32.mxu0 0.0
    %241 = vmatmul.mubr.f32.gmra.mrb[0].mxu0 %v171
    %v242 = vpop.f32.mrb[0].mxu0
    %v243 = vadd.f32 %v162, %v242
    %v244 = vpop.f32.mrb[0].mxu0
    %v245 = vadd.f32 %v166, %v244
    %246 = vmatprep.mubr.f32.mxu0 0.0
    %247 = vmatmul.mubr.f32.gmra.mrb[0].mxu0 %v174
    %v248 = vpop.f32.mrb[0].mxu0
    %v249 = vadd.f32 %v162, %v248
    %v250 = vpop.f32.mrb[0].mxu0
    %v251 = vadd.f32 %v166, %v250
    %252 = vdwg.mxu0
    %v253 = vld [vmem:[#allocation8] sm:$0xff]
    %v254 = vld [vmem:[#allocation8 + $0x8] sm:$0xff]
    %v255 = vld [vmem:[#allocation8 + $0x10] sm:$0xff]
    %v256 = vld [vmem:[#allocation8 + $0x18] sm:$0xff]
    %v257 = vld [vmem:[#allocation10] sm:$0xff]
    %v258 = vld [vmem:[#allocation10 + $0x8] sm:$0xff]
    %v259 = vld [vmem:[#allocation10 + $0x10] sm:$0xff]
    %v260 = vld [vmem:[#allocation10 + $0x18] sm:$0xff]
    %vm261 = vcmask 261120
    %v263 = vsel %vm261, 0.0, 0
    %265 = vmatprep.subr.mxu0 0.0
    %266 = vmatpush1.msra.mxu0 %v253
    %267 = vmatprep.subr.mxu0 0.0
    %268 = vmatpush1.msra.mxu0 %v254
    %269 = vmatprep.subr.mxu0 0.0
    %270 = vmatpush1.msra.mxu0 %v255
    %271 = vmatprep.subr.mxu0 0.0
    %272 = vmatpush1.msra.mxu0 %v256
    %273 = vmatprep.subr.mxu0 0.0
    %274 = vmatpush1.msra.mxu0 0.0
    %275 = vmatprep.subr.mxu0 0.0
    %276 = vmatpush1.msra.mxu0 0.0
    %277 = vmatprep.subr.mxu0 0.0
    %278 = vmatpush1.msra.mxu0 0.0
    %279 = vmatprep.subr.mxu0 0.0
    %280 = vmatpush1.msra.mxu0 0.0
    %281 = vmatprep.subr.mxu0 0.0
    %282 = vmatpush1.msra.mxu0 0.0
    %283 = vmatprep.subr.mxu0 0.0
    %284 = vmatpush1.msra.mxu0 0.0
    %285 = vmatprep.subr.mxu0 0.0
    %286 = vmatpush1.msra.mxu0 0.0
    %287 = vmatprep.subr.mxu0 0.0
    %288 = vmatpush1.msra.mxu0 0.0
    %289 = vmatprep.subr.mxu0 0.0
    %290 = vmatpush1.msra.mxu0 0.0
    %291 = vmatprep.subr.mxu0 0.0
    %292 = vmatpush1.msra.mxu0 0.0
    %293 = vmatprep.subr.mxu0 0.0
    %294 = vmatpush1.msra.mxu0 0.0
    %295 = vmatprep.subr.mxu0 0.0
    %296 = vmatpush1.msra.mxu0 0.0
    %297 = vmatprep.subr.mxu0 0.0
    %298 = vmatpush1.msra.mxu0 0.0
    %299 = vmatprep.subr.mxu0 0.0
    %300 = vmatpush1.msra.mxu0 0.0
    %301 = vmatprep.subr.mxu0 0.0
    %302 = vmatpush1.msra.mxu0 0.0
    %303 = vmatprep.subr.mxu0 0.0
    %304 = vmatpush1.msra.mxu0 0.0
    %305 = vmatprep.subr.mxu0 0.0
    %306 = vmatpush1.msra.mxu0 0.0
    %307 = vmatprep.subr.mxu0 0.0
    %308 = vmatpush1.msra.mxu0 0.0
    %309 = vmatprep.subr.mxu0 0.0
    %310 = vmatpush1.msra.mxu0 0.0
    %311 = vmatprep.subr.mxu0 0.0
    %312 = vmatpush1.msra.mxu0 0.0
    %313 = vmatprep.subr.mxu0 0.0
    %314 = vmatpush1.msra.mxu0 0.0
    %315 = vmatprep.subr.mxu0 0.0
    %316 = vmatpush1.msra.mxu0 0.0
    %317 = vmatprep.subr.mxu0 0.0
    %318 = vmatpush1.msra.mxu0 0.0
    %319 = vmatprep.subr.mxu0 0.0
    %320 = vmatpush1.msra.mxu0 0.0
    %321 = vmatprep.subr.mxu0 0.0
    %322 = vmatpush1.msra.mxu0 0.0
    %323 = vmatprep.subr.mxu0 0.0
    %324 = vmatpush1.msra.mxu0 0.0
    %325 = vmatprep.subr.mxu0 0.0
    %326 = vmatpush1.msra.mxu0 0.0
    %327 = vmatprep.subr.mxu0 0.0
    %328 = vmatpush1.msra.mxu0 0.0
    %329 = vmatprep.mubr.f32.mxu0 0.0
    %330 = vmatmul.mubr.f32.gmra.mrb[0].mxu0 %v263
    %v331 = vpop.f32.mrb[0].mxu0
    %v332 = vadd.f32 0.0, %v331
    %v333 = vpop.f32.mrb[0].mxu0
    %334 = vdwg.mxu0
    %v336 = vrot.slane %v332, 1
    %v339 = vadd.f32 %v243, %v332
    %v340 = vadd.f32 %v249, %v336
    %341 = vmatprep.subr.mxu0 0.0
    %342 = vmatpush1.msra.mxu0 %v257
    %343 = vmatprep.subr.mxu0 0.0
    %344 = vmatpush1.msra.mxu0 %v258
    %345 = vmatprep.subr.mxu0 0.0
    %346 = vmatpush1.msra.mxu0 %v259
    %347 = vmatprep.subr.mxu0 0.0
    %348 = vmatpush1.msra.mxu0 %v260
    %349 = vmatprep.subr.mxu0 0.0
    %350 = vmatpush1.msra.mxu0 0.0
    %351 = vmatprep.subr.mxu0 0.0
    %352 = vmatpush1.msra.mxu0 0.0
    %353 = vmatprep.subr.mxu0 0.0
    %354 = vmatpush1.msra.mxu0 0.0
    %355 = vmatprep.subr.mxu0 0.0
    %356 = vmatpush1.msra.mxu0 0.0
    %357 = vmatprep.subr.mxu0 0.0
    %358 = vmatpush1.msra.mxu0 0.0
    %359 = vmatprep.subr.mxu0 0.0
    %360 = vmatpush1.msra.mxu0 0.0
    %361 = vmatprep.subr.mxu0 0.0
    %362 = vmatpush1.msra.mxu0 0.0
    %363 = vmatprep.subr.mxu0 0.0
    %364 = vmatpush1.msra.mxu0 0.0
    %365 = vmatprep.subr.mxu0 0.0
    %366 = vmatpush1.msra.mxu0 0.0
    %367 = vmatprep.subr.mxu0 0.0
    %368 = vmatpush1.msra.mxu0 0.0
    %369 = vmatprep.subr.mxu0 0.0
    %370 = vmatpush1.msra.mxu0 0.0
    %371 = vmatprep.subr.mxu0 0.0
    %372 = vmatpush1.msra.mxu0 0.0
    %373 = vmatprep.subr.mxu0 0.0
    %374 = vmatpush1.msra.mxu0 0.0
    %375 = vmatprep.subr.mxu0 0.0
    %376 = vmatpush1.msra.mxu0 0.0
    %377 = vmatprep.subr.mxu0 0.0
    %378 = vmatpush1.msra.mxu0 0.0
    %379 = vmatprep.subr.mxu0 0.0
    %380 = vmatpush1.msra.mxu0 0.0
    %381 = vmatprep.subr.mxu0 0.0
    %382 = vmatpush1.msra.mxu0 0.0
    %383 = vmatprep.subr.mxu0 0.0
    %384 = vmatpush1.msra.mxu0 0.0
    %385 = vmatprep.subr.mxu0 0.0
    %386 = vmatpush1.msra.mxu0 0.0
    %387 = vmatprep.subr.mxu0 0.0
    %388 = vmatpush1.msra.mxu0 0.0
    %389 = vmatprep.subr.mxu0 0.0
    %390 = vmatpush1.msra.mxu0 0.0
    %391 = vmatprep.subr.mxu0 0.0
    %392 = vmatpush1.msra.mxu0 0.0
    %393 = vmatprep.subr.mxu0 0.0
    %394 = vmatpush1.msra.mxu0 0.0
    %395 = vmatprep.subr.mxu0 0.0
    %396 = vmatpush1.msra.mxu0 0.0
    %397 = vmatprep.subr.mxu0 0.0
    %398 = vmatpush1.msra.mxu0 0.0
    %399 = vmatprep.subr.mxu0 0.0
    %400 = vmatpush1.msra.mxu0 0.0
    %401 = vmatprep.subr.mxu0 0.0
    %402 = vmatpush1.msra.mxu0 0.0
    %403 = vmatprep.subr.mxu0 0.0
    %404 = vmatpush1.msra.mxu0 0.0
    %405 = vmatprep.mubr.f32.mxu0 0.0
    %406 = vmatmul.mubr.f32.gmra.mrb[0].mxu0 %v263
    %v407 = vpop.f32.mrb[0].mxu0
    %v408 = vadd.f32 0.0, %v407
    %v409 = vpop.f32.mrb[0].mxu0
    %410 = vdwg.mxu0
    %v412 = vrot.slane %v408, 1
    %v413 = vrot.slane %v408, 2
    %v416 = vadd.f32 %v245, %v412
    %v417 = vadd.f32 %v251, %v413
    %v418 = vxor.u32 %v339, 2147483648
    %v419 = vxor.u32 %v340, 2147483648
    %v420 = vmul.f32 %v418, 1.442695
    %v421 = vpow.pop %v420
    %v422 = vmul.f32 %v419, 1.442695
    %v423 = vpow.pop %v422
    %v424 = vadd.f32 %v421, 1.0
    %v425 = vadd.f32 %v423, 1.0
    %v426 = vrcp.pop %v424
    %v427 = vmul.f32 1.0, %v426
    %v428 = vrcp.pop %v425
    %v429 = vmul.f32 1.0, %v428
    %v430 = vtanh.pop %v339
    %v431 = vtanh.pop %v340
    %v432 = vmul.f32 %v427, 0.0
    %v433 = vmul.f32 %v429, 0.0
    %436 = vrot.lane.b32.xlu0 %v430, 32
    %v437 = vpop.permute.xlu0 %436
    %438 = vrot.lane.b32.xlu0 %v431, 32
    %v439 = vpop.permute.xlu0 %438
    %v442 = vmul.f32 %v427, %v437
    %v443 = vmul.f32 %v429, %v439
    %446 = vrot.lane.b32.xlu0 %v442, 32
    %v447 = vpop.permute.xlu0 %446
    %448 = vrot.lane.b32.xlu0 %v443, 32
    %v449 = vpop.permute.xlu0 %448
    %v452 = vadd.f32 %v432, %v447
    %v453 = vadd.f32 %v433, %v449
    %v454 = vtanh.pop %v452
    %v455 = vtanh.pop %v453
    %458 = vrot.lane.b32.xlu0 %v454, 32
    %v459 = vpop.permute.xlu0 %458
    %460 = vrot.lane.b32.xlu0 %v455, 32
    %v461 = vpop.permute.xlu0 %460
    %v464 = vmul.f32 %v427, %v459
    %v465 = vmul.f32 %v429, %v461
    %v466 = vxor.u32 %v416, 2147483648
    %v467 = vxor.u32 %v417, 2147483648
    %v468 = vmul.f32 %v466, 1.442695
    %v469 = vpow.pop %v468
    %v470 = vmul.f32 %v467, 1.442695
    %v471 = vpow.pop %v470
    %v472 = vadd.f32 %v469, 1.0
    %v473 = vadd.f32 %v471, 1.0
    %v474 = vrcp.pop %v472
    %v475 = vmul.f32 1.0, %v474
    %v476 = vrcp.pop %v473
    %v477 = vmul.f32 1.0, %v476
    %v478 = vtanh.pop %v416
    %v479 = vtanh.pop %v417
    %v480 = vmul.f32 %v475, 0.0
    %v481 = vmul.f32 %v477, 0.0
    %484 = vrot.lane.b32.xlu0 %v478, 32
    %v485 = vpop.permute.xlu0 %484
    %486 = vrot.lane.b32.xlu0 %v479, 32
    %v487 = vpop.permute.xlu0 %486
    %v490 = vmul.f32 %v475, %v485
    %v491 = vmul.f32 %v477, %v487
    %494 = vrot.lane.b32.xlu0 %v490, 32
    %v495 = vpop.permute.xlu0 %494
    %496 = vrot.lane.b32.xlu0 %v491, 32
    %v497 = vpop.permute.xlu0 %496
    %v500 = vadd.f32 %v480, %v495
    %v501 = vadd.f32 %v481, %v497
    %v502 = vtanh.pop %v500
    %v503 = vtanh.pop %v501
    %506 = vrot.lane.b32.xlu0 %v502, 32
    %v507 = vpop.permute.xlu0 %506
    %508 = vrot.lane.b32.xlu0 %v503, 32
    %v509 = vpop.permute.xlu0 %508
    %v512 = vmul.f32 %v475, %v507
    %v513 = vmul.f32 %v477, %v509
    %v514 = vtanh.pop %v464
    %v515 = vtanh.pop %v465
    %v516 = vtanh.pop %v512
    %v517 = vtanh.pop %v513
    %v520 = vrot.slane %v465, 7
    %vm521 = vcmask 1041409
    %v522 = vsel %vm521, %v520, %v464
    %523 = vrot.lane.b32.xlu0 %v522, 64
    %v524 = vpop.permute.xlu0 %523
    %v525 = vsel %vm261, %v524, 0
    %527 = vmatprep.subr.mxu0 0.0
    %528 = vmatpush1.msra.mxu0 %v253
    %529 = vmatprep.subr.mxu0 0.0
    %530 = vmatpush1.msra.mxu0 %v254
    %531 = vmatprep.subr.mxu0 0.0
    %532 = vmatpush1.msra.mxu0 %v255
    %533 = vmatprep.subr.mxu0 0.0
    %534 = vmatpush1.msra.mxu0 %v256
    %535 = vmatprep.subr.mxu0 0.0
    %536 = vmatpush1.msra.mxu0 0.0
    %537 = vmatprep.subr.mxu0 0.0
    %538 = vmatpush1.msra.mxu0 0.0
    %539 = vmatprep.subr.mxu0 0.0
    %540 = vmatpush1.msra.mxu0 0.0
    %541 = vmatprep.subr.mxu0 0.0
    %542 = vmatpush1.msra.mxu0 0.0
    %543 = vmatprep.subr.mxu0 0.0
    %544 = vmatpush1.msra.mxu0 0.0
    %545 = vmatprep.subr.mxu0 0.0
    %546 = vmatpush1.msra.mxu0 0.0
    %547 = vmatprep.subr.mxu0 0.0
    %548 = vmatpush1.msra.mxu0 0.0
    %549 = vmatprep.subr.mxu0 0.0
    %550 = vmatpush1.msra.mxu0 0.0
    %551 = vmatprep.subr.mxu0 0.0
    %552 = vmatpush1.msra.mxu0 0.0
    %553 = vmatprep.subr.mxu0 0.0
    %554 = vmatpush1.msra.mxu0 0.0
    %555 = vmatprep.subr.mxu0 0.0
    %556 = vmatpush1.msra.mxu0 0.0
    %557 = vmatprep.subr.mxu0 0.0
    %558 = vmatpush1.msra.mxu0 0.0
    %559 = vmatprep.subr.mxu0 0.0
    %560 = vmatpush1.msra.mxu0 0.0
    %561 = vmatprep.subr.mxu0 0.0
    %562 = vmatpush1.msra.mxu0 0.0
    %563 = vmatprep.subr.mxu0 0.0
    %564 = vmatpush1.msra.mxu0 0.0
    %565 = vmatprep.subr.mxu0 0.0
    %566 = vmatpush1.msra.mxu0 0.0
    %567 = vmatprep.subr.mxu0 0.0
    %568 = vmatpush1.msra.mxu0 0.0
    %569 = vmatprep.subr.mxu0 0.0
    %570 = vmatpush1.msra.mxu0 0.0
    %571 = vmatprep.subr.mxu0 0.0
    %572 = vmatpush1.msra.mxu0 0.0
    %573 = vmatprep.subr.mxu0 0.0
    %574 = vmatpush1.msra.mxu0 0.0
    %575 = vmatprep.subr.mxu0 0.0
    %576 = vmatpush1.msra.mxu0 0.0
    %577 = vmatprep.subr.mxu0 0.0
    %578 = vmatpush1.msra.mxu0 0.0
    %579 = vmatprep.subr.mxu0 0.0
    %580 = vmatpush1.msra.mxu0 0.0
    %581 = vmatprep.subr.mxu0 0.0
    %582 = vmatpush1.msra.mxu0 0.0
    %583 = vmatprep.subr.mxu0 0.0
    %584 = vmatpush1.msra.mxu0 0.0
    %585 = vmatprep.subr.mxu0 0.0
    %586 = vmatpush1.msra.mxu0 0.0
    %587 = vmatprep.subr.mxu0 0.0
    %588 = vmatpush1.msra.mxu0 0.0
    %589 = vmatprep.subr.mxu0 0.0
    %590 = vmatpush1.msra.mxu0 0.0
    %591 = vmatprep.mubr.f32.mxu0 0.0
    %592 = vmatmul.mubr.f32.gmra.mrb[0].mxu0 %v525
    %v593 = vpop.f32.mrb[0].mxu0
    %v594 = vadd.f32 0.0, %v593
    %v595 = vpop.f32.mrb[0].mxu0
    %596 = vdwg.mxu0
    %v598 = vrot.slane %v594, 7
    %v601 = vadd.f32 %v243, %v598
    %v602 = vadd.f32 %v249, %v594
    %v605 = vrot.slane %v512, 7
    %v606 = vrot.slane %v513, 6
    %v607 = vsel %vm521, %v606, %v605
    %608 = vrot.lane.b32.xlu0 %v607, 64
    %v609 = vpop.permute.xlu0 %608
    %v610 = vsel %vm261, %v609, 0
    %612 = vmatprep.subr.mxu0 0.0
    %613 = vmatpush1.msra.mxu0 %v257
    %614 = vmatprep.subr.mxu0 0.0
    %615 = vmatpush1.msra.mxu0 %v258
    %616 = vmatprep.subr.mxu0 0.0
    %617 = vmatpush1.msra.mxu0 %v259
    %618 = vmatprep.subr.mxu0 0.0
    %619 = vmatpush1.msra.mxu0 %v260
    %620 = vmatprep.subr.mxu0 0.0
    %621 = vmatpush1.msra.mxu0 0.0
    %622 = vmatprep.subr.mxu0 0.0
    %623 = vmatpush1.msra.mxu0 0.0
    %624 = vmatprep.subr.mxu0 0.0
    %625 = vmatpush1.msra.mxu0 0.0
    %626 = vmatprep.subr.mxu0 0.0
    %627 = vmatpush1.msra.mxu0 0.0
    %628 = vmatprep.subr.mxu0 0.0
    %629 = vmatpush1.msra.mxu0 0.0
    %630 = vmatprep.subr.mxu0 0.0
    %631 = vmatpush1.msra.mxu0 0.0
    %632 = vmatprep.subr.mxu0 0.0
    %633 = vmatpush1.msra.mxu0 0.0
    %634 = vmatprep.subr.mxu0 0.0
    %635 = vmatpush1.msra.mxu0 0.0
    %636 = vmatprep.subr.mxu0 0.0
    %637 = vmatpush1.msra.mxu0 0.0
    %638 = vmatprep.subr.mxu0 0.0
    %639 = vmatpush1.msra.mxu0 0.0
    %640 = vmatprep.subr.mxu0 0.0
    %641 = vmatpush1.msra.mxu0 0.0
    %642 = vmatprep.subr.mxu0 0.0
    %643 = vmatpush1.msra.mxu0 0.0
    %644 = vmatprep.subr.mxu0 0.0
    %645 = vmatpush1.msra.mxu0 0.0
    %646 = vmatprep.subr.mxu0 0.0
    %647 = vmatpush1.msra.mxu0 0.0
    %648 = vmatprep.subr.mxu0 0.0
    %649 = vmatpush1.msra.mxu0 0.0
    %650 = vmatprep.subr.mxu0 0.0
    %651 = vmatpush1.msra.mxu0 0.0
    %652 = vmatprep.subr.mxu0 0.0
    %653 = vmatpush1.msra.mxu0 0.0
    %654 = vmatprep.subr.mxu0 0.0
    %655 = vmatpush1.msra.mxu0 0.0
    %656 = vmatprep.subr.mxu0 0.0
    %657 = vmatpush1.msra.mxu0 0.0
    %658 = vmatprep.subr.mxu0 0.0
    %659 = vmatpush1.msra.mxu0 0.0
    %660 = vmatprep.subr.mxu0 0.0
    %661 = vmatpush1.msra.mxu0 0.0
    %662 = vmatprep.subr.mxu0 0.0
    %663 = vmatpush1.msra.mxu0 0.0
    %664 = vmatprep.subr.mxu0 0.0
    %665 = vmatpush1.msra.mxu0 0.0
    %666 = vmatprep.subr.mxu0 0.0
    %667 = vmatpush1.msra.mxu0 0.0
    %668 = vmatprep.subr.mxu0 0.0
    %669 = vmatpush1.msra.mxu0 0.0
    %670 = vmatprep.subr.mxu0 0.0
    %671 = vmatpush1.msra.mxu0 0.0
    %672 = vmatprep.subr.mxu0 0.0
    %673 = vmatpush1.msra.mxu0 0.0
    %674 = vmatprep.subr.mxu0 0.0
    %675 = vmatpush1.msra.mxu0 0.0
    %676 = vmatprep.mubr.f32.mxu0 0.0
    %677 = vmatmul.mubr.f32.gmra.mrb[0].mxu0 %v610
    %v678 = vpop.f32.mrb[0].mxu0
    %v679 = vadd.f32 0.0, %v678
    %v680 = vpop.f32.mrb[0].mxu0
    %681 = vdwg.mxu0
    %v683 = vrot.slane %v679, 2
    %v684 = vrot.slane %v679, 3
    %v687 = vadd.f32 %v245, %v683
    %v688 = vadd.f32 %v251, %v684
    %v689 = vxor.u32 %v601, 2147483648
    %v690 = vxor.u32 %v602, 2147483648
    %v691 = vmul.f32 %v689, 1.442695
    %v692 = vpow.pop %v691
    %v693 = vmul.f32 %v690, 1.442695
    %v694 = vpow.pop %v693
    %v695 = vadd.f32 %v692, 1.0
    %v696 = vadd.f32 %v694, 1.0
    %v697 = vrcp.pop %v695
    %v698 = vmul.f32 1.0, %v697
    %v699 = vrcp.pop %v696
    %v700 = vmul.f32 1.0, %v699
    %v701 = vtanh.pop %v601
    %v702 = vtanh.pop %v602
    %v705 = vrot.slane %v452, 7
    %v706 = vrot.slane %v453, 7
    %v709 = vmul.f32 %v698, %v705
    %v710 = vmul.f32 %v700, %v706
    %713 = vrot.lane.b32.xlu0 %v701, 32
    %v714 = vpop.permute.xlu0 %713
    %715 = vrot.lane.b32.xlu0 %v702, 32
    %v716 = vpop.permute.xlu0 %715
    %v719 = vmul.f32 %v698, %v714
    %v720 = vmul.f32 %v700, %v716
    %723 = vrot.lane.b32.xlu0 %v719, 32
    %v724 = vpop.permute.xlu0 %723
    %725 = vrot.lane.b32.xlu0 %v720, 32
    %v726 = vpop.permute.xlu0 %725
    %v729 = vadd.f32 %v709, %v724
    %v730 = vadd.f32 %v710, %v726
    %v731 = vtanh.pop %v729
    %v732 = vtanh.pop %v730
    %735 = vrot.lane.b32.xlu0 %v731, 32
    %v736 = vpop.permute.xlu0 %735
    %737 = vrot.lane.b32.xlu0 %v732, 32
    %v738 = vpop.permute.xlu0 %737
    %v741 = vmul.f32 %v698, %v736
    %v742 = vmul.f32 %v700, %v738
    %v743 = vxor.u32 %v687, 2147483648
    %v744 = vxor.u32 %v688, 2147483648
    %v745 = vmul.f32 %v743, 1.442695
    %v746 = vpow.pop %v745
    %v747 = vmul.f32 %v744, 1.442695
    %v748 = vpow.pop %v747
    %v749 = vadd.f32 %v746, 1.0
    %v750 = vadd.f32 %v748, 1.0
    %v751 = vrcp.pop %v749
    %v752 = vmul.f32 1.0, %v751
    %v753 = vrcp.pop %v750
    %v754 = vmul.f32 1.0, %v753
    %v755 = vtanh.pop %v687
    %v756 = vtanh.pop %v688
    %v759 = vrot.slane %v500, 1
    %v760 = vrot.slane %v501, 1
    %v763 = vmul.f32 %v752, %v759
    %v764 = vmul.f32 %v754, %v760
    %767 = vrot.lane.b32.xlu0 %v755, 32
    %v768 = vpop.permute.xlu0 %767
    %769 = vrot.lane.b32.xlu0 %v756, 32
    %v770 = vpop.permute.xlu0 %769
    %v773 = vmul.f32 %v752, %v768
    %v774 = vmul.f32 %v754, %v770
    %777 = vrot.lane.b32.xlu0 %v773, 32
    %v778 = vpop.permute.xlu0 %777
    %779 = vrot.lane.b32.xlu0 %v774, 32
    %v780 = vpop.permute.xlu0 %779
    %v783 = vadd.f32 %v763, %v778
    %v784 = vadd.f32 %v764, %v780
    %v785 = vtanh.pop %v783
    %v786 = vtanh.pop %v784
    %789 = vrot.lane.b32.xlu0 %v785, 32
    %v790 = vpop.permute.xlu0 %789
    %791 = vrot.lane.b32.xlu0 %v786, 32
    %v792 = vpop.permute.xlu0 %791
    %v795 = vmul.f32 %v752, %v790
    %v796 = vmul.f32 %v754, %v792
    %v797 = vtanh.pop %v741
    %v798 = vtanh.pop %v742
    %v801 = vrot.slane %v797, 1
    %v802 = vrot.slane %v798, 1
    %v805 = vmax.f32 %v514, %v801
    %v806 = vmax.f32 %v515, %v802
    %v807 = vtanh.pop %v795
    %v808 = vtanh.pop %v796
    %v811 = vrot.slane %v807, 7
    %v812 = vrot.slane %v808, 7
    %v815 = vmax.f32 %v516, %v811
    %v816 = vmax.f32 %v517, %v812
    %v819 = vrot.slane %v741, 1
    %v820 = vsel %vm521, %v742, %v819
    %821 = vrot.lane.b32.xlu0 %v820, 64
    %v822 = vpop.permute.xlu0 %821
    %v823 = vsel %vm261, %v822, 0
    %825 = vmatprep.subr.mxu0 0.0
    %826 = vmatpush1.msra.mxu0 %v253
    %827 = vmatprep.subr.mxu0 0.0
    %828 = vmatpush1.msra.mxu0 %v254
    %829 = vmatprep.subr.mxu0 0.0
    %830 = vmatpush1.msra.mxu0 %v255
    %831 = vmatprep.subr.mxu0 0.0
    %832 = vmatpush1.msra.mxu0 %v256
    %833 = vmatprep.subr.mxu0 0.0
    %834 = vmatpush1.msra.mxu0 0.0
    %835 = vmatprep.subr.mxu0 0.0
    %836 = vmatpush1.msra.mxu0 0.0
    %837 = vmatprep.subr.mxu0 0.0
    %838 = vmatpush1.msra.mxu0 0.0
    %839 = vmatprep.subr.mxu0 0.0
    %840 = vmatpush1.msra.mxu0 0.0
    %841 = vmatprep.subr.mxu0 0.0
    %842 = vmatpush1.msra.mxu0 0.0
    %843 = vmatprep.subr.mxu0 0.0
    %844 = vmatpush1.msra.mxu0 0.0
    %845 = vmatprep.subr.mxu0 0.0
    %846 = vmatpush1.msra.mxu0 0.0
    %847 = vmatprep.subr.mxu0 0.0
    %848 = vmatpush1.msra.mxu0 0.0
    %849 = vmatprep.subr.mxu0 0.0
    %850 = vmatpush1.msra.mxu0 0.0
    %851 = vmatprep.subr.mxu0 0.0
    %852 = vmatpush1.msra.mxu0 0.0
    %853 = vmatprep.subr.mxu0 0.0
    %854 = vmatpush1.msra.mxu0 0.0
    %855 = vmatprep.subr.mxu0 0.0
    %856 = vmatpush1.msra.mxu0 0.0
    %857 = vmatprep.subr.mxu0 0.0
    %858 = vmatpush1.msra.mxu0 0.0
    %859 = vmatprep.subr.mxu0 0.0
    %860 = vmatpush1.msra.mxu0 0.0
    %861 = vmatprep.subr.mxu0 0.0
    %862 = vmatpush1.msra.mxu0 0.0
    %863 = vmatprep.subr.mxu0 0.0
    %864 = vmatpush1.msra.mxu0 0.0
    %865 = vmatprep.subr.mxu0 0.0
    %866 = vmatpush1.msra.mxu0 0.0
    %867 = vmatprep.subr.mxu0 0.0
    %868 = vmatpush1.msra.mxu0 0.0
    %869 = vmatprep.subr.mxu0 0.0
    %870 = vmatpush1.msra.mxu0 0.0
    %871 = vmatprep.subr.mxu0 0.0
    %872 = vmatpush1.msra.mxu0 0.0
    %873 = vmatprep.subr.mxu0 0.0
    %874 = vmatpush1.msra.mxu0 0.0
    %875 = vmatprep.subr.mxu0 0.0
    %876 = vmatpush1.msra.mxu0 0.0
    %877 = vmatprep.subr.mxu0 0.0
    %878 = vmatpush1.msra.mxu0 0.0
    %879 = vmatprep.subr.mxu0 0.0
    %880 = vmatpush1.msra.mxu0 0.0
    %881 = vmatprep.subr.mxu0 0.0
    %882 = vmatpush1.msra.mxu0 0.0
    %883 = vmatprep.subr.mxu0 0.0
    %884 = vmatpush1.msra.mxu0 0.0
    %885 = vmatprep.subr.mxu0 0.0
    %886 = vmatpush1.msra.mxu0 0.0
    %887 = vmatprep.subr.mxu0 0.0
    %888 = vmatpush1.msra.mxu0 0.0
    %889 = vmatprep.mubr.f32.mxu0 0.0
    %890 = vmatmul.mubr.f32.gmra.mrb[0].mxu0 %v823
    %v891 = vpop.f32.mrb[0].mxu0
    %v892 = vadd.f32 0.0, %v891
    %v893 = vpop.f32.mrb[0].mxu0
    %894 = vdwg.mxu0
    %v896 = vrot.slane %v892, 6
    %v897 = vrot.slane %v892, 7
    %v900 = vadd.f32 %v243, %v896
    %v901 = vadd.f32 %v249, %v897
    %v904 = vrot.slane %v795, 6
    %v905 = vrot.slane %v796, 5
    %v906 = vsel %vm521, %v905, %v904
    %907 = vrot.lane.b32.xlu0 %v906, 64
    %v908 = vpop.permute.xlu0 %907
    %v909 = vsel %vm261, %v908, 0
    %911 = vmatprep.subr.mxu0 0.0
    %912 = vmatpush1.msra.mxu0 %v257
    %913 = vmatprep.subr.mxu0 0.0
    %914 = vmatpush1.msra.mxu0 %v258
    %915 = vmatprep.subr.mxu0 0.0
    %916 = vmatpush1.msra.mxu0 %v259
    %917 = vmatprep.subr.mxu0 0.0
    %918 = vmatpush1.msra.mxu0 %v260
    %919 = vmatprep.subr.mxu0 0.0
    %920 = vmatpush1.msra.mxu0 0.0
    %921 = vmatprep.subr.mxu0 0.0
    %922 = vmatpush1.msra.mxu0 0.0
    %923 = vmatprep.subr.mxu0 0.0
    %924 = vmatpush1.msra.mxu0 0.0
    %925 = vmatprep.subr.mxu0 0.0
    %926 = vmatpush1.msra.mxu0 0.0
    %927 = vmatprep.subr.mxu0 0.0
    %928 = vmatpush1.msra.mxu0 0.0
    %929 = vmatprep.subr.mxu0 0.0
    %930 = vmatpush1.msra.mxu0 0.0
    %931 = vmatprep.subr.mxu0 0.0
    %932 = vmatpush1.msra.mxu0 0.0
    %933 = vmatprep.subr.mxu0 0.0
    %934 = vmatpush1.msra.mxu0 0.0
    %935 = vmatprep.subr.mxu0 0.0
    %936 = vmatpush1.msra.mxu0 0.0
    %937 = vmatprep.subr.mxu0 0.0
    %938 = vmatpush1.msra.mxu0 0.0
    %939 = vmatprep.subr.mxu0 0.0
    %940 = vmatpush1.msra.mxu0 0.0
    %941 = vmatprep.subr.mxu0 0.0
    %942 = vmatpush1.msra.mxu0 0.0
    %943 = vmatprep.subr.mxu0 0.0
    %944 = vmatpush1.msra.mxu0 0.0
    %945 = vmatprep.subr.mxu0 0.0
    %946 = vmatpush1.msra.mxu0 0.0
    %947 = vmatprep.subr.mxu0 0.0
    %948 = vmatpush1.msra.mxu0 0.0
    %949 = vmatprep.subr.mxu0 0.0
    %950 = vmatpush1.msra.mxu0 0.0
    %951 = vmatprep.subr.mxu0 0.0
    %952 = vmatpush1.msra.mxu0 0.0
    %953 = vmatprep.subr.mxu0 0.0
    %954 = vmatpush1.msra.mxu0 0.0
    %955 = vmatprep.subr.mxu0 0.0
    %956 = vmatpush1.msra.mxu0 0.0
    %957 = vmatprep.subr.mxu0 0.0
    %958 = vmatpush1.msra.mxu0 0.0
    %959 = vmatprep.subr.mxu0 0.0
    %960 = vmatpush1.msra.mxu0 0.0
    %961 = vmatprep.subr.mxu0 0.0
    %962 = vmatpush1.msra.mxu0 0.0
    %963 = vmatprep.subr.mxu0 0.0
    %964 = vmatpush1.msra.mxu0 0.0
    %965 = vmatprep.subr.mxu0 0.0
    %966 = vmatpush1.msra.mxu0 0.0
    %967 = vmatprep.subr.mxu0 0.0
    %968 = vmatpush1.msra.mxu0 0.0
    %969 = vmatprep.subr.mxu0 0.0
    %970 = vmatpush1.msra.mxu0 0.0
    %971 = vmatprep.subr.mxu0 0.0
    %972 = vmatpush1.msra.mxu0 0.0
    %973 = vmatprep.subr.mxu0 0.0
    %974 = vmatpush1.msra.mxu0 0.0
    %975 = vmatprep.mubr.f32.mxu0 0.0
    %976 = vmatmul.mubr.f32.gmra.mrb[0].mxu0 %v909
    %v977 = vpop.f32.mrb[0].mxu0
    %v978 = vadd.f32 0.0, %v977
    %v979 = vpop.f32.mrb[0].mxu0
    %980 = vdwg.mxu0
    %v982 = vrot.slane %v978, 3
    %v983 = vrot.slane %v978, 4
    %v986 = vadd.f32 %v245, %v982
    %v987 = vadd.f32 %v251, %v983
    %v988 = vxor.u32 %v900, 2147483648
    %v989 = vxor.u32 %v901, 2147483648
    %v990 = vmul.f32 %v988, 1.442695
    %v991 = vpow.pop %v990
    %v992 = vmul.f32 %v989, 1.442695
    %v993 = vpow.pop %v992
    %v994 = vadd.f32 %v991, 1.0
    %v995 = vadd.f32 %v993, 1.0
    %v996 = vrcp.pop %v994
    %v997 = vmul.f32 1.0, %v996
    %v998 = vrcp.pop %v995
    %v999 = vmul.f32 1.0, %v998
    %v1000 = vtanh.pop %v900
    %v1001 = vtanh.pop %v901
    %v1004 = vrot.slane %v729, 7
    %v1005 = vrot.slane %v730, 7
    %v1008 = vmul.f32 %v997, %v1004
    %v1009 = vmul.f32 %v999, %v1005
    %1012 = vrot.lane.b32.xlu0 %v1000, 32
    %v1013 = vpop.permute.xlu0 %1012
    %1014 = vrot.lane.b32.xlu0 %v1001, 32
    %v1015 = vpop.permute.xlu0 %1014
    %v1018 = vmul.f32 %v997, %v1013
    %v1019 = vmul.f32 %v999, %v1015
    %1022 = vrot.lane.b32.xlu0 %v1018, 32
    %v1023 = vpop.permute.xlu0 %1022
    %1024 = vrot.lane.b32.xlu0 %v1019, 32
    %v1025 = vpop.permute.xlu0 %1024
    %v1028 = vadd.f32 %v1008, %v1023
    %v1029 = vadd.f32 %v1009, %v1025
    %v1030 = vtanh.pop %v1028
    %v1031 = vtanh.pop %v1029
    %1034 = vrot.lane.b32.xlu0 %v1030, 32
    %v1035 = vpop.permute.xlu0 %1034
    %1036 = vrot.lane.b32.xlu0 %v1031, 32
    %v1037 = vpop.permute.xlu0 %1036
    %v1040 = vmul.f32 %v997, %v1035
    %v1041 = vmul.f32 %v999, %v1037
    %v1042 = vxor.u32 %v986, 2147483648
    %v1043 = vxor.u32 %v987, 2147483648
    %v1044 = vmul.f32 %v1042, 1.442695
    %v1045 = vpow.pop %v1044
    %v1046 = vmul.f32 %v1043, 1.442695
    %v1047 = vpow.pop %v1046
    %v1048 = vadd.f32 %v1045, 1.0
    %v1049 = vadd.f32 %v1047, 1.0
    %v1050 = vrcp.pop %v1048
    %v1051 = vmul.f32 1.0, %v1050
    %v1052 = vrcp.pop %v1049
    %v1053 = vmul.f32 1.0, %v1052
    %v1054 = vtanh.pop %v986
    %v1055 = vtanh.pop %v987
    %v1058 = vrot.slane %v783, 1
    %v1059 = vrot.slane %v784, 1
    %v1062 = vmul.f32 %v1051, %v1058
    %v1063 = vmul.f32 %v1053, %v1059
    %1066 = vrot.lane.b32.xlu0 %v1054, 32
    %v1067 = vpop.permute.xlu0 %1066
    %1068 = vrot.lane.b32.xlu0 %v1055, 32
    %v1069 = vpop.permute.xlu0 %1068
    %v1072 = vmul.f32 %v1051, %v1067
    %v1073 = vmul.f32 %v1053, %v1069
    %1076 = vrot.lane.b32.xlu0 %v1072, 32
    %v1077 = vpop.permute.xlu0 %1076
    %1078 = vrot.lane.b32.xlu0 %v1073, 32
    %v1079 = vpop.permute.xlu0 %1078
    %v1082 = vadd.f32 %v1062, %v1077
    %v1083 = vadd.f32 %v1063, %v1079
    %v1084 = vtanh.pop %v1082
    %v1085 = vtanh.pop %v1083
    %1088 = vrot.lane.b32.xlu0 %v1084, 32
    %v1089 = vpop.permute.xlu0 %1088
    %1090 = vrot.lane.b32.xlu0 %v1085, 32
    %v1091 = vpop.permute.xlu0 %1090
    %v1094 = vmul.f32 %v1051, %v1089
    %v1095 = vmul.f32 %v1053, %v1091
    %v1096 = vtanh.pop %v1040
    %v1097 = vtanh.pop %v1041
    %v1100 = vrot.slane %v1096, 2
    %v1101 = vrot.slane %v1097, 2
    %v1104 = vmax.f32 %v805, %v1100
    %v1105 = vmax.f32 %v806, %v1101
    %v1106 = vtanh.pop %v1094
    %v1107 = vtanh.pop %v1095
    %v1110 = vrot.slane %v1106, 6
    %v1111 = vrot.slane %v1107, 6
    %v1114 = vmax.f32 %v815, %v1110
    %v1115 = vmax.f32 %v816, %v1111
    %v1118 = vrot.slane %v1040, 2
    %v1119 = vrot.slane %v1041, 1
    %v1120 = vsel %vm521, %v1119, %v1118
    %1121 = vrot.lane.b32.xlu0 %v1120, 64
    %v1122 = vpop.permute.xlu0 %1121
    %v1123 = vsel %vm261, %v1122, 0
    %1125 = vmatprep.subr.mxu0 0.0
    %1126 = vmatpush1.msra.mxu0 %v253
    %1127 = vmatprep.subr.mxu0 0.0
    %1128 = vmatpush1.msra.mxu0 %v254
    %1129 = vmatprep.subr.mxu0 0.0
    %1130 = vmatpush1.msra.mxu0 %v255
    %1131 = vmatprep.subr.mxu0 0.0
    %1132 = vmatpush1.msra.mxu0 %v256
    %1133 = vmatprep.subr.mxu0 0.0
    %1134 = vmatpush1.msra.mxu0 0.0
    %1135 = vmatprep.subr.mxu0 0.0
    %1136 = vmatpush1.msra.mxu0 0.0
    %1137 = vmatprep.subr.mxu0 0.0
    %1138 = vmatpush1.msra.mxu0 0.0
    %1139 = vmatprep.subr.mxu0 0.0
    %1140 = vmatpush1.msra.mxu0 0.0
    %1141 = vmatprep.subr.mxu0 0.0
    %1142 = vmatpush1.msra.mxu0 0.0
    %1143 = vmatprep.subr.mxu0 0.0
    %1144 = vmatpush1.msra.mxu0 0.0
    %1145 = vmatprep.subr.mxu0 0.0
    %1146 = vmatpush1.msra.mxu0 0.0
    %1147 = vmatprep.subr.mxu0 0.0
    %1148 = vmatpush1.msra.mxu0 0.0
    %1149 = vmatprep.subr.mxu0 0.0
    %1150 = vmatpush1.msra.mxu0 0.0
    %1151 = vmatprep.subr.mxu0 0.0
    %1152 = vmatpush1.msra.mxu0 0.0
    %1153 = vmatprep.subr.mxu0 0.0
    %1154 = vmatpush1.msra.mxu0 0.0
    %1155 = vmatprep.subr.mxu0 0.0
    %1156 = vmatpush1.msra.mxu0 0.0
    %1157 = vmatprep.subr.mxu0 0.0
    %1158 = vmatpush1.msra.mxu0 0.0
    %1159 = vmatprep.subr.mxu0 0.0
    %1160 = vmatpush1.msra.mxu0 0.0
    %1161 = vmatprep.subr.mxu0 0.0
    %1162 = vmatpush1.msra.mxu0 0.0
    %1163 = vmatprep.subr.mxu0 0.0
    %1164 = vmatpush1.msra.mxu0 0.0
    %1165 = vmatprep.subr.mxu0 0.0
    %1166 = vmatpush1.msra.mxu0 0.0
    %1167 = vmatprep.subr.mxu0 0.0
    %1168 = vmatpush1.msra.mxu0 0.0
    %1169 = vmatprep.subr.mxu0 0.0
    %1170 = vmatpush1.msra.mxu0 0.0
    %1171 = vmatprep.subr.mxu0 0.0
    %1172 = vmatpush1.msra.mxu0 0.0
    %1173 = vmatprep.subr.mxu0 0.0
    %1174 = vmatpush1.msra.mxu0 0.0
    %1175 = vmatprep.subr.mxu0 0.0
    %1176 = vmatpush1.msra.mxu0 0.0
    %1177 = vmatprep.subr.mxu0 0.0
    %1178 = vmatpush1.msra.mxu0 0.0
    %1179 = vmatprep.subr.mxu0 0.0
    %1180 = vmatpush1.msra.mxu0 0.0
    %1181 = vmatprep.subr.mxu0 0.0
    %1182 = vmatpush1.msra.mxu0 0.0
    %1183 = vmatprep.subr.mxu0 0.0
    %1184 = vmatpush1.msra.mxu0 0.0
    %1185 = vmatprep.subr.mxu0 0.0
    %1186 = vmatpush1.msra.mxu0 0.0
    %1187 = vmatprep.subr.mxu0 0.0
    %1188 = vmatpush1.msra.mxu0 0.0
    %1189 = vmatprep.mubr.f32.mxu0 0.0
    %1190 = vmatmul.mubr.f32.gmra.mrb[0].mxu0 %v1123
    %v1191 = vpop.f32.mrb[0].mxu0
    %v1192 = vadd.f32 0.0, %v1191
    %v1193 = vpop.f32.mrb[0].mxu0
    %1194 = vdwg.mxu0
    %v1196 = vrot.slane %v1192, 5
    %v1197 = vrot.slane %v1192, 6
    %v1200 = vadd.f32 %v243, %v1196
    %v1201 = vadd.f32 %v249, %v1197
    %v1204 = vrot.slane %v1094, 5
    %v1205 = vrot.slane %v1095, 4
    %v1206 = vsel %vm521, %v1205, %v1204
    %1207 = vrot.lane.b32.xlu0 %v1206, 64
    %v1208 = vpop.permute.xlu0 %1207
    %v1209 = vsel %vm261, %v1208, 0
    %1211 = vmatprep.subr.mxu0 0.0
    %1212 = vmatpush1.msra.mxu0 %v257
    %1213 = vmatprep.subr.mxu0 0.0
    %1214 = vmatpush1.msra.mxu0 %v258
    %1215 = vmatprep.subr.mxu0 0.0
    %1216 = vmatpush1.msra.mxu0 %v259
    %1217 = vmatprep.subr.mxu0 0.0
    %1218 = vmatpush1.msra.mxu0 %v260
    %1219 = vmatprep.subr.mxu0 0.0
    %1220 = vmatpush1.msra.mxu0 0.0
    %1221 = vmatprep.subr.mxu0 0.0
    %1222 = vmatpush1.msra.mxu0 0.0
    %1223 = vmatprep.subr.mxu0 0.0
    %1224 = vmatpush1.msra.mxu0 0.0
    %1225 = vmatprep.subr.mxu0 0.0
    %1226 = vmatpush1.msra.mxu0 0.0
    %1227 = vmatprep.subr.mxu0 0.0
    %1228 = vmatpush1.msra.mxu0 0.0
    %1229 = vmatprep.subr.mxu0 0.0
    %1230 = vmatpush1.msra.mxu0 0.0
    %1231 = vmatprep.subr.mxu0 0.0
    %1232 = vmatpush1.msra.mxu0 0.0
    %1233 = vmatprep.subr.mxu0 0.0
    %1234 = vmatpush1.msra.mxu0 0.0
    %1235 = vmatprep.subr.mxu0 0.0
    %1236 = vmatpush1.msra.mxu0 0.0
    %1237 = vmatprep.subr.mxu0 0.0
    %1238 = vmatpush1.msra.mxu0 0.0
    %1239 = vmatprep.subr.mxu0 0.0
    %1240 = vmatpush1.msra.mxu0 0.0
    %1241 = vmatprep.subr.mxu0 0.0
    %1242 = vmatpush1.msra.mxu0 0.0
    %1243 = vmatprep.subr.mxu0 0.0
    %1244 = vmatpush1.msra.mxu0 0.0
    %1245 = vmatprep.subr.mxu0 0.0
    %1246 = vmatpush1.msra.mxu0 0.0
    %1247 = vmatprep.subr.mxu0 0.0
    %1248 = vmatpush1.msra.mxu0 0.0
    %1249 = vmatprep.subr.mxu0 0.0
    %1250 = vmatpush1.msra.mxu0 0.0
    %1251 = vmatprep.subr.mxu0 0.0
    %1252 = vmatpush1.msra.mxu0 0.0
    %1253 = vmatprep.subr.mxu0 0.0
    %1254 = vmatpush1.msra.mxu0 0.0
    %1255 = vmatprep.subr.mxu0 0.0
    %1256 = vmatpush1.msra.mxu0 0.0
    %1257 = vmatprep.subr.mxu0 0.0
    %1258 = vmatpush1.msra.mxu0 0.0
    %1259 = vmatprep.subr.mxu0 0.0
    %1260 = vmatpush1.msra.mxu0 0.0
    %1261 = vmatprep.subr.mxu0 0.0
    %1262 = vmatpush1.msra.mxu0 0.0
    %1263 = vmatprep.subr.mxu0 0.0
    %1264 = vmatpush1.msra.mxu0 0.0
    %1265 = vmatprep.subr.mxu0 0.0
    %1266 = vmatpush1.msra.mxu0 0.0
    %1267 = vmatprep.subr.mxu0 0.0
    %1268 = vmatpush1.msra.mxu0 0.0
    %1269 = vmatprep.subr.mxu0 0.0
    %1270 = vmatpush1.msra.mxu0 0.0
    %1271 = vmatprep.subr.mxu0 0.0
    %1272 = vmatpush1.msra.mxu0 0.0
    %1273 = vmatprep.subr.mxu0 0.0
    %1274 = vmatpush1.msra.mxu0 0.0
    %1275 = vmatprep.mubr.f32.mxu0 0.0
    %1276 = vmatmul.mubr.f32.gmra.mrb[0].mxu0 %v1209
    %v1277 = vpop.f32.mrb[0].mxu0
    %v1278 = vadd.f32 0.0, %v1277
    %v1279 = vpop.f32.mrb[0].mxu0
    %1280 = vdwg.mxu0
    %v1282 = vrot.slane %v1278, 4
    %v1283 = vrot.slane %v1278, 5
    %v1286 = vadd.f32 %v245, %v1282
    %v1287 = vadd.f32 %v251, %v1283
    %v1288 = vxor.u32 %v1200, 2147483648
    %v1289 = vxor.u32 %v1201, 2147483648
    %v1290 = vmul.f32 %v1288, 1.442695
    %v1291 = vpow.pop %v1290
    %v1292 = vmul.f32 %v1289, 1.442695
    %v1293 = vpow.pop %v1292
    %v1294 = vadd.f32 %v1291, 1.0
    %v1295 = vadd.f32 %v1293, 1.0
    %v1296 = vrcp.pop %v1294
    %v1297 = vmul.f32 1.0, %v1296
    %v1298 = vrcp.pop %v1295
    %v1299 = vmul.f32 1.0, %v1298
    %v1300 = vtanh.pop %v1200
    %v1301 = vtanh.pop %v1201
    %v1304 = vrot.slane %v1028, 7
    %v1305 = vrot.slane %v1029, 7
    %v1308 = vmul.f32 %v1297, %v1304
    %v1309 = vmul.f32 %v1299, %v1305
    %1312 = vrot.lane.b32.xlu0 %v1300, 32
    %v1313 = vpop.permute.xlu0 %1312
    %1314 = vrot.lane.b32.xlu0 %v1301, 32
    %v1315 = vpop.permute.xlu0 %1314
    %v1318 = vmul.f32 %v1297, %v1313
    %v1319 = vmul.f32 %v1299, %v1315
    %1322 = vrot.lane.b32.xlu0 %v1318, 32
    %v1323 = vpop.permute.xlu0 %1322
    %1324 = vrot.lane.b32.xlu0 %v1319, 32
    %v1325 = vpop.permute.xlu0 %1324
    %v1328 = vadd.f32 %v1308, %v1323
    %v1329 = vadd.f32 %v1309, %v1325
    %v1330 = vtanh.pop %v1328
    %v1331 = vtanh.pop %v1329
    %1334 = vrot.lane.b32.xlu0 %v1330, 32
    %v1335 = vpop.permute.xlu0 %1334
    %1336 = vrot.lane.b32.xlu0 %v1331, 32
    %v1337 = vpop.permute.xlu0 %1336
    %v1340 = vmul.f32 %v1297, %v1335
    %v1341 = vmul.f32 %v1299, %v1337
    %v1342 = vxor.u32 %v1286, 2147483648
    %v1343 = vxor.u32 %v1287, 2147483648
    %v1344 = vmul.f32 %v1342, 1.442695
    %v1345 = vpow.pop %v1344
    %v1346 = vmul.f32 %v1343, 1.442695
    %v1347 = vpow.pop %v1346
    %v1348 = vadd.f32 %v1345, 1.0
    %v1349 = vadd.f32 %v1347, 1.0
    %v1350 = vrcp.pop %v1348
    %v1351 = vmul.f32 1.0, %v1350
    %v1352 = vrcp.pop %v1349
    %v1353 = vmul.f32 1.0, %v1352
    %v1354 = vtanh.pop %v1286
    %v1355 = vtanh.pop %v1287
    %v1358 = vrot.slane %v1082, 1
    %v1359 = vrot.slane %v1083, 1
    %v1362 = vmul.f32 %v1351, %v1358
    %v1363 = vmul.f32 %v1353, %v1359
    %1366 = vrot.lane.b32.xlu0 %v1354, 32
    %v1367 = vpop.permute.xlu0 %1366
    %1368 = vrot.lane.b32.xlu0 %v1355, 32
    %v1369 = vpop.permute.xlu0 %1368
    %v1372 = vmul.f32 %v1351, %v1367
    %v1373 = vmul.f32 %v1353, %v1369
    %1376 = vrot.lane.b32.xlu0 %v1372, 32
    %v1377 = vpop.permute.xlu0 %1376
    %1378 = vrot.lane.b32.xlu0 %v1373, 32
    %v1379 = vpop.permute.xlu0 %1378
    %v1382 = vadd.f32 %v1362, %v1377
    %v1383 = vadd.f32 %v1363, %v1379
    %v1384 = vtanh.pop %v1382
    %v1385 = vtanh.pop %v1383
    %1388 = vrot.lane.b32.xlu0 %v1384, 32
    %v1389 = vpop.permute.xlu0 %1388
    %1390 = vrot.lane.b32.xlu0 %v1385, 32
    %v1391 = vpop.permute.xlu0 %1390
    %v1394 = vmul.f32 %v1351, %v1389
    %v1395 = vmul.f32 %v1353, %v1391
    %v1396 = vtanh.pop %v1340
    %v1397 = vtanh.pop %v1341
    %v1400 = vrot.slane %v1396, 3
    %v1401 = vrot.slane %v1397, 3
    %v1404 = vmax.f32 %v1104, %v1400
    %v1405 = vmax.f32 %v1105, %v1401
    %v1406 = vtanh.pop %v1394
    %v1407 = vtanh.pop %v1395
    %v1410 = vrot.slane %v1406, 5
    %v1411 = vrot.slane %v1407, 5
    %v1414 = vmax.f32 %v1114, %v1410
    %v1415 = vmax.f32 %v1115, %v1411
    %v1418 = vrot.slane %v1340, 3
    %v1419 = vrot.slane %v1341, 2
    %v1420 = vsel %vm521, %v1419, %v1418
    %1421 = vrot.lane.b32.xlu0 %v1420, 64
    %v1422 = vpop.permute.xlu0 %1421
    %v1423 = vsel %vm261, %v1422, 0
    %1425 = vmatprep.subr.mxu0 0.0
    %1426 = vmatpush1.msra.mxu0 %v253
    %1427 = vmatprep.subr.mxu0 0.0
    %1428 = vmatpush1.msra.mxu0 %v254
    %1429 = vmatprep.subr.mxu0 0.0
    %1430 = vmatpush1.msra.mxu0 %v255
    %1431 = vmatprep.subr.mxu0 0.0
    %1432 = vmatpush1.msra.mxu0 %v256
    %1433 = vmatprep.subr.mxu0 0.0
    %1434 = vmatpush1.msra.mxu0 0.0
    %1435 = vmatprep.subr.mxu0 0.0
    %1436 = vmatpush1.msra.mxu0 0.0
    %1437 = vmatprep.subr.mxu0 0.0
    %1438 = vmatpush1.msra.mxu0 0.0
    %1439 = vmatprep.subr.mxu0 0.0
    %1440 = vmatpush1.msra.mxu0 0.0
    %1441 = vmatprep.subr.mxu0 0.0
    %1442 = vmatpush1.msra.mxu0 0.0
    %1443 = vmatprep.subr.mxu0 0.0
    %1444 = vmatpush1.msra.mxu0 0.0
    %1445 = vmatprep.subr.mxu0 0.0
    %1446 = vmatpush1.msra.mxu0 0.0
    %1447 = vmatprep.subr.mxu0 0.0
    %1448 = vmatpush1.msra.mxu0 0.0
    %1449 = vmatprep.subr.mxu0 0.0
    %1450 = vmatpush1.msra.mxu0 0.0
    %1451 = vmatprep.subr.mxu0 0.0
    %1452 = vmatpush1.msra.mxu0 0.0
    %1453 = vmatprep.subr.mxu0 0.0
    %1454 = vmatpush1.msra.mxu0 0.0
    %1455 = vmatprep.subr.mxu0 0.0
    %1456 = vmatpush1.msra.mxu0 0.0
    %1457 = vmatprep.subr.mxu0 0.0
    %1458 = vmatpush1.msra.mxu0 0.0
    %1459 = vmatprep.subr.mxu0 0.0
    %1460 = vmatpush1.msra.mxu0 0.0
    %1461 = vmatprep.subr.mxu0 0.0
    %1462 = vmatpush1.msra.mxu0 0.0
    %1463 = vmatprep.subr.mxu0 0.0
    %1464 = vmatpush1.msra.mxu0 0.0
    %1465 = vmatprep.subr.mxu0 0.0
    %1466 = vmatpush1.msra.mxu0 0.0
    %1467 = vmatprep.subr.mxu0 0.0
    %1468 = vmatpush1.msra.mxu0 0.0
    %1469 = vmatprep.subr.mxu0 0.0
    %1470 = vmatpush1.msra.mxu0 0.0
    %1471 = vmatprep.subr.mxu0 0.0
    %1472 = vmatpush1.msra.mxu0 0.0
    %1473 = vmatprep.subr.mxu0 0.0
    %1474 = vmatpush1.msra.mxu0 0.0
    %1475 = vmatprep.subr.mxu0 0.0
    %1476 = vmatpush1.msra.mxu0 0.0
    %1477 = vmatprep.subr.mxu0 0.0
    %1478 = vmatpush1.msra.mxu0 0.0
    %1479 = vmatprep.subr.mxu0 0.0
    %1480 = vmatpush1.msra.mxu0 0.0
    %1481 = vmatprep.subr.mxu0 0.0
    %1482 = vmatpush1.msra.mxu0 0.0
    %1483 = vmatprep.subr.mxu0 0.0
    %1484 = vmatpush1.msra.mxu0 0.0
    %1485 = vmatprep.subr.mxu0 0.0
    %1486 = vmatpush1.msra.mxu0 0.0
    %1487 = vmatprep.subr.mxu0 0.0
    %1488 = vmatpush1.msra.mxu0 0.0
    %1489 = vmatprep.mubr.f32.mxu0 0.0
    %1490 = vmatmul.mubr.f32.gmra.mrb[0].mxu0 %v1423
    %v1491 = vpop.f32.mrb[0].mxu0
    %v1492 = vadd.f32 0.0, %v1491
    %v1493 = vpop.f32.mrb[0].mxu0
    %1494 = vdwg.mxu0
    %v1496 = vrot.slane %v1492, 4
    %v1497 = vrot.slane %v1492, 5
    %v1500 = vadd.f32 %v243, %v1496
    %v1501 = vadd.f32 %v249, %v1497
    %v1504 = vrot.slane %v1394, 4
    %v1505 = vrot.slane %v1395, 3
    %v1506 = vsel %vm521, %v1505, %v1504
    %1507 = vrot.lane.b32.xlu0 %v1506, 64
    %v1508 = vpop.permute.xlu0 %1507
    %v1509 = vsel %vm261, %v1508, 0
    %1511 = vmatprep.subr.mxu0 0.0
    %1512 = vmatpush1.msra.mxu0 %v257
    %1513 = vmatprep.subr.mxu0 0.0
    %1514 = vmatpush1.msra.mxu0 %v258
    %1515 = vmatprep.subr.mxu0 0.0
    %1516 = vmatpush1.msra.mxu0 %v259
    %1517 = vmatprep.subr.mxu0 0.0
    %1518 = vmatpush1.msra.mxu0 %v260
    %1519 = vmatprep.subr.mxu0 0.0
    %1520 = vmatpush1.msra.mxu0 0.0
    %1521 = vmatprep.subr.mxu0 0.0
    %1522 = vmatpush1.msra.mxu0 0.0
    %1523 = vmatprep.subr.mxu0 0.0
    %1524 = vmatpush1.msra.mxu0 0.0
    %1525 = vmatprep.subr.mxu0 0.0
    %1526 = vmatpush1.msra.mxu0 0.0
    %1527 = vmatprep.subr.mxu0 0.0
    %1528 = vmatpush1.msra.mxu0 0.0
    %1529 = vmatprep.subr.mxu0 0.0
    %1530 = vmatpush1.msra.mxu0 0.0
    %1531 = vmatprep.subr.mxu0 0.0
    %1532 = vmatpush1.msra.mxu0 0.0
    %1533 = vmatprep.subr.mxu0 0.0
    %1534 = vmatpush1.msra.mxu0 0.0
    %1535 = vmatprep.subr.mxu0 0.0
    %1536 = vmatpush1.msra.mxu0 0.0
    %1537 = vmatprep.subr.mxu0 0.0
    %1538 = vmatpush1.msra.mxu0 0.0
    %1539 = vmatprep.subr.mxu0 0.0
    %1540 = vmatpush1.msra.mxu0 0.0
    %1541 = vmatprep.subr.mxu0 0.0
    %1542 = vmatpush1.msra.mxu0 0.0
    %1543 = vmatprep.subr.mxu0 0.0
    %1544 = vmatpush1.msra.mxu0 0.0
    %1545 = vmatprep.subr.mxu0 0.0
    %1546 = vmatpush1.msra.mxu0 0.0
    %1547 = vmatprep.subr.mxu0 0.0
    %1548 = vmatpush1.msra.mxu0 0.0
    %1549 = vmatprep.subr.mxu0 0.0
    %1550 = vmatpush1.msra.mxu0 0.0
    %1551 = vmatprep.subr.mxu0 0.0
    %1552 = vmatpush1.msra.mxu0 0.0
    %1553 = vmatprep.subr.mxu0 0.0
    %1554 = vmatpush1.msra.mxu0 0.0
    %1555 = vmatprep.subr.mxu0 0.0
    %1556 = vmatpush1.msra.mxu0 0.0
    %1557 = vmatprep.subr.mxu0 0.0
    %1558 = vmatpush1.msra.mxu0 0.0
    %1559 = vmatprep.subr.mxu0 0.0
    %1560 = vmatpush1.msra.mxu0 0.0
    %1561 = vmatprep.subr.mxu0 0.0
    %1562 = vmatpush1.msra.mxu0 0.0
    %1563 = vmatprep.subr.mxu0 0.0
    %1564 = vmatpush1.msra.mxu0 0.0
    %1565 = vmatprep.subr.mxu0 0.0
    %1566 = vmatpush1.msra.mxu0 0.0
    %1567 = vmatprep.subr.mxu0 0.0
    %1568 = vmatpush1.msra.mxu0 0.0
    %1569 = vmatprep.subr.mxu0 0.0
    %1570 = vmatpush1.msra.mxu0 0.0
    %1571 = vmatprep.subr.mxu0 0.0
    %1572 = vmatpush1.msra.mxu0 0.0
    %1573 = vmatprep.subr.mxu0 0.0
    %1574 = vmatpush1.msra.mxu0 0.0
    %1575 = vmatprep.mubr.f32.mxu0 0.0
    %1576 = vmatmul.mubr.f32.gmra.mrb[0].mxu0 %v1509
    %v1577 = vpop.f32.mrb[0].mxu0
    %v1578 = vadd.f32 0.0, %v1577
    %v1579 = vpop.f32.mrb[0].mxu0
    %1580 = vdwg.mxu0
    %v1582 = vrot.slane %v1578, 5
    %v1583 = vrot.slane %v1578, 6
    %v1586 = vadd.f32 %v245, %v1582
    %v1587 = vadd.f32 %v251, %v1583
    %v1588 = vxor.u32 %v1500, 2147483648
    %v1589 = vxor.u32 %v1501, 2147483648
    %v1590 = vmul.f32 %v1588, 1.442695
    %v1591 = vpow.pop %v1590
    %v1592 = vmul.f32 %v1589, 1.442695
    %v1593 = vpow.pop %v1592
    %v1594 = vadd.f32 %v1591, 1.0
    %v1595 = vadd.f32 %v1593, 1.0
    %v1596 = vrcp.pop %v1594
    %v1597 = vmul.f32 1.0, %v1596
    %v1598 = vrcp.pop %v1595
    %v1599 = vmul.f32 1.0, %v1598
    %v1600 = vtanh.pop %v1500
    %v1601 = vtanh.pop %v1501
    %v1604 = vrot.slane %v1328, 7
    %v1605 = vrot.slane %v1329, 7
    %v1608 = vmul.f32 %v1597, %v1604
    %v1609 = vmul.f32 %v1599, %v1605
    %1612 = vrot.lane.b32.xlu0 %v1600, 32
    %v1613 = vpop.permute.xlu0 %1612
    %1614 = vrot.lane.b32.xlu0 %v1601, 32
    %v1615 = vpop.permute.xlu0 %1614
    %v1618 = vmul.f32 %v1597, %v1613
    %v1619 = vmul.f32 %v1599, %v1615
    %1622 = vrot.lane.b32.xlu0 %v1618, 32
    %v1623 = vpop.permute.xlu0 %1622
    %1624 = vrot.lane.b32.xlu0 %v1619, 32
    %v1625 = vpop.permute.xlu0 %1624
    %v1628 = vadd.f32 %v1608, %v1623
    %v1629 = vadd.f32 %v1609, %v1625
    %v1630 = vtanh.pop %v1628
    %v1631 = vtanh.pop %v1629
    %1634 = vrot.lane.b32.xlu0 %v1630, 32
    %v1635 = vpop.permute.xlu0 %1634
    %1636 = vrot.lane.b32.xlu0 %v1631, 32
    %v1637 = vpop.permute.xlu0 %1636
    %v1640 = vmul.f32 %v1597, %v1635
    %v1641 = vmul.f32 %v1599, %v1637
    %v1642 = vxor.u32 %v1586, 2147483648
    %v1643 = vxor.u32 %v1587, 2147483648
    %v1644 = vmul.f32 %v1642, 1.442695
    %v1645 = vpow.pop %v1644
    %v1646 = vmul.f32 %v1643, 1.442695
    %v1647 = vpow.pop %v1646
    %v1648 = vadd.f32 %v1645, 1.0
    %v1649 = vadd.f32 %v1647, 1.0
    %v1650 = vrcp.pop %v1648
    %v1651 = vmul.f32 1.0, %v1650
    %v1652 = vrcp.pop %v1649
    %v1653 = vmul.f32 1.0, %v1652
    %v1654 = vtanh.pop %v1586
    %v1655 = vtanh.pop %v1587
    %v1658 = vrot.slane %v1382, 1
    %v1659 = vrot.slane %v1383, 1
    %v1662 = vmul.f32 %v1651, %v1658
    %v1663 = vmul.f32 %v1653, %v1659
    %1666 = vrot.lane.b32.xlu0 %v1654, 32
    %v1667 = vpop.permute.xlu0 %1666
    %1668 = vrot.lane.b32.xlu0 %v1655, 32
    %v1669 = vpop.permute.xlu0 %1668
    %v1672 = vmul.f32 %v1651, %v1667
    %v1673 = vmul.f32 %v1653, %v1669
    %1676 = vrot.lane.b32.xlu0 %v1672, 32
    %v1677 = vpop.permute.xlu0 %1676
    %1678 = vrot.lane.b32.xlu0 %v1673, 32
    %v1679 = vpop.permute.xlu0 %1678
    %v1682 = vadd.f32 %v1662, %v1677
    %v1683 = vadd.f32 %v1663, %v1679
    %v1684 = vtanh.pop %v1682
    %v1685 = vtanh.pop %v1683
    %1688 = vrot.lane.b32.xlu0 %v1684, 32
    %v1689 = vpop.permute.xlu0 %1688
    %1690 = vrot.lane.b32.xlu0 %v1685, 32
    %v1691 = vpop.permute.xlu0 %1690
    %v1694 = vmul.f32 %v1651, %v1689
    %v1695 = vmul.f32 %v1653, %v1691
    %v1696 = vtanh.pop %v1640
    %v1697 = vtanh.pop %v1641
    %v1700 = vrot.slane %v1696, 4
    %v1701 = vrot.slane %v1697, 4
    %v1704 = vmax.f32 %v1404, %v1700
    %v1705 = vmax.f32 %v1405, %v1701
    %v1706 = vtanh.pop %v1694
    %v1707 = vtanh.pop %v1695
    %v1710 = vrot.slane %v1706, 4
    %v1711 = vrot.slane %v1707, 4
    %v1714 = vmax.f32 %v1414, %v1710
    %v1715 = vmax.f32 %v1415, %v1711
    %v1718 = vrot.slane %v1640, 4
    %v1719 = vrot.slane %v1641, 3
    %v1720 = vsel %vm521, %v1719, %v1718
    %1721 = vrot.lane.b32.xlu0 %v1720, 64
    %v1722 = vpop.permute.xlu0 %1721
    %v1723 = vsel %vm261, %v1722, 0
    %1725 = vmatprep.subr.mxu0 0.0
    %1726 = vmatpush1.msra.mxu0 %v253
    %1727 = vmatprep.subr.mxu0 0.0
    %1728 = vmatpush1.msra.mxu0 %v254
    %1729 = vmatprep.subr.mxu0 0.0
    %1730 = vmatpush1.msra.mxu0 %v255
    %1731 = vmatprep.subr.mxu0 0.0
    %1732 = vmatpush1.msra.mxu0 %v256
    %1733 = vmatprep.subr.mxu0 0.0
    %1734 = vmatpush1.msra.mxu0 0.0
    %1735 = vmatprep.subr.mxu0 0.0
    %1736 = vmatpush1.msra.mxu0 0.0
    %1737 = vmatprep.subr.mxu0 0.0
    %1738 = vmatpush1.msra.mxu0 0.0
    %1739 = vmatprep.subr.mxu0 0.0
    %1740 = vmatpush1.msra.mxu0 0.0
    %1741 = vmatprep.subr.mxu0 0.0
    %1742 = vmatpush1.msra.mxu0 0.0
    %1743 = vmatprep.subr.mxu0 0.0
    %1744 = vmatpush1.msra.mxu0 0.0
    %1745 = vmatprep.subr.mxu0 0.0
    %1746 = vmatpush1.msra.mxu0 0.0
    %1747 = vmatprep.subr.mxu0 0.0
    %1748 = vmatpush1.msra.mxu0 0.0
    %1749 = vmatprep.subr.mxu0 0.0
    %1750 = vmatpush1.msra.mxu0 0.0
    %1751 = vmatprep.subr.mxu0 0.0
    %1752 = vmatpush1.msra.mxu0 0.0
    %1753 = vmatprep.subr.mxu0 0.0
    %1754 = vmatpush1.msra.mxu0 0.0
    %1755 = vmatprep.subr.mxu0 0.0
    %1756 = vmatpush1.msra.mxu0 0.0
    %1757 = vmatprep.subr.mxu0 0.0
    %1758 = vmatpush1.msra.mxu0 0.0
    %1759 = vmatprep.subr.mxu0 0.0
    %1760 = vmatpush1.msra.mxu0 0.0
    %1761 = vmatprep.subr.mxu0 0.0
    %1762 = vmatpush1.msra.mxu0 0.0
    %1763 = vmatprep.subr.mxu0 0.0
    %1764 = vmatpush1.msra.mxu0 0.0
    %1765 = vmatprep.subr.mxu0 0.0
    %1766 = vmatpush1.msra.mxu0 0.0
    %1767 = vmatprep.subr.mxu0 0.0
    %1768 = vmatpush1.msra.mxu0 0.0
    %1769 = vmatprep.subr.mxu0 0.0
    %1770 = vmatpush1.msra.mxu0 0.0
    %1771 = vmatprep.subr.mxu0 0.0
    %1772 = vmatpush1.msra.mxu0 0.0
    %1773 = vmatprep.subr.mxu0 0.0
    %1774 = vmatpush1.msra.mxu0 0.0
    %1775 = vmatprep.subr.mxu0 0.0
    %1776 = vmatpush1.msra.mxu0 0.0
    %1777 = vmatprep.subr.mxu0 0.0
    %1778 = vmatpush1.msra.mxu0 0.0
    %1779 = vmatprep.subr.mxu0 0.0
    %1780 = vmatpush1.msra.mxu0 0.0
    %1781 = vmatprep.subr.mxu0 0.0
    %1782 = vmatpush1.msra.mxu0 0.0
    %1783 = vmatprep.subr.mxu0 0.0
    %1784 = vmatpush1.msra.mxu0 0.0
    %1785 = vmatprep.subr.mxu0 0.0
    %1786 = vmatpush1.msra.mxu0 0.0
    %1787 = vmatprep.subr.mxu0 0.0
    %1788 = vmatpush1.msra.mxu0 0.0
    %1789 = vmatprep.mubr.f32.mxu0 0.0
    %1790 = vmatmul.mubr.f32.gmra.mrb[0].mxu0 %v1723
    %v1791 = vpop.f32.mrb[0].mxu0
    %v1792 = vadd.f32 0.0, %v1791
    %v1793 = vpop.f32.mrb[0].mxu0
    %1794 = vdwg.mxu0
    %v1796 = vrot.slane %v1792, 3
    %v1797 = vrot.slane %v1792, 4
    %v1800 = vadd.f32 %v243, %v1796
    %v1801 = vadd.f32 %v249, %v1797
    %v1804 = vrot.slane %v1694, 3
    %v1805 = vrot.slane %v1695, 2
    %v1806 = vsel %vm521, %v1805, %v1804
    %1807 = vrot.lane.b32.xlu0 %v1806, 64
    %v1808 = vpop.permute.xlu0 %1807
    %v1809 = vsel %vm261, %v1808, 0
    %1811 = vmatprep.subr.mxu0 0.0
    %1812 = vmatpush1.msra.mxu0 %v257
    %1813 = vmatprep.subr.mxu0 0.0
    %1814 = vmatpush1.msra.mxu0 %v258
    %1815 = vmatprep.subr.mxu0 0.0
    %1816 = vmatpush1.msra.mxu0 %v259
    %1817 = vmatprep.subr.mxu0 0.0
    %1818 = vmatpush1.msra.mxu0 %v260
    %1819 = vmatprep.subr.mxu0 0.0
    %1820 = vmatpush1.msra.mxu0 0.0
    %1821 = vmatprep.subr.mxu0 0.0
    %1822 = vmatpush1.msra.mxu0 0.0
    %1823 = vmatprep.subr.mxu0 0.0
    %1824 = vmatpush1.msra.mxu0 0.0
    %1825 = vmatprep.subr.mxu0 0.0
    %1826 = vmatpush1.msra.mxu0 0.0
    %1827 = vmatprep.subr.mxu0 0.0
    %1828 = vmatpush1.msra.mxu0 0.0
    %1829 = vmatprep.subr.mxu0 0.0
    %1830 = vmatpush1.msra.mxu0 0.0
    %1831 = vmatprep.subr.mxu0 0.0
    %1832 = vmatpush1.msra.mxu0 0.0
    %1833 = vmatprep.subr.mxu0 0.0
    %1834 = vmatpush1.msra.mxu0 0.0
    %1835 = vmatprep.subr.mxu0 0.0
    %1836 = vmatpush1.msra.mxu0 0.0
    %1837 = vmatprep.subr.mxu0 0.0
    %1838 = vmatpush1.msra.mxu0 0.0
    %1839 = vmatprep.subr.mxu0 0.0
    %1840 = vmatpush1.msra.mxu0 0.0
    %1841 = vmatprep.subr.mxu0 0.0
    %1842 = vmatpush1.msra.mxu0 0.0
    %1843 = vmatprep.subr.mxu0 0.0
    %1844 = vmatpush1.msra.mxu0 0.0
    %1845 = vmatprep.subr.mxu0 0.0
    %1846 = vmatpush1.msra.mxu0 0.0
    %1847 = vmatprep.subr.mxu0 0.0
    %1848 = vmatpush1.msra.mxu0 0.0
    %1849 = vmatprep.subr.mxu0 0.0
    %1850 = vmatpush1.msra.mxu0 0.0
    %1851 = vmatprep.subr.mxu0 0.0
    %1852 = vmatpush1.msra.mxu0 0.0
    %1853 = vmatprep.subr.mxu0 0.0
    %1854 = vmatpush1.msra.mxu0 0.0
    %1855 = vmatprep.subr.mxu0 0.0
    %1856 = vmatpush1.msra.mxu0 0.0
    %1857 = vmatprep.subr.mxu0 0.0
    %1858 = vmatpush1.msra.mxu0 0.0
    %1859 = vmatprep.subr.mxu0 0.0
    %1860 = vmatpush1.msra.mxu0 0.0
    %1861 = vmatprep.subr.mxu0 0.0
    %1862 = vmatpush1.msra.mxu0 0.0
    %1863 = vmatprep.subr.mxu0 0.0
    %1864 = vmatpush1.msra.mxu0 0.0
    %1865 = vmatprep.subr.mxu0 0.0
    %1866 = vmatpush1.msra.mxu0 0.0
    %1867 = vmatprep.subr.mxu0 0.0
    %1868 = vmatpush1.msra.mxu0 0.0
    %1869 = vmatprep.subr.mxu0 0.0
    %1870 = vmatpush1.msra.mxu0 0.0
    %1871 = vmatprep.subr.mxu0 0.0
    %1872 = vmatpush1.msra.mxu0 0.0
    %1873 = vmatprep.subr.mxu0 0.0
    %1874 = vmatpush1.msra.mxu0 0.0
    %1875 = vmatprep.mubr.f32.mxu0 0.0
    %1876 = vmatmul.mubr.f32.gmra.mrb[0].mxu0 %v1809
    %v1877 = vpop.f32.mrb[0].mxu0
    %v1878 = vadd.f32 0.0, %v1877
    %v1879 = vpop.f32.mrb[0].mxu0
    %1880 = vdwg.mxu0
    %v1882 = vrot.slane %v1878, 6
    %v1883 = vrot.slane %v1878, 7
    %v1886 = vadd.f32 %v245, %v1882
    %v1887 = vadd.f32 %v251, %v1883
    %v1888 = vxor.u32 %v1800, 2147483648
    %v1889 = vxor.u32 %v1801, 2147483648
    %v1890 = vmul.f32 %v1888, 1.442695
    %v1891 = vpow.pop %v1890
    %v1892 = vmul.f32 %v1889, 1.442695
    %v1893 = vpow.pop %v1892
    %v1894 = vadd.f32 %v1891, 1.0
    %v1895 = vadd.f32 %v1893, 1.0
    %v1896 = vrcp.pop %v1894
    %v1897 = vmul.f32 1.0, %v1896
    %v1898 = vrcp.pop %v1895
    %v1899 = vmul.f32 1.0, %v1898
    %v1900 = vtanh.pop %v1800
    %v1901 = vtanh.pop %v1801
    %v1904 = vrot.slane %v1628, 7
    %v1905 = vrot.slane %v1629, 7
    %v1908 = vmul.f32 %v1897, %v1904
    %v1909 = vmul.f32 %v1899, %v1905
    %1912 = vrot.lane.b32.xlu0 %v1900, 32
    %v1913 = vpop.permute.xlu0 %1912
    %1914 = vrot.lane.b32.xlu0 %v1901, 32
    %v1915 = vpop.permute.xlu0 %1914
    %v1918 = vmul.f32 %v1897, %v1913
    %v1919 = vmul.f32 %v1899, %v1915
    %1922 = vrot.lane.b32.xlu0 %v1918, 32
    %v1923 = vpop.permute.xlu0 %1922
    %1924 = vrot.lane.b32.xlu0 %v1919, 32
    %v1925 = vpop.permute.xlu0 %1924
    %v1928 = vadd.f32 %v1908, %v1923
    %v1929 = vadd.f32 %v1909, %v1925
    %v1930 = vtanh.pop %v1928
    %v1931 = vtanh.pop %v1929
    %1934 = vrot.lane.b32.xlu0 %v1930, 32
    %v1935 = vpop.permute.xlu0 %1934
    %1936 = vrot.lane.b32.xlu0 %v1931, 32
    %v1937 = vpop.permute.xlu0 %1936
    %v1940 = vmul.f32 %v1897, %v1935
    %v1941 = vmul.f32 %v1899, %v1937
    %v1942 = vxor.u32 %v1886, 2147483648
    %v1943 = vxor.u32 %v1887, 2147483648
    %v1944 = vmul.f32 %v1942, 1.442695
    %v1945 = vpow.pop %v1944
    %v1946 = vmul.f32 %v1943, 1.442695
    %v1947 = vpow.pop %v1946
    %v1948 = vadd.f32 %v1945, 1.0
    %v1949 = vadd.f32 %v1947, 1.0
    %v1950 = vrcp.pop %v1948
    %v1951 = vmul.f32 1.0, %v1950
    %v1952 = vrcp.pop %v1949
    %v1953 = vmul.f32 1.0, %v1952
    %v1954 = vtanh.pop %v1886
    %v1955 = vtanh.pop %v1887
    %v1958 = vrot.slane %v1682, 1
    %v1959 = vrot.slane %v1683, 1
    %v1962 = vmul.f32 %v1951, %v1958
    %v1963 = vmul.f32 %v1953, %v1959
    %1966 = vrot.lane.b32.xlu0 %v1954, 32
    %v1967 = vpop.permute.xlu0 %1966
    %1968 = vrot.lane.b32.xlu0 %v1955, 32
    %v1969 = vpop.permute.xlu0 %1968
    %v1972 = vmul.f32 %v1951, %v1967
    %v1973 = vmul.f32 %v1953, %v1969
    %1976 = vrot.lane.b32.xlu0 %v1972, 32
    %v1977 = vpop.permute.xlu0 %1976
    %1978 = vrot.lane.b32.xlu0 %v1973, 32
    %v1979 = vpop.permute.xlu0 %1978
    %v1982 = vadd.f32 %v1962, %v1977
    %v1983 = vadd.f32 %v1963, %v1979
    %v1984 = vtanh.pop %v1982
    %v1985 = vtanh.pop %v1983
    %1988 = vrot.lane.b32.xlu0 %v1984, 32
    %v1989 = vpop.permute.xlu0 %1988
    %1990 = vrot.lane.b32.xlu0 %v1985, 32
    %v1991 = vpop.permute.xlu0 %1990
    %v1994 = vmul.f32 %v1951, %v1989
    %v1995 = vmul.f32 %v1953, %v1991
    %v1996 = vtanh.pop %v1940
    %v1997 = vtanh.pop %v1941
    %v2000 = vrot.slane %v1996, 5
    %v2001 = vrot.slane %v1997, 5
    %v2004 = vmax.f32 %v1704, %v2000
    %v2005 = vmax.f32 %v1705, %v2001
    %v2006 = vtanh.pop %v1994
    %v2007 = vtanh.pop %v1995
    %v2010 = vrot.slane %v2006, 3
    %v2011 = vrot.slane %v2007, 3
    %v2014 = vmax.f32 %v1714, %v2010
    %v2015 = vmax.f32 %v1715, %v2011
    %v2018 = vrot.slane %v1940, 5
    %v2019 = vrot.slane %v1941, 4
    %v2020 = vsel %vm521, %v2019, %v2018
    %2021 = vrot.lane.b32.xlu0 %v2020, 64
    %v2022 = vpop.permute.xlu0 %2021
    %v2023 = vsel %vm261, %v2022, 0
    %2025 = vmatprep.subr.mxu0 0.0
    %2026 = vmatpush1.msra.mxu0 %v253
    %2027 = vmatprep.subr.mxu0 0.0
    %2028 = vmatpush1.msra.mxu0 %v254
    %2029 = vmatprep.subr.mxu0 0.0
    %2030 = vmatpush1.msra.mxu0 %v255
    %2031 = vmatprep.subr.mxu0 0.0
    %2032 = vmatpush1.msra.mxu0 %v256
    %2033 = vmatprep.subr.mxu0 0.0
    %2034 = vmatpush1.msra.mxu0 0.0
    %2035 = vmatprep.subr.mxu0 0.0
    %2036 = vmatpush1.msra.mxu0 0.0
    %2037 = vmatprep.subr.mxu0 0.0
    %2038 = vmatpush1.msra.mxu0 0.0
    %2039 = vmatprep.subr.mxu0 0.0
    %2040 = vmatpush1.msra.mxu0 0.0
    %2041 = vmatprep.subr.mxu0 0.0
    %2042 = vmatpush1.msra.mxu0 0.0
    %2043 = vmatprep.subr.mxu0 0.0
    %2044 = vmatpush1.msra.mxu0 0.0
    %2045 = vmatprep.subr.mxu0 0.0
    %2046 = vmatpush1.msra.mxu0 0.0
    %2047 = vmatprep.subr.mxu0 0.0
    %2048 = vmatpush1.msra.mxu0 0.0
    %2049 = vmatprep.subr.mxu0 0.0
    %2050 = vmatpush1.msra.mxu0 0.0
    %2051 = vmatprep.subr.mxu0 0.0
    %2052 = vmatpush1.msra.mxu0 0.0
    %2053 = vmatprep.subr.mxu0 0.0
    %2054 = vmatpush1.msra.mxu0 0.0
    %2055 = vmatprep.subr.mxu0 0.0
    %2056 = vmatpush1.msra.mxu0 0.0
    %2057 = vmatprep.subr.mxu0 0.0
    %2058 = vmatpush1.msra.mxu0 0.0
    %2059 = vmatprep.subr.mxu0 0.0
    %2060 = vmatpush1.msra.mxu0 0.0
    %2061 = vmatprep.subr.mxu0 0.0
    %2062 = vmatpush1.msra.mxu0 0.0
    %2063 = vmatprep.subr.mxu0 0.0
    %2064 = vmatpush1.msra.mxu0 0.0
    %2065 = vmatprep.subr.mxu0 0.0
    %2066 = vmatpush1.msra.mxu0 0.0
    %2067 = vmatprep.subr.mxu0 0.0
    %2068 = vmatpush1.msra.mxu0 0.0
    %2069 = vmatprep.subr.mxu0 0.0
    %2070 = vmatpush1.msra.mxu0 0.0
    %2071 = vmatprep.subr.mxu0 0.0
    %2072 = vmatpush1.msra.mxu0 0.0
    %2073 = vmatprep.subr.mxu0 0.0
    %2074 = vmatpush1.msra.mxu0 0.0
    %2075 = vmatprep.subr.mxu0 0.0
    %2076 = vmatpush1.msra.mxu0 0.0
    %2077 = vmatprep.subr.mxu0 0.0
    %2078 = vmatpush1.msra.mxu0 0.0
    %2079 = vmatprep.subr.mxu0 0.0
    %2080 = vmatpush1.msra.mxu0 0.0
    %2081 = vmatprep.subr.mxu0 0.0
    %2082 = vmatpush1.msra.mxu0 0.0
    %2083 = vmatprep.subr.mxu0 0.0
    %2084 = vmatpush1.msra.mxu0 0.0
    %2085 = vmatprep.subr.mxu0 0.0
    %2086 = vmatpush1.msra.mxu0 0.0
    %2087 = vmatprep.subr.mxu0 0.0
    %2088 = vmatpush1.msra.mxu0 0.0
    %2089 = vmatprep.mubr.f32.mxu0 0.0
    %2090 = vmatmul.mubr.f32.gmra.mrb[0].mxu0 %v2023
    %v2091 = vpop.f32.mrb[0].mxu0
    %v2092 = vadd.f32 0.0, %v2091
    %v2093 = vpop.f32.mrb[0].mxu0
    %2094 = vdwg.mxu0
    %v2096 = vrot.slane %v2092, 2
    %v2097 = vrot.slane %v2092, 3
    %v2100 = vadd.f32 %v243, %v2096
    %v2101 = vadd.f32 %v249, %v2097
    %v2104 = vrot.slane %v1994, 2
    %v2105 = vrot.slane %v1995, 1
    %v2106 = vsel %vm521, %v2105, %v2104
    %2107 = vrot.lane.b32.xlu0 %v2106, 64
    %v2108 = vpop.permute.xlu0 %2107
    %v2109 = vsel %vm261, %v2108, 0
    %2111 = vmatprep.subr.mxu0 0.0
    %2112 = vmatpush1.msra.mxu0 %v257
    %2113 = vmatprep.subr.mxu0 0.0
    %2114 = vmatpush1.msra.mxu0 %v258
    %2115 = vmatprep.subr.mxu0 0.0
    %2116 = vmatpush1.msra.mxu0 %v259
    %2117 = vmatprep.subr.mxu0 0.0
    %2118 = vmatpush1.msra.mxu0 %v260
    %2119 = vmatprep.subr.mxu0 0.0
    %2120 = vmatpush1.msra.mxu0 0.0
    %2121 = vmatprep.subr.mxu0 0.0
    %2122 = vmatpush1.msra.mxu0 0.0
    %2123 = vmatprep.subr.mxu0 0.0
    %2124 = vmatpush1.msra.mxu0 0.0
    %2125 = vmatprep.subr.mxu0 0.0
    %2126 = vmatpush1.msra.mxu0 0.0
    %2127 = vmatprep.subr.mxu0 0.0
    %2128 = vmatpush1.msra.mxu0 0.0
    %2129 = vmatprep.subr.mxu0 0.0
    %2130 = vmatpush1.msra.mxu0 0.0
    %2131 = vmatprep.subr.mxu0 0.0
    %2132 = vmatpush1.msra.mxu0 0.0
    %2133 = vmatprep.subr.mxu0 0.0
    %2134 = vmatpush1.msra.mxu0 0.0
    %2135 = vmatprep.subr.mxu0 0.0
    %2136 = vmatpush1.msra.mxu0 0.0
    %2137 = vmatprep.subr.mxu0 0.0
    %2138 = vmatpush1.msra.mxu0 0.0
    %2139 = vmatprep.subr.mxu0 0.0
    %2140 = vmatpush1.msra.mxu0 0.0
    %2141 = vmatprep.subr.mxu0 0.0
    %2142 = vmatpush1.msra.mxu0 0.0
    %2143 = vmatprep.subr.mxu0 0.0
    %2144 = vmatpush1.msra.mxu0 0.0
    %2145 = vmatprep.subr.mxu0 0.0
    %2146 = vmatpush1.msra.mxu0 0.0
    %2147 = vmatprep.subr.mxu0 0.0
    %2148 = vmatpush1.msra.mxu0 0.0
    %2149 = vmatprep.subr.mxu0 0.0
    %2150 = vmatpush1.msra.mxu0 0.0
    %2151 = vmatprep.subr.mxu0 0.0
    %2152 = vmatpush1.msra.mxu0 0.0
    %2153 = vmatprep.subr.mxu0 0.0
    %2154 = vmatpush1.msra.mxu0 0.0
    %2155 = vmatprep.subr.mxu0 0.0
    %2156 = vmatpush1.msra.mxu0 0.0
    %2157 = vmatprep.subr.mxu0 0.0
    %2158 = vmatpush1.msra.mxu0 0.0
    %2159 = vmatprep.subr.mxu0 0.0
    %2160 = vmatpush1.msra.mxu0 0.0
    %2161 = vmatprep.subr.mxu0 0.0
    %2162 = vmatpush1.msra.mxu0 0.0
    %2163 = vmatprep.subr.mxu0 0.0
    %2164 = vmatpush1.msra.mxu0 0.0
    %2165 = vmatprep.subr.mxu0 0.0
    %2166 = vmatpush1.msra.mxu0 0.0
    %2167 = vmatprep.subr.mxu0 0.0
    %2168 = vmatpush1.msra.mxu0 0.0
    %2169 = vmatprep.subr.mxu0 0.0
    %2170 = vmatpush1.msra.mxu0 0.0
    %2171 = vmatprep.subr.mxu0 0.0
    %2172 = vmatpush1.msra.mxu0 0.0
    %2173 = vmatprep.subr.mxu0 0.0
    %2174 = vmatpush1.msra.mxu0 0.0
    %2175 = vmatprep.mubr.f32.mxu0 0.0
    %2176 = vmatmul.mubr.f32.gmra.mrb[0].mxu0 %v2109
    %v2177 = vpop.f32.mrb[0].mxu0
    %v2178 = vadd.f32 0.0, %v2177
    %v2179 = vpop.f32.mrb[0].mxu0
    %2180 = vdwg.mxu0
    %v2182 = vrot.slane %v2178, 7
    %v2185 = vadd.f32 %v245, %v2182
    %v2186 = vadd.f32 %v251, %v2178
    %v2187 = vxor.u32 %v2100, 2147483648
    %v2188 = vxor.u32 %v2101, 2147483648
    %v2189 = vmul.f32 %v2187, 1.442695
    %v2190 = vpow.pop %v2189
    %v2191 = vmul.f32 %v2188, 1.442695
    %v2192 = vpow.pop %v2191
    %v2193 = vadd.f32 %v2190, 1.0
    %v2194 = vadd.f32 %v2192, 1.0
    %v2195 = vrcp.pop %v2193
    %v2196 = vmul.f32 1.0, %v2195
    %v2197 = vrcp.pop %v2194
    %v2198 = vmul.f32 1.0, %v2197
    %v2199 = vtanh.pop %v2100
    %v2200 = vtanh.pop %v2101
    %v2203 = vrot.slane %v1928, 7
    %v2204 = vrot.slane %v1929, 7
    %v2207 = vmul.f32 %v2196, %v2203
    %v2208 = vmul.f32 %v2198, %v2204
    %2211 = vrot.lane.b32.xlu0 %v2199, 32
    %v2212 = vpop.permute.xlu0 %2211
    %2213 = vrot.lane.b32.xlu0 %v2200, 32
    %v2214 = vpop.permute.xlu0 %2213
    %v2217 = vmul.f32 %v2196, %v2212
    %v2218 = vmul.f32 %v2198, %v2214
    %2221 = vrot.lane.b32.xlu0 %v2217, 32
    %v2222 = vpop.permute.xlu0 %2221
    %2223 = vrot.lane.b32.xlu0 %v2218, 32
    %v2224 = vpop.permute.xlu0 %2223
    %v2227 = vadd.f32 %v2207, %v2222
    %v2228 = vadd.f32 %v2208, %v2224
    %v2229 = vtanh.pop %v2227
    %v2230 = vtanh.pop %v2228
    %2233 = vrot.lane.b32.xlu0 %v2229, 32
    %v2234 = vpop.permute.xlu0 %2233
    %2235 = vrot.lane.b32.xlu0 %v2230, 32
    %v2236 = vpop.permute.xlu0 %2235
    %v2239 = vmul.f32 %v2196, %v2234
    %v2240 = vmul.f32 %v2198, %v2236
    %v2241 = vxor.u32 %v2185, 2147483648
    %v2242 = vxor.u32 %v2186, 2147483648
    %v2243 = vmul.f32 %v2241, 1.442695
    %v2244 = vpow.pop %v2243
    %v2245 = vmul.f32 %v2242, 1.442695
    %v2246 = vpow.pop %v2245
    %v2247 = vadd.f32 %v2244, 1.0
    %v2248 = vadd.f32 %v2246, 1.0
    %v2249 = vrcp.pop %v2247
    %v2250 = vmul.f32 1.0, %v2249
    %v2251 = vrcp.pop %v2248
    %v2252 = vmul.f32 1.0, %v2251
    %v2253 = vtanh.pop %v2185
    %v2254 = vtanh.pop %v2186
    %v2257 = vrot.slane %v1982, 1
    %v2258 = vrot.slane %v1983, 1
    %v2261 = vmul.f32 %v2250, %v2257
    %v2262 = vmul.f32 %v2252, %v2258
    %2265 = vrot.lane.b32.xlu0 %v2253, 32
    %v2266 = vpop.permute.xlu0 %2265
    %2267 = vrot.lane.b32.xlu0 %v2254, 32
    %v2268 = vpop.permute.xlu0 %2267
    %v2271 = vmul.f32 %v2250, %v2266
    %v2272 = vmul.f32 %v2252, %v2268
    %2275 = vrot.lane.b32.xlu0 %v2271, 32
    %v2276 = vpop.permute.xlu0 %2275
    %2277 = vrot.lane.b32.xlu0 %v2272, 32
    %v2278 = vpop.permute.xlu0 %2277
    %v2281 = vadd.f32 %v2261, %v2276
    %v2282 = vadd.f32 %v2262, %v2278
    %v2283 = vtanh.pop %v2281
    %v2284 = vtanh.pop %v2282
    %2287 = vrot.lane.b32.xlu0 %v2283, 32
    %v2288 = vpop.permute.xlu0 %2287
    %2289 = vrot.lane.b32.xlu0 %v2284, 32
    %v2290 = vpop.permute.xlu0 %2289
    %v2293 = vmul.f32 %v2250, %v2288
    %v2294 = vmul.f32 %v2252, %v2290
    %v2295 = vtanh.pop %v2239
    %v2296 = vtanh.pop %v2240
    %v2299 = vrot.slane %v2295, 6
    %v2300 = vrot.slane %v2296, 6
    %v2303 = vmax.f32 %v2004, %v2299
    %v2304 = vmax.f32 %v2005, %v2300
    %v2305 = vtanh.pop %v2293
    %v2306 = vtanh.pop %v2294
    %v2309 = vrot.slane %v2305, 2
    %v2310 = vrot.slane %v2306, 2
    %v2313 = vmax.f32 %v2014, %v2309
    %v2314 = vmax.f32 %v2015, %v2310
    %v2317 = vrot.slane %v2239, 6
    %v2318 = vrot.slane %v2240, 5
    %v2319 = vsel %vm521, %v2318, %v2317
    %2320 = vrot.lane.b32.xlu0 %v2319, 64
    %v2321 = vpop.permute.xlu0 %2320
    %v2322 = vsel %vm261, %v2321, 0
    %2324 = vmatprep.subr.mxu0 0.0
    %2325 = vmatpush1.msra.mxu0 %v253
    %2326 = vmatprep.subr.mxu0 0.0
    %2327 = vmatpush1.msra.mxu0 %v254
    %2328 = vmatprep.subr.mxu0 0.0
    %2329 = vmatpush1.msra.mxu0 %v255
    %2330 = vmatprep.subr.mxu0 0.0
    %2331 = vmatpush1.msra.mxu0 %v256
    %2332 = vmatprep.subr.mxu0 0.0
    %2333 = vmatpush1.msra.mxu0 0.0
    %2334 = vmatprep.subr.mxu0 0.0
    %2335 = vmatpush1.msra.mxu0 0.0
    %2336 = vmatprep.subr.mxu0 0.0
    %2337 = vmatpush1.msra.mxu0 0.0
    %2338 = vmatprep.subr.mxu0 0.0
    %2339 = vmatpush1.msra.mxu0 0.0
    %2340 = vmatprep.subr.mxu0 0.0
    %2341 = vmatpush1.msra.mxu0 0.0
    %2342 = vmatprep.subr.mxu0 0.0
    %2343 = vmatpush1.msra.mxu0 0.0
    %2344 = vmatprep.subr.mxu0 0.0
    %2345 = vmatpush1.msra.mxu0 0.0
    %2346 = vmatprep.subr.mxu0 0.0
    %2347 = vmatpush1.msra.mxu0 0.0
    %2348 = vmatprep.subr.mxu0 0.0
    %2349 = vmatpush1.msra.mxu0 0.0
    %2350 = vmatprep.subr.mxu0 0.0
    %2351 = vmatpush1.msra.mxu0 0.0
    %2352 = vmatprep.subr.mxu0 0.0
    %2353 = vmatpush1.msra.mxu0 0.0
    %2354 = vmatprep.subr.mxu0 0.0
    %2355 = vmatpush1.msra.mxu0 0.0
    %2356 = vmatprep.subr.mxu0 0.0
    %2357 = vmatpush1.msra.mxu0 0.0
    %2358 = vmatprep.subr.mxu0 0.0
    %2359 = vmatpush1.msra.mxu0 0.0
    %2360 = vmatprep.subr.mxu0 0.0
    %2361 = vmatpush1.msra.mxu0 0.0
    %2362 = vmatprep.subr.mxu0 0.0
    %2363 = vmatpush1.msra.mxu0 0.0
    %2364 = vmatprep.subr.mxu0 0.0
    %2365 = vmatpush1.msra.mxu0 0.0
    %2366 = vmatprep.subr.mxu0 0.0
    %2367 = vmatpush1.msra.mxu0 0.0
    %2368 = vmatprep.subr.mxu0 0.0
    %2369 = vmatpush1.msra.mxu0 0.0
    %2370 = vmatprep.subr.mxu0 0.0
    %2371 = vmatpush1.msra.mxu0 0.0
    %2372 = vmatprep.subr.mxu0 0.0
    %2373 = vmatpush1.msra.mxu0 0.0
    %2374 = vmatprep.subr.mxu0 0.0
    %2375 = vmatpush1.msra.mxu0 0.0
    %2376 = vmatprep.subr.mxu0 0.0
    %2377 = vmatpush1.msra.mxu0 0.0
    %2378 = vmatprep.subr.mxu0 0.0
    %2379 = vmatpush1.msra.mxu0 0.0
    %2380 = vmatprep.subr.mxu0 0.0
    %2381 = vmatpush1.msra.mxu0 0.0
    %2382 = vmatprep.subr.mxu0 0.0
    %2383 = vmatpush1.msra.mxu0 0.0
    %2384 = vmatprep.subr.mxu0 0.0
    %2385 = vmatpush1.msra.mxu0 0.0
    %2386 = vmatprep.subr.mxu0 0.0
    %2387 = vmatpush1.msra.mxu0 0.0
    %2388 = vmatprep.mubr.f32.mxu0 0.0
    %2389 = vmatmul.mubr.f32.gmra.mrb[0].mxu0 %v2322
    %v2390 = vpop.f32.mrb[0].mxu0
    %v2391 = vadd.f32 0.0, %v2390
    %v2392 = vpop.f32.mrb[0].mxu0
    %2393 = vdwg.mxu0
    %v2395 = vrot.slane %v2391, 1
    %v2396 = vrot.slane %v2391, 2
    %v2399 = vadd.f32 %v243, %v2395
    %v2400 = vadd.f32 %v249, %v2396
    %v2403 = vrot.slane %v2293, 1
    %v2404 = vsel %vm521, %v2294, %v2403
    %2405 = vrot.lane.b32.xlu0 %v2404, 64
    %v2406 = vpop.permute.xlu0 %2405
    %v2407 = vsel %vm261, %v2406, 0
    %2409 = vmatprep.subr.mxu0 0.0
    %2410 = vmatpush1.msra.mxu0 %v257
    %2411 = vmatprep.subr.mxu0 0.0
    %2412 = vmatpush1.msra.mxu0 %v258
    %2413 = vmatprep.subr.mxu0 0.0
    %2414 = vmatpush1.msra.mxu0 %v259
    %2415 = vmatprep.subr.mxu0 0.0
    %2416 = vmatpush1.msra.mxu0 %v260
    %2417 = vmatprep.subr.mxu0 0.0
    %2418 = vmatpush1.msra.mxu0 0.0
    %2419 = vmatprep.subr.mxu0 0.0
    %2420 = vmatpush1.msra.mxu0 0.0
    %2421 = vmatprep.subr.mxu0 0.0
    %2422 = vmatpush1.msra.mxu0 0.0
    %2423 = vmatprep.subr.mxu0 0.0
    %2424 = vmatpush1.msra.mxu0 0.0
    %2425 = vmatprep.subr.mxu0 0.0
    %2426 = vmatpush1.msra.mxu0 0.0
    %2427 = vmatprep.subr.mxu0 0.0
    %2428 = vmatpush1.msra.mxu0 0.0
    %2429 = vmatprep.subr.mxu0 0.0
    %2430 = vmatpush1.msra.mxu0 0.0
    %2431 = vmatprep.subr.mxu0 0.0
    %2432 = vmatpush1.msra.mxu0 0.0
    %2433 = vmatprep.subr.mxu0 0.0
    %2434 = vmatpush1.msra.mxu0 0.0
    %2435 = vmatprep.subr.mxu0 0.0
    %2436 = vmatpush1.msra.mxu0 0.0
    %2437 = vmatprep.subr.mxu0 0.0
    %2438 = vmatpush1.msra.mxu0 0.0
    %2439 = vmatprep.subr.mxu0 0.0
    %2440 = vmatpush1.msra.mxu0 0.0
    %2441 = vmatprep.subr.mxu0 0.0
    %2442 = vmatpush1.msra.mxu0 0.0
    %2443 = vmatprep.subr.mxu0 0.0
    %2444 = vmatpush1.msra.mxu0 0.0
    %2445 = vmatprep.subr.mxu0 0.0
    %2446 = vmatpush1.msra.mxu0 0.0
    %2447 = vmatprep.subr.mxu0 0.0
    %2448 = vmatpush1.msra.mxu0 0.0
    %2449 = vmatprep.subr.mxu0 0.0
    %2450 = vmatpush1.msra.mxu0 0.0
    %2451 = vmatprep.subr.mxu0 0.0
    %2452 = vmatpush1.msra.mxu0 0.0
    %2453 = vmatprep.subr.mxu0 0.0
    %2454 = vmatpush1.msra.mxu0 0.0
    %2455 = vmatprep.subr.mxu0 0.0
    %2456 = vmatpush1.msra.mxu0 0.0
    %2457 = vmatprep.subr.mxu0 0.0
    %2458 = vmatpush1.msra.mxu0 0.0
    %2459 = vmatprep.subr.mxu0 0.0
    %2460 = vmatpush1.msra.mxu0 0.0
    %2461 = vmatprep.subr.mxu0 0.0
    %2462 = vmatpush1.msra.mxu0 0.0
    %2463 = vmatprep.subr.mxu0 0.0
    %2464 = vmatpush1.msra.mxu0 0.0
    %2465 = vmatprep.subr.mxu0 0.0
    %2466 = vmatpush1.msra.mxu0 0.0
    %2467 = vmatprep.subr.mxu0 0.0
    %2468 = vmatpush1.msra.mxu0 0.0
    %2469 = vmatprep.subr.mxu0 0.0
    %2470 = vmatpush1.msra.mxu0 0.0
    %2471 = vmatprep.subr.mxu0 0.0
    %2472 = vmatpush1.msra.mxu0 0.0
    %2473 = vmatprep.mubr.f32.mxu0 0.0
    %2474 = vmatmul.mubr.f32.gmra.mrb[0].mxu0 %v2407
    %v2475 = vpop.f32.mrb[0].mxu0
    %v2476 = vadd.f32 0.0, %v2475
    %v2477 = vpop.f32.mrb[0].mxu0
    %2478 = vdwg.mxu0
    %v2480 = vrot.slane %v2476, 1
    %v2483 = vadd.f32 %v245, %v2476
    %v2484 = vadd.f32 %v251, %v2480
    %v2485 = vxor.u32 %v2399, 2147483648
    %v2486 = vxor.u32 %v2400, 2147483648
    %v2487 = vmul.f32 %v2485, 1.442695
    %v2488 = vpow.pop %v2487
    %v2489 = vmul.f32 %v2486, 1.442695
    %v2490 = vpow.pop %v2489
    %v2491 = vadd.f32 %v2488, 1.0
    %v2492 = vadd.f32 %v2490, 1.0
    %v2493 = vrcp.pop %v2491
    %v2494 = vmul.f32 1.0, %v2493
    %v2495 = vrcp.pop %v2492
    %v2496 = vmul.f32 1.0, %v2495
    %v2497 = vtanh.pop %v2399
    %v2498 = vtanh.pop %v2400
    %v2501 = vrot.slane %v2227, 7
    %v2502 = vrot.slane %v2228, 7
    %v2505 = vmul.f32 %v2494, %v2501
    %v2506 = vmul.f32 %v2496, %v2502
    %2509 = vrot.lane.b32.xlu0 %v2497, 32
    %v2510 = vpop.permute.xlu0 %2509
    %2511 = vrot.lane.b32.xlu0 %v2498, 32
    %v2512 = vpop.permute.xlu0 %2511
    %v2515 = vmul.f32 %v2494, %v2510
    %v2516 = vmul.f32 %v2496, %v2512
    %2519 = vrot.lane.b32.xlu0 %v2515, 32
    %v2520 = vpop.permute.xlu0 %2519
    %2521 = vrot.lane.b32.xlu0 %v2516, 32
    %v2522 = vpop.permute.xlu0 %2521
    %v2525 = vadd.f32 %v2505, %v2520
    %v2526 = vadd.f32 %v2506, %v2522
    %v2527 = vtanh.pop %v2525
    %v2528 = vtanh.pop %v2526
    %2531 = vrot.lane.b32.xlu0 %v2527, 32
    %v2532 = vpop.permute.xlu0 %2531
    %2533 = vrot.lane.b32.xlu0 %v2528, 32
    %v2534 = vpop.permute.xlu0 %2533
    %v2537 = vmul.f32 %v2494, %v2532
    %v2538 = vmul.f32 %v2496, %v2534
    %v2539 = vxor.u32 %v2483, 2147483648
    %v2540 = vxor.u32 %v2484, 2147483648
    %v2541 = vmul.f32 %v2539, 1.442695
    %v2542 = vpow.pop %v2541
    %v2543 = vmul.f32 %v2540, 1.442695
    %v2544 = vpow.pop %v2543
    %v2545 = vadd.f32 %v2542, 1.0
    %v2546 = vadd.f32 %v2544, 1.0
    %v2547 = vrcp.pop %v2545
    %v2548 = vmul.f32 1.0, %v2547
    %v2549 = vrcp.pop %v2546
    %v2550 = vmul.f32 1.0, %v2549
    %v2551 = vtanh.pop %v2483
    %v2552 = vtanh.pop %v2484
    %v2555 = vrot.slane %v2281, 1
    %v2556 = vrot.slane %v2282, 1
    %v2559 = vmul.f32 %v2548, %v2555
    %v2560 = vmul.f32 %v2550, %v2556
    %2563 = vrot.lane.b32.xlu0 %v2551, 32
    %v2564 = vpop.permute.xlu0 %2563
    %2565 = vrot.lane.b32.xlu0 %v2552, 32
    %v2566 = vpop.permute.xlu0 %2565
    %v2569 = vmul.f32 %v2548, %v2564
    %v2570 = vmul.f32 %v2550, %v2566
    %2573 = vrot.lane.b32.xlu0 %v2569, 32
    %v2574 = vpop.permute.xlu0 %2573
    %2575 = vrot.lane.b32.xlu0 %v2570, 32
    %v2576 = vpop.permute.xlu0 %2575
    %v2579 = vadd.f32 %v2559, %v2574
    %v2580 = vadd.f32 %v2560, %v2576
    %v2581 = vtanh.pop %v2579
    %v2582 = vtanh.pop %v2580
    %2585 = vrot.lane.b32.xlu0 %v2581, 32
    %v2586 = vpop.permute.xlu0 %2585
    %2587 = vrot.lane.b32.xlu0 %v2582, 32
    %v2588 = vpop.permute.xlu0 %2587
    %v2591 = vmul.f32 %v2548, %v2586
    %v2592 = vmul.f32 %v2550, %v2588
    %v2593 = vtanh.pop %v2537
    %v2594 = vtanh.pop %v2538
    %v2597 = vrot.slane %v2593, 7
    %v2598 = vrot.slane %v2594, 7
    %v2601 = vmax.f32 %v2303, %v2597
    %v2602 = vmax.f32 %v2304, %v2598
    %v2603 = vtanh.pop %v2591
    %v2604 = vtanh.pop %v2592
    %v2607 = vrot.slane %v2603, 1
    %v2608 = vrot.slane %v2604, 1
    %v2611 = vmax.f32 %v2313, %v2607
    %v2612 = vmax.f32 %v2314, %v2608
    %v2613 = vtanh.pop %v151
    %v2614 = vtanh.pop %v152
    %v2615 = vsel %vm169, %v2613, -inf
    %v2616 = vrot.slane %v2615, 4
    %v2617 = vmax.f32 %v2615, %v2616
    %v2618 = vrot.slane %v2617, 2
    %v2619 = vmax.f32 %v2617, %v2618
    %v2620 = vrot.slane %v2619, 1
    %v2621 = vmax.f32 %v2619, %v2620
    %v2622 = vsel %vm169, %v2614, -inf
    %v2623 = vrot.slane %v2622, 4
    %v2624 = vmax.f32 %v2622, %v2623
    %v2625 = vrot.slane %v2624, 2
    %v2626 = vmax.f32 %v2624, %v2625
    %v2627 = vrot.slane %v2626, 1
    %v2628 = vmax.f32 %v2626, %v2627
    %v2629 = vld [vmem:[#allocation11] sm:$0xff]
    %v2630 = vld [vmem:[#allocation11 + $0x8] sm:$0xff]
    %v2631 = vld [vmem:[#allocation11 + $0x10] sm:$0xff]
    %v2632 = vld [vmem:[#allocation11 + $0x18] sm:$0xff]
    %v2633 = vld [vmem:[#allocation13] sm:$0xff]
    %v2634 = vld [vmem:[#allocation13 + $0x8] sm:$0xff]
    %v2635 = vld [vmem:[#allocation13 + $0x10] sm:$0xff]
    %v2636 = vld [vmem:[#allocation13 + $0x18] sm:$0xff]
    %v2639 = vrot.slane %v2611, 7
    %v2640 = vrot.slane %v2612, 6
    %v2641 = vsel %vm521, %v2640, %v2639
    %2642 = vrot.lane.b32.xlu0 %v2641, 64
    %v2643 = vpop.permute.xlu0 %2642
    %v2644 = vsel %vm261, %v2643, 0
    %2646 = vmatprep.subr.mxu0 0.0
    %2647 = vmatpush1.msra.mxu0 %v2633
    %2648 = vmatprep.subr.mxu0 0.0
    %2649 = vmatpush1.msra.mxu0 %v2634
    %2650 = vmatprep.subr.mxu0 0.0
    %2651 = vmatpush1.msra.mxu0 %v2635
    %2652 = vmatprep.subr.mxu0 0.0
    %2653 = vmatpush1.msra.mxu0 %v2636
    %2654 = vmatprep.subr.mxu0 0.0
    %2655 = vmatpush1.msra.mxu0 0.0
    %2656 = vmatprep.subr.mxu0 0.0
    %2657 = vmatpush1.msra.mxu0 0.0
    %2658 = vmatprep.subr.mxu0 0.0
    %2659 = vmatpush1.msra.mxu0 0.0
    %2660 = vmatprep.subr.mxu0 0.0
    %2661 = vmatpush1.msra.mxu0 0.0
    %2662 = vmatprep.subr.mxu0 0.0
    %2663 = vmatpush1.msra.mxu0 0.0
    %2664 = vmatprep.subr.mxu0 0.0
    %2665 = vmatpush1.msra.mxu0 0.0
    %2666 = vmatprep.subr.mxu0 0.0
    %2667 = vmatpush1.msra.mxu0 0.0
    %2668 = vmatprep.subr.mxu0 0.0
    %2669 = vmatpush1.msra.mxu0 0.0
    %2670 = vmatprep.subr.mxu0 0.0
    %2671 = vmatpush1.msra.mxu0 0.0
    %2672 = vmatprep.subr.mxu0 0.0
    %2673 = vmatpush1.msra.mxu0 0.0
    %2674 = vmatprep.subr.mxu0 0.0
    %2675 = vmatpush1.msra.mxu0 0.0
    %2676 = vmatprep.subr.mxu0 0.0
    %2677 = vmatpush1.msra.mxu0 0.0
    %2678 = vmatprep.subr.mxu0 0.0
    %2679 = vmatpush1.msra.mxu0 0.0
    %2680 = vmatprep.subr.mxu0 0.0
    %2681 = vmatpush1.msra.mxu0 0.0
    %2682 = vmatprep.subr.mxu0 0.0
    %2683 = vmatpush1.msra.mxu0 0.0
    %2684 = vmatprep.subr.mxu0 0.0
    %2685 = vmatpush1.msra.mxu0 0.0
    %2686 = vmatprep.subr.mxu0 0.0
    %2687 = vmatpush1.msra.mxu0 0.0
    %2688 = vmatprep.subr.mxu0 0.0
    %2689 = vmatpush1.msra.mxu0 0.0
    %2690 = vmatprep.subr.mxu0 0.0
    %2691 = vmatpush1.msra.mxu0 0.0
    %2692 = vmatprep.subr.mxu0 0.0
    %2693 = vmatpush1.msra.mxu0 0.0
    %2694 = vmatprep.subr.mxu0 0.0
    %2695 = vmatpush1.msra.mxu0 0.0
    %2696 = vmatprep.subr.mxu0 0.0
    %2697 = vmatpush1.msra.mxu0 0.0
    %2698 = vmatprep.subr.mxu0 0.0
    %2699 = vmatpush1.msra.mxu0 0.0
    %2700 = vmatprep.subr.mxu0 0.0
    %2701 = vmatpush1.msra.mxu0 0.0
    %2702 = vmatprep.subr.mxu0 0.0
    %2703 = vmatpush1.msra.mxu0 0.0
    %2704 = vmatprep.subr.mxu0 0.0
    %2705 = vmatpush1.msra.mxu0 0.0
    %2706 = vmatprep.subr.mxu0 0.0
    %2707 = vmatpush1.msra.mxu0 0.0
    %2708 = vmatprep.subr.mxu0 0.0
    %2709 = vmatpush1.msra.mxu0 0.0
    %2710 = vmatprep.mubr.f32.mxu0 0.0
    %2711 = vmatmul.mubr.f32.gmra.mrb[0].mxu0 %v2644
    %v2712 = vpop.f32.mrb[0].mxu0
    %v2713 = vadd.f32 0.0, %v2712
    %v2714 = vpop.f32.mrb[0].mxu0
    %2715 = vdwg.mxu0
    %v2718 = vrot.slane %v2602, 7
    %v2719 = vsel %vm521, %v2718, %v2601
    %2720 = vrot.lane.b32.xlu0 %v2719, 64
    %v2721 = vpop.permute.xlu0 %2720
    %v2722 = vsel %vm261, %v2721, 0
    %2724 = vmatprep.subr.mxu0 0.0
    %2725 = vmatpush1.msra.mxu0 %v2629
    %2726 = vmatprep.subr.mxu0 0.0
    %2727 = vmatpush1.msra.mxu0 %v2630
    %2728 = vmatprep.subr.mxu0 0.0
    %2729 = vmatpush1.msra.mxu0 %v2631
    %2730 = vmatprep.subr.mxu0 0.0
    %2731 = vmatpush1.msra.mxu0 %v2632
    %2732 = vmatprep.subr.mxu0 0.0
    %2733 = vmatpush1.msra.mxu0 0.0
    %2734 = vmatprep.subr.mxu0 0.0
    %2735 = vmatpush1.msra.mxu0 0.0
    %2736 = vmatprep.subr.mxu0 0.0
    %2737 = vmatpush1.msra.mxu0 0.0
    %2738 = vmatprep.subr.mxu0 0.0
    %2739 = vmatpush1.msra.mxu0 0.0
    %2740 = vmatprep.subr.mxu0 0.0
    %2741 = vmatpush1.msra.mxu0 0.0
    %2742 = vmatprep.subr.mxu0 0.0
    %2743 = vmatpush1.msra.mxu0 0.0
    %2744 = vmatprep.subr.mxu0 0.0
    %2745 = vmatpush1.msra.mxu0 0.0
    %2746 = vmatprep.subr.mxu0 0.0
    %2747 = vmatpush1.msra.mxu0 0.0
    %2748 = vmatprep.subr.mxu0 0.0
    %2749 = vmatpush1.msra.mxu0 0.0
    %2750 = vmatprep.subr.mxu0 0.0
    %2751 = vmatpush1.msra.mxu0 0.0
    %2752 = vmatprep.subr.mxu0 0.0
    %2753 = vmatpush1.msra.mxu0 0.0
    %2754 = vmatprep.subr.mxu0 0.0
    %2755 = vmatpush1.msra.mxu0 0.0
    %2756 = vmatprep.subr.mxu0 0.0
    %2757 = vmatpush1.msra.mxu0 0.0
    %2758 = vmatprep.subr.mxu0 0.0
    %2759 = vmatpush1.msra.mxu0 0.0
    %2760 = vmatprep.subr.mxu0 0.0
    %2761 = vmatpush1.msra.mxu0 0.0
    %2762 = vmatprep.subr.mxu0 0.0
    %2763 = vmatpush1.msra.mxu0 0.0
    %2764 = vmatprep.subr.mxu0 0.0
    %2765 = vmatpush1.msra.mxu0 0.0
    %2766 = vmatprep.subr.mxu0 0.0
    %2767 = vmatpush1.msra.mxu0 0.0
    %2768 = vmatprep.subr.mxu0 0.0
    %2769 = vmatpush1.msra.mxu0 0.0
    %2770 = vmatprep.subr.mxu0 0.0
    %2771 = vmatpush1.msra.mxu0 0.0
    %2772 = vmatprep.subr.mxu0 0.0
    %2773 = vmatpush1.msra.mxu0 0.0
    %2774 = vmatprep.subr.mxu0 0.0
    %2775 = vmatpush1.msra.mxu0 0.0
    %2776 = vmatprep.subr.mxu0 0.0
    %2777 = vmatpush1.msra.mxu0 0.0
    %2778 = vmatprep.subr.mxu0 0.0
    %2779 = vmatpush1.msra.mxu0 0.0
    %2780 = vmatprep.subr.mxu0 0.0
    %2781 = vmatpush1.msra.mxu0 0.0
    %2782 = vmatprep.subr.mxu0 0.0
    %2783 = vmatpush1.msra.mxu0 0.0
    %2784 = vmatprep.subr.mxu0 0.0
    %2785 = vmatpush1.msra.mxu0 0.0
    %2786 = vmatprep.subr.mxu0 0.0
    %2787 = vmatpush1.msra.mxu0 0.0
    %2788 = vmatprep.mubr.f32.mxu0 0.0
    %2789 = vmatmul.mubr.f32.gmra.mrb[0].mxu0 %v2722
    %v2790 = vpop.f32.mrb[0].mxu0
    %v2791 = vadd.f32 %v2713, %v2790
    %v2792 = vpop.f32.mrb[0].mxu0
    %2793 = vdwg.mxu0
    %v2794 = vld [vmem:[#allocation14] sm:$0xff]
    %v2795 = vld [vmem:[#allocation14 + $0x8] sm:$0xff]
    %v2798 = vsel %vm521, %v2628, %v2621
    %v2799 = vsel %vm169, %v2798, 0
    %2801 = vmatprep.subr.mxu0 0.0
    %2802 = vmatpush1.msra.mxu0 %v2794
    %2803 = vmatprep.subr.mxu0 0.0
    %2804 = vmatpush1.msra.mxu0 %v2795
    %2805 = vmatprep.subr.mxu0 0.0
    %2806 = vmatpush1.msra.mxu0 0.0
    %2807 = vmatprep.subr.mxu0 0.0
    %2808 = vmatpush1.msra.mxu0 0.0
    %2809 = vmatprep.subr.mxu0 0.0
    %2810 = vmatpush1.msra.mxu0 0.0
    %2811 = vmatprep.subr.mxu0 0.0
    %2812 = vmatpush1.msra.mxu0 0.0
    %2813 = vmatprep.subr.mxu0 0.0
    %2814 = vmatpush1.msra.mxu0 0.0
    %2815 = vmatprep.subr.mxu0 0.0
    %2816 = vmatpush1.msra.mxu0 0.0
    %2817 = vmatprep.subr.mxu0 0.0
    %2818 = vmatpush1.msra.mxu0 0.0
    %2819 = vmatprep.subr.mxu0 0.0
    %2820 = vmatpush1.msra.mxu0 0.0
    %2821 = vmatprep.subr.mxu0 0.0
    %2822 = vmatpush1.msra.mxu0 0.0
    %2823 = vmatprep.subr.mxu0 0.0
    %2824 = vmatpush1.msra.mxu0 0.0
    %2825 = vmatprep.subr.mxu0 0.0
    %2826 = vmatpush1.msra.mxu0 0.0
    %2827 = vmatprep.subr.mxu0 0.0
    %2828 = vmatpush1.msra.mxu0 0.0
    %2829 = vmatprep.subr.mxu0 0.0
    %2830 = vmatpush1.msra.mxu0 0.0
    %2831 = vmatprep.subr.mxu0 0.0
    %2832 = vmatpush1.msra.mxu0 0.0
    %2833 = vmatprep.subr.mxu0 0.0
    %2834 = vmatpush1.msra.mxu0 0.0
    %2835 = vmatprep.subr.mxu0 0.0
    %2836 = vmatpush1.msra.mxu0 0.0
    %2837 = vmatprep.subr.mxu0 0.0
    %2838 = vmatpush1.msra.mxu0 0.0
    %2839 = vmatprep.subr.mxu0 0.0
    %2840 = vmatpush1.msra.mxu0 0.0
    %2841 = vmatprep.subr.mxu0 0.0
    %2842 = vmatpush1.msra.mxu0 0.0
    %2843 = vmatprep.subr.mxu0 0.0
    %2844 = vmatpush1.msra.mxu0 0.0
    %2845 = vmatprep.subr.mxu0 0.0
    %2846 = vmatpush1.msra.mxu0 0.0
    %2847 = vmatprep.subr.mxu0 0.0
    %2848 = vmatpush1.msra.mxu0 0.0
    %2849 = vmatprep.subr.mxu0 0.0
    %2850 = vmatpush1.msra.mxu0 0.0
    %2851 = vmatprep.subr.mxu0 0.0
    %2852 = vmatpush1.msra.mxu0 0.0
    %2853 = vmatprep.subr.mxu0 0.0
    %2854 = vmatpush1.msra.mxu0 0.0
    %2855 = vmatprep.subr.mxu0 0.0
    %2856 = vmatpush1.msra.mxu0 0.0
    %2857 = vmatprep.subr.mxu0 0.0
    %2858 = vmatpush1.msra.mxu0 0.0
    %2859 = vmatprep.subr.mxu0 0.0
    %2860 = vmatpush1.msra.mxu0 0.0
    %2861 = vmatprep.subr.mxu0 0.0
    %2862 = vmatpush1.msra.mxu0 0.0
    %2863 = vmatprep.subr.mxu0 0.0
    %2864 = vmatpush1.msra.mxu0 0.0
    %2865 = vmatprep.mubr.f32.mxu0 0.0
    %2866 = vmatmul.mubr.f32.gmra.mrb[0].mxu0 %v2799
    %v2867 = vpop.f32.mrb[0].mxu0
    %v2868 = vadd.f32 0.0, %v2867
    %v2869 = vpop.f32.mrb[0].mxu0
    %2870 = vdwg.mxu0
    %v2871 = vadd.f32 %v2791, %v2868
    %v2872 = vld [vmem:[#allocation16] sm:$0x1]
    %v2874 = vlaneseq
    %v2875 = vshrl.u32 %v2874, 7
    %v2876 = vsub.s32 0, %v2875
    %v2877 = vrot.slane %v2872, %v2876
    %v2879 = vadd.f32 %v2871, %v2877
    %vm2880 = vcmask 25600
    %2881 = vst.msk [vmem:[#allocation17] sm:$0x3] %vm2880, %v2879
    // Predicated region
    $region74: #{tpu_custom_call.1} parent=1 // pred_check
      _
    $region75: #{tpu_custom_call.1} parent=1 // pred_check_branch
      %2883 = sbr.rel (0) target = $region77
    $region76: #{tpu_custom_call.1} parent=1 // pred_region
      %s2885 = ssub.s32 32, 32
      %2886 = vsyncadd [#allocation4], %s2885
      %s2888 = sshll.u32 [#allocation17], 4
      %s2889 = int_to_ptr.vmem [resolvable:$true] %s2888
      %2891 = dma.vmem_to_hbm [thread:$0]  %s2889, 32, %s9, [#allocation4]
    $region77: #{tpu_custom_call.1} parent=1 // pred_fallthru
      _
    // Predicated region
    $region78: #{tpu_custom_call.1} parent=1 // pred_check
      _
    $region79: #{tpu_custom_call.1} parent=1 // pred_check_branch
      %2893 = sbr.rel (0) target = $region81
    $region80: #{tpu_custom_call.1} parent=1 // pred_region
      %2894 = dma.done [#allocation4], 32
    $region81: #{tpu_custom_call.1} parent=1 // pred_fallthru
      _
    %2895 = vsyncpa [#allocation3], 1
    %2896 = vsyncpa [#allocation6], 1
    %2897 = vsyncpa [#allocation9], 1
    %2898 = vsyncpa [#allocation12], 1
    %2899 = vsyncpa [#allocation15], 1
    %2900 = vsyncpa [#allocation4], 1

</llo_original>
